<compile_context>
chip_gen: v5e
topology: v5e:2x2
jax: 0.10.0
libtpu: 0.0.40
codegen_flags: <defaults>
</compile_context>

<pallas_src>
import functools

import jax
import jax.numpy as jnp
from jax.experimental import pallas as pl
from jax.experimental.pallas import tpu as pltpu


def _round_up(n, m):
    return (n + m - 1) // m * m


# ------------------------------ Pallas kernel --------------------------------
def _gated_mlp_kernel(x_ref, wgu_ref, bgu_ref, wd_ref, bd_ref, o_ref, acc_ref):
    """One (token-tile, intermediate-tile) grid step of the fused gated MLP.

    x_ref  : (tm, H)     bf16  token tile (full hidden contraction in-block)
    wgu_ref: (H, 2*ti)   bf16  fused [gate_i | up_i] weight tile, (K, O) layout
    bgu_ref: (1, 2*ti)   f32   fused [gate_i | up_i] bias tile
    wd_ref : (ti, H)     bf16  down_proj weight tile, (K, O) layout
    bd_ref : (1, H)      f32   down bias
    acc_ref: (tm, H)     f32   VMEM accumulator over the intermediate (reduction) axis
    """
    i = pl.program_id(1)

    @pl.when(i == 0)
    def _():
        acc_ref[...] = jnp.zeros_like(acc_ref)

    x = x_ref[...]                                                     # bf16 (tm, H)

    # Fused gate+up projection: one bf16 MXU matmul with N = 2*ti, f32 accumulation.
    gu = jnp.dot(x, wgu_ref[...], preferred_element_type=jnp.float32) + bgu_ref[...]
    ti = gu.shape[1] // 2
    gate = gu[:, :ti]
    up = gu[:, ti:]

    # gelu_pytorch_tanh in f32 (tanh goes to the EUP slot; v5e has no bf16 VPU/EUP).
    act = 0.5 * gate * (1.0 + jnp.tanh(0.7978845608028654
                                       * (gate + 0.044715 * gate * gate * gate)))
    act = act * up                                                     # f32 (tm, ti)

    # Down-projection partial sum for this intermediate tile.
    acc_ref[...] += jnp.dot(act.astype(wd_ref.dtype), wd_ref[...],
                            preferred_element_type=jnp.float32)

    @pl.when(i == pl.num_programs(1) - 1)
    def _():
        o_ref[...] = (acc_ref[...] + bd_ref[...]).astype(o_ref.dtype)


# ------------------------- per-generation configuration ----------------------
def choose_config(intermediate_size):
    """Tile sizes + VMEM limit per TPU generation (perf-review table)."""
    assert intermediate_size % 128 == 0
    try:
        kind = jax.devices()[0].device_kind.lower()
    except Exception:
        kind = ""
    if "v7" in kind or "7x" in kind:
        # v7x: 64 MiB physical VMEM per TC -> leave headroom for Mosaic scratch.
        tm, ti, vmem = 384, 256, 56 * 1024 * 1024
    elif "v6" in kind:
        tm, ti, vmem = 512, 512, 100 * 1024 * 1024
    elif "v5" in kind or "v4" in kind:
        tm, ti, vmem = 512, 256, 100 * 1024 * 1024
    else:
        tm, ti, vmem = 256, 256, None          # conservative fallback (unknown chip)
    # ti must divide I and stay a multiple of 128.
    ti = min(ti, intermediate_size)
    while intermediate_size % ti:
        ti -= 128
    return tm, ti, vmem


# ------------------------ weight prep (load-time, ONCE) ----------------------
def prepare_weights(gate_up_w, gate_up_b, down_w, down_b, *, ti):
    """One-time weight prep (call at model-load time, NOT per forward).

    * Split the fused [2I, H] gate_up weight (gate rows first — matches
      gate_up_states.view(-1, 2, I)[:, 0] == first I output columns).
    * Transpose everything to (K, O) layout so the kernel has no transpose.
    * Re-fuse gate/up as one (H, 2I) array whose ti-wide column blocks are
      interleaved [gate_0|up_0|gate_1|up_1|...] so one BlockSpec / one matmul
      covers both projections.
    * Weights bf16, biases f32.
    """
    two_i, H = gate_up_w.shape
    I = two_i // 2
    assert I % ti == 0
    nti = I // ti

    wg = jnp.transpose(gate_up_w[:I]).astype(jnp.bfloat16)        # (H, I)
    wu = jnp.transpose(gate_up_w[I:]).astype(jnp.bfloat16)        # (H, I)
    wgu = jnp.concatenate(
        [wg.reshape(H, nti, 1, ti), wu.reshape(H, nti, 1, ti)], axis=2
    ).reshape(H, 2 * I)                                           # block i = [gate_i | up_i]

    bg = gate_up_b[:I].astype(jnp.float32)
    bu = gate_up_b[I:].astype(jnp.float32)
    bgu = jnp.concatenate(
        [bg.reshape(nti, 1, ti), bu.reshape(nti, 1, ti)], axis=1
    ).reshape(1, 2 * I)

    wd = jnp.transpose(down_w).astype(jnp.bfloat16)               # (I, H)
    bd = down_b.astype(jnp.float32).reshape(1, H)
    return wgu, bgu, wd, bd


# ------------------------------ fused forward --------------------------------
def gated_mlp(x, wgu, bgu, wd, bd, *, tm=512, ti=256, vmem_limit_bytes=None):
    """Fused gated MLP forward.

    x  : (T, H) bf16
    wgu: (H, 2I) bf16 interleaved [gate_i | up_i] blocks of width ti
    bgu: (1, 2I) f32 ; wd: (I, H) bf16 ; bd: (1, H) f32
    returns (T, H) in x.dtype
    """
    T, H = x.shape
    I = wd.shape[0]
    assert wgu.shape == (H, 2 * I) and H % 128 == 0
    assert ti % 128 == 0 and I % ti == 0

    # Pad the token axis (handles decode T=1..7 and T not a multiple of tm).
    tm_eff = min(tm, _round_up(T, 8))
    T_pad = _round_up(T, tm_eff)
    if T_pad != T:
        x = jnp.pad(x, ((0, T_pad - T), (0, 0)))

    grid = (T_pad // tm_eff, I // ti)

    out = pl.pallas_call(
        _gated_mlp_kernel,
        out_shape=jax.ShapeDtypeStruct((T_pad, H), x.dtype),
        grid_spec=pltpu.PrefetchScalarGridSpec(
            num_scalar_prefetch=0,
            grid=grid,
            in_specs=[
                pl.BlockSpec((tm_eff, H), lambda m, i: (m, 0)),    # x (re-DMAs once per I sweep)
                pl.BlockSpec((H, 2 * ti), lambda m, i: (0, i)),    # fused gate|up weight
                pl.BlockSpec((1, 2 * ti), lambda m, i: (0, i)),    # fused gate|up bias
                pl.BlockSpec((ti, H), lambda m, i: (i, 0)),        # down weight
                pl.BlockSpec((1, H), lambda m, i: (0, 0)),         # down bias
            ],
            out_specs=pl.BlockSpec((tm_eff, H), lambda m, i: (m, 0)),
            scratch_shapes=[pltpu.VMEM((tm_eff, H), jnp.float32)],
        ),
        compiler_params=pltpu.CompilerParams(
            dimension_semantics=("parallel", "arbitrary"),
            vmem_limit_bytes=vmem_limit_bytes,
        ),
    )(x, wgu, bgu, wd, bd)

    return out[:T] if T_pad != T else out


# ------------------------------ pure-JAX reference ---------------------------
def _gelu_tanh(x):
    return 0.5 * x * (1.0 + jnp.tanh(0.7978845608028654 * (x + 0.044715 * x * x * x)))


def gated_mlp_ref(x, gate_up_w, gate_up_b, down_w, down_b):
    I = gate_up_w.shape[0] // 2
    xf = x.astype(jnp.float32)
    gu = xf @ gate_up_w.astype(jnp.float32).T + gate_up_b.astype(jnp.float32)
    gate, up = gu[:, :I], gu[:, I:]
    act = _gelu_tanh(gate) * up
    act = act.astype(jnp.bfloat16).astype(jnp.float32)   # match in-kernel bf16 feed to the MXU
    return act @ down_w.astype(jnp.float32).T + down_b.astype(jnp.float32)


# --------------------------------- main ---------------------------------------
if __name__ == "__main__":
    key = jax.random.PRNGKey(0)
    k1, k2, k3, k4, k5 = jax.random.split(key, 5)

    # Small but TPU-aligned shapes; T deliberately not a multiple of 8 to exercise padding.
    T, H, I = 250, 256, 512

    hidden_states = jax.random.normal(k1, (T, H), jnp.float32).astype(jnp.bfloat16)
    gate_up_w = (0.02 * jax.random.normal(k2, (2 * I, H), jnp.float32)).astype(jnp.bfloat16)
    gate_up_b = 0.02 * jax.random.normal(k3, (2 * I,), jnp.float32)
    down_w = (0.02 * jax.random.normal(k4, (H, I), jnp.float32)).astype(jnp.bfloat16)
    down_b = 0.02 * jax.random.normal(k5, (H,), jnp.float32)

    tm, ti, vmem = choose_config(I)

    # Weight prep happens ONCE (hoisted out of the forward / jit path).
    prepared = prepare_weights(gate_up_w, gate_up_b, down_w, down_b, ti=ti)
    prepared = jax.block_until_ready(prepared)
    wgu, bgu, wd, bd = prepared

    fwd = jax.jit(functools.partial(gated_mlp, tm=tm, ti=ti, vmem_limit_bytes=vmem))

    # Prefill-sized batch.
    out = jax.block_until_ready(fwd(hidden_states, wgu, bgu, wd, bd))
    ref = gated_mlp_ref(hidden_states, gate_up_w, gate_up_b, down_w, down_b)
    assert out.shape == (T, H)
    assert bool(jnp.all(jnp.isfinite(out)))
    err = float(jnp.max(jnp.abs(out.astype(jnp.float32) - ref)))
    assert err < 2e-2, f"prefill max abs error {err}"

    # Decode-sized batch (T=3): exercises the small padded-tile path.
    x_dec = hidden_states[:3]
    out_dec = jax.block_until_ready(fwd(x_dec, wgu, bgu, wd, bd))
    ref_dec = gated_mlp_ref(x_dec, gate_up_w, gate_up_b, down_w, down_b)
    err_dec = float(jnp.max(jnp.abs(out_dec.astype(jnp.float32) - ref_dec)))
    assert out_dec.shape == (3, H), f"decode shape {out_dec.shape}"
    assert err_dec < 2e-2, f"decode max abs error {err_dec}"

    print("KERNEL_OK")
</pallas_src>

<mosaic_0001>
module attributes {stable_mosaic.version = 11 : i64} {
  func.func @_gated_mlp_kernel(%arg0: i32, %arg1: i32, %arg2: memref<256x256xbf16, #tpu.memory_space<vmem>>, %arg3: memref<256x512xbf16, #tpu.memory_space<vmem>>, %arg4: memref<1x512xf32, #tpu.memory_space<vmem>>, %arg5: memref<256x256xbf16, #tpu.memory_space<vmem>>, %arg6: memref<1x256xf32, #tpu.memory_space<vmem>>, %arg7: memref<256x256xbf16, #tpu.memory_space<vmem>>, %arg8: memref<256x256xf32, #tpu.memory_space<vmem>>) attributes {dimension_semantics = [#tpu.dimension_semantics<parallel>, #tpu.dimension_semantics<arbitrary>], iteration_bounds = array<i64: 1, 2>, scalar_prefetch = 0 : i64, scratch_operands = 1 : i64, tpu.core_type = #tpu.core_type<tc>, window_params = [{transform_indices = @transform_0, window_bounds = array<i64: 256, 256>}, {transform_indices = @transform_1, window_bounds = array<i64: 256, 512>}, {transform_indices = @transform_2, window_bounds = array<i64: 1, 512>}, {transform_indices = @transform_3, window_bounds = array<i64: 256, 256>}, {pipeline_mode = #tpu.pipeline_mode<synchronous>, transform_indices = @transform_4, window_bounds = array<i64: 1, 256>}, {transform_indices = @transform_5, window_bounds = array<i64: 256, 256>}]} {
    %c0_i32 = arith.constant 0 : i32
    %0 = arith.cmpi eq, %arg1, %c0_i32 : i32
    %1 = arith.extui %0 : i1 to i32
    %c0_i32_0 = arith.constant 0 : i32
    %2 = arith.cmpi ne, %1, %c0_i32_0 : i32
    scf.if %2 {
      %cst_18 = arith.constant 0.000000e+00 : f32
      %34 = vector.broadcast %cst_18 : f32 to vector<256x256xf32>
      %c0_19 = arith.constant 0 : index
      %c0_20 = arith.constant 0 : index
      %35 = vector.load %arg8[%c0_19, %c0_20] : memref<256x256xf32, #tpu.memory_space<vmem>>, vector<256x256xf32>
      tpu.vector_store %arg8[%c0_19, %c0_20], %34 {strides = array<i32>} : memref<256x256xf32, #tpu.memory_space<vmem>>, vector<256x256xf32>,
    } else {
    }
    %c0 = arith.constant 0 : index
    %c0_1 = arith.constant 0 : index
    %3 = vector.load %arg2[%c0, %c0_1] : memref<256x256xbf16, #tpu.memory_space<vmem>>, vector<256x256xbf16>
    %c0_2 = arith.constant 0 : index
    %c0_3 = arith.constant 0 : index
    %4 = vector.load %arg3[%c0_2, %c0_3] : memref<256x512xbf16, #tpu.memory_space<vmem>>, vector<256x512xbf16>
    %cst = arith.constant dense<0.000000e+00> : vector<256x512xf32>
    %5 = tpu.matmul %3, %4, %cst {dimension_numbers = #tpu.dot_dimension_numbers<[1], [0], [0], [1], [0, 0, 1, 1], [], []>} : vector<256x256xbf16>, vector<256x512xbf16>, vector<256x512xf32> -> vector<256x512xf32>
    %c0_4 = arith.constant 0 : index
    %c0_5 = arith.constant 0 : index
    %6 = vector.load %arg4[%c0_4, %c0_5] : memref<1x512xf32, #tpu.memory_space<vmem>>, vector<1x512xf32>
    %7 = vector.broadcast %6 : vector<1x512xf32> to vector<256x512xf32>
    %8 = arith.addf %5, %7 : vector<256x512xf32>
    %9 = vector.extract_strided_slice %8 {offsets = [0, 0], sizes = [256, 256], strides = [1, 1]} : vector<256x512xf32> to vector<256x256xf32>
    %10 = vector.extract_strided_slice %8 {offsets = [0, 256], sizes = [256, 256], strides = [1, 1]} : vector<256x512xf32> to vector<256x256xf32>
    %cst_6 = arith.constant 5.000000e-01 : f32
    %11 = vector.broadcast %cst_6 : f32 to vector<256x256xf32>
    %12 = arith.mulf %11, %9 : vector<256x256xf32>
    %cst_7 = arith.constant 4.471500e-02 : f32
    %13 = vector.broadcast %cst_7 : f32 to vector<256x256xf32>
    %14 = arith.mulf %13, %9 : vector<256x256xf32>
    %15 = arith.mulf %14, %9 : vector<256x256xf32>
    %16 = arith.mulf %15, %9 : vector<256x256xf32>
    %17 = arith.addf %9, %16 : vector<256x256xf32>
    %cst_8 = arith.constant 0.797884583 : f32
    %18 = vector.broadcast %cst_8 : f32 to vector<256x256xf32>
    %19 = arith.mulf %18, %17 : vector<256x256xf32>
    %20 = math.tanh %19 : vector<256x256xf32>
    %cst_9 = arith.constant 1.000000e+00 : f32
    %21 = vector.broadcast %cst_9 : f32 to vector<256x256xf32>
    %22 = arith.addf %21, %20 : vector<256x256xf32>
    %23 = arith.mulf %12, %22 : vector<256x256xf32>
    %24 = arith.mulf %23, %10 : vector<256x256xf32>
    %c0_10 = arith.constant 0 : index
    %c0_11 = arith.constant 0 : index
    %25 = vector.load %arg8[%c0_10, %c0_11] : memref<256x256xf32, #tpu.memory_space<vmem>>, vector<256x256xf32>
    %26 = arith.truncf %24 : vector<256x256xf32> to vector<256x256xbf16>
    %c0_12 = arith.constant 0 : index
    %c0_13 = arith.constant 0 : index
    %27 = vector.load %arg5[%c0_12, %c0_13] : memref<256x256xbf16, #tpu.memory_space<vmem>>, vector<256x256xbf16>
    %cst_14 = arith.constant dense<0.000000e+00> : vector<256x256xf32>
    %28 = tpu.matmul %26, %27, %cst_14 {dimension_numbers = #tpu.dot_dimension_numbers<[1], [0], [0], [1], [0, 0, 1, 1], [], []>} : vector<256x256xbf16>, vector<256x256xbf16>, vector<256x256xf32> -> vector<256x256xf32>
    %29 = arith.addf %25, %28 : vector<256x256xf32>
    %c0_15 = arith.constant 0 : index
    %c0_16 = arith.constant 0 : index
    %30 = vector.load %arg8[%c0_15, %c0_16] : memref<256x256xf32, #tpu.memory_space<vmem>>, vector<256x256xf32>
    tpu.vector_store %arg8[%c0_15, %c0_16], %29 {strides = array<i32>} : memref<256x256xf32, #tpu.memory_space<vmem>>, vector<256x256xf32>,
    %c1_i32 = arith.constant 1 : i32
    %31 = arith.cmpi eq, %arg1, %c1_i32 : i32
    %32 = arith.extui %31 : i1 to i32
    %c0_i32_17 = arith.constant 0 : i32
    %33 = arith.cmpi ne, %32, %c0_i32_17 : i32
    scf.if %33 {
      %c0_18 = arith.constant 0 : index
      %c0_19 = arith.constant 0 : index
      %34 = vector.load %arg8[%c0_18, %c0_19] : memref<256x256xf32, #tpu.memory_space<vmem>>, vector<256x256xf32>
      %c0_20 = arith.constant 0 : index
      %c0_21 = arith.constant 0 : index
      %35 = vector.load %arg6[%c0_20, %c0_21] : memref<1x256xf32, #tpu.memory_space<vmem>>, vector<1x256xf32>
      %36 = vector.broadcast %35 : vector<1x256xf32> to vector<256x256xf32>
      %37 = arith.addf %34, %36 : vector<256x256xf32>
      %38 = arith.truncf %37 : vector<256x256xf32> to vector<256x256xbf16>
      %c0_22 = arith.constant 0 : index
      %c0_23 = arith.constant 0 : index
      %39 = vector.load %arg7[%c0_22, %c0_23] : memref<256x256xbf16, #tpu.memory_space<vmem>>, vector<256x256xbf16>
      tpu.vector_store %arg7[%c0_22, %c0_23], %38 {strides = array<i32>} : memref<256x256xbf16, #tpu.memory_space<vmem>>, vector<256x256xbf16>,
    } else {
    }
    return
  }
  func.func @transform_0(%arg0: i32, %arg1: i32) -> (i32, i32) {
    %c0_i32 = arith.constant 0 : i32
    %c0_i32_0 = arith.constant 0 : i32
    return %arg0, %c0_i32 : i32, i32
  }
  func.func @transform_1(%arg0: i32, %arg1: i32) -> (i32, i32) {
    %c0_i32 = arith.constant 0 : i32
    %c0_i32_0 = arith.constant 0 : i32
    return %c0_i32, %arg1 : i32, i32
  }
  func.func @transform_2(%arg0: i32, %arg1: i32) -> (i32, i32) {
    %c0_i32 = arith.constant 0 : i32
    %c0_i32_0 = arith.constant 0 : i32
    return %c0_i32, %arg1 : i32, i32
  }
  func.func @transform_3(%arg0: i32, %arg1: i32) -> (i32, i32) {
    %c0_i32 = arith.constant 0 : i32
    %c0_i32_0 = arith.constant 0 : i32
    return %arg1, %c0_i32 : i32, i32
  }
  func.func @transform_4(%arg0: i32, %arg1: i32) -> (i32, i32) {
    %c0_i32 = arith.constant 0 : i32
    %c0_i32_0 = arith.constant 0 : i32
    %c0_i32_1 = arith.constant 0 : i32
    return %c0_i32, %c0_i32_0 : i32, i32
  }
  func.func @transform_5(%arg0: i32, %arg1: i32) -> (i32, i32) {
    %c0_i32 = arith.constant 0 : i32
    %c0_i32_0 = arith.constant 0 : i32
    return %arg0, %c0_i32 : i32, i32
  }
}

</mosaic_0001>

<llo_original>
// kernel: gated_mlp.1
$region0: #{gated_mlp.1}
  #allocation0 [shape = 'u32[]', space=smem, size = 0x4, offset = 0x4, fixed_abs, tag = 'smem constant byte address 0x4 - core index']
  #allocation1 [shape = 'u32[72,128]{1,0:T(1,128)}', space=vmem, size = 0x9000, scoped, tag = 'internal scratch']
  #allocation2 [shape = 'f32[256,256]{1,0:T(8,128)}', space=vmem, size = 0x40000, scoped, tag = 'scratch operand']
  %s0 = inlined_call_operand.vmem [shape: bf16[256,256], index: 0, kind: input, shape index: {}]
  %s1 = inlined_call_operand.hbm [shape: bf16[256,1024], index: 1, kind: input, shape index: {}]
  %s2 = inlined_call_operand.hbm [shape: f32[1,1024], index: 2, kind: input, shape index: {}]
  %s3 = inlined_call_operand.vmem [shape: bf16[512,256], index: 3, kind: input, shape index: {}]
  %s4 = inlined_call_operand.vmem [shape: f32[1,256], index: 4, kind: input, shape index: {}]
  %s5 = inlined_call_operand.hbm [shape: bf16[256,256], index: 5, kind: output, shape index: {}]
  %s6 = sld [smem:[#allocation0]]
  $region69: #{gated_mlp.1} parent=0
    _
  %s8 = ssub.s32 1, %s6
  %s9 = scalar_select 0, %s8, %s6
  $region1: #{gated_mlp.1} parent=0
    #allocation3 [shape = 'u8[524288]{0}', space=vmem, size = 0x80000, scoped, tag = 'input window, operand 1']
    #allocation4 [shape = 's32[2]{0}', space=sflag, size = 0x8, scoped, tag = 'scoped memory for gated_mlp.1']
    #allocation5 [shape = 's32[2]{0}', space=sflag, size = 0x8, scoped, tag = 'scoped memory for gated_mlp.1']
    #allocation6 [shape = 'u8[4096]{0}', space=vmem, size = 0x1000, scoped, tag = 'input window, operand 2']
    #allocation7 [shape = 's32[2]{0}', space=sflag, size = 0x8, scoped, tag = 'scoped memory for gated_mlp.1']
    #allocation8 [shape = 'u8[131072]{0}', space=vmem, size = 0x20000, scoped, tag = 'output window, operand 0, single buffered']
    %10 = vsyncpa [#allocation4], 0
    %s11 = scalar_lea.sflag [#allocation4], 1
    %12 = vsyncpa %s11, 0
    %13 = vsyncpa [#allocation7], 0
    %s14 = scalar_lea.sflag [#allocation7], 1
    %15 = vsyncpa %s14, 0
    %16 = vsyncpa [#allocation5], 0
    loop: start=0, step=1, limit=4
    $region2: #{gated_mlp.1} parent=1 // loop_pre_header
      _
    $region3: #{gated_mlp.1} parent=1 // loop_header
      %s18 = sphi 0, %s22
      %p19 = scmp.ge.s32.totalorder %s18, 4
      %s25 = sphi 0, %s37
      %s26 = sphi 0, %s33
      %s27 = sphi 0, %s25
      %s28 = sphi 0, %s26
      %s29 = sphi 0, %s27
      %s30 = sphi 0, %s28
      %s40 = sphi 0, %s42
      %s43 = sphi 0, %s40
      %s44 = sphi 0, %s43
      %s60 = sphi 0, %s44
      %s66 = sphi 0, %s68
      %s69 = sphi 0, %s66
      %s70 = sphi 0, %s69
      %s86 = sphi 0, %s70
      %s92 = sphi 0, %s94
      %s95 = sphi 0, %s92
      %s96 = sphi 0, %s95
      %s112 = sphi 0, %s96
      %s118 = sphi 0, %s120
      %s121 = sphi 0, %s118
      %s122 = sphi 0, %s121
      %s138 = sphi 0, %s122
      %s142 = sphi 0, %s142
      %s144 = sphi 0, %s142
      %s145 = sphi 0, %s144
      %s159 = sphi 0, %s145
      %s165 = sphi 0, %s167
      %s168 = sphi 0, %s165
      %s169 = sphi 0, %s168
      %s185 = sphi 0, %s169
    $region4: #{gated_mlp.1} parent=1 // loop_header_branch
      %21 = sbr.rel (%p19) target = $region8
    $region5: #{gated_mlp.1} parent=1 // loop_body
      %s23 = ssub.s32 %s18, 1
      %s24 = ssub.s32 %s18, 2
      %s31 = sadd.s32 1, %s26
      %p32 = scmp.ge.s32.totalorder %s31, 2
      %s33 = scalar_select %p32, 0, %s31
      %s34 = sadd.s32 1, %s25
      %s35 = scalar_select %p32, %s34, %s25
      %p36 = scmp.ge.s32.totalorder %s35, 1
      %s37 = scalar_select %p36, 0, %s35
      %s38 = ssub.s32 %s25, %s37
      %p39 = scmp.eq.s32.totalorder %s38, 0
      %s41 = sadd.s32 %s40, 1
      %s42 = scalar_select %p39, %s40, %s41
      %p45 = pneg %p39
      %p46 = scmp.eq.s32.totalorder %s18, 1
      %p47 = por %p45, %p46
      %p48 = scmp.ne.s32.totalorder %s40, %s43
      %p49 = scmp.eq.s32.totalorder %s18, 0
      %p50 = por %p48, %p49
      %p51 = scmp.ne.s32.totalorder %s40, %s43
      %p52 = scmp.eq.s32.totalorder %s23, 1
      %p53 = por %p51, %p52
      %p54 = scmp.ne.s32.totalorder %s43, %s44
      %p55 = scmp.eq.s32.totalorder %s23, 0
      %p56 = por %p54, %p55
      %p57 = scmp.ne.s32.totalorder %s43, %s44
      %p58 = scmp.eq.s32.totalorder %s24, 1
      %p59 = por %p57, %p58
      %p61 = scmp.ne.s32.totalorder %s44, %s60
      %p62 = scmp.eq.s32.totalorder %s24, 0
      %p63 = por %p61, %p62
      %s64 = ssub.s32 %s26, %s33
      %p65 = scmp.eq.s32.totalorder %s64, 0
      %s67 = sadd.s32 %s66, 1
      %s68 = scalar_select %p65, %s66, %s67
      %p71 = pneg %p65
      %p72 = scmp.eq.s32.totalorder %s18, 1
      %p73 = por %p71, %p72
      %p74 = scmp.ne.s32.totalorder %s66, %s69
      %p75 = scmp.eq.s32.totalorder %s18, 0
      %p76 = por %p74, %p75
      %p77 = scmp.ne.s32.totalorder %s66, %s69
      %p78 = scmp.eq.s32.totalorder %s23, 1
      %p79 = por %p77, %p78
      %p80 = scmp.ne.s32.totalorder %s69, %s70
      %p81 = scmp.eq.s32.totalorder %s23, 0
      %p82 = por %p80, %p81
      %p83 = scmp.ne.s32.totalorder %s69, %s70
      %p84 = scmp.eq.s32.totalorder %s24, 1
      %p85 = por %p83, %p84
      %p87 = scmp.ne.s32.totalorder %s70, %s86
      %p88 = scmp.eq.s32.totalorder %s24, 0
      %p89 = por %p87, %p88
      %s90 = ssub.s32 %s26, %s33
      %p91 = scmp.eq.s32.totalorder %s90, 0
      %s93 = sadd.s32 %s92, 1
      %s94 = scalar_select %p91, %s92, %s93
      %p97 = pneg %p91
      %p98 = scmp.eq.s32.totalorder %s18, 1
      %p99 = por %p97, %p98
      %p100 = scmp.ne.s32.totalorder %s92, %s95
      %p101 = scmp.eq.s32.totalorder %s18, 0
      %p102 = por %p100, %p101
      %p103 = scmp.ne.s32.totalorder %s92, %s95
      %p104 = scmp.eq.s32.totalorder %s23, 1
      %p105 = por %p103, %p104
      %p106 = scmp.ne.s32.totalorder %s95, %s96
      %p107 = scmp.eq.s32.totalorder %s23, 0
      %p108 = por %p106, %p107
      %p109 = scmp.ne.s32.totalorder %s95, %s96
      %p110 = scmp.eq.s32.totalorder %s24, 1
      %p111 = por %p109, %p110
      %p113 = scmp.ne.s32.totalorder %s96, %s112
      %p114 = scmp.eq.s32.totalorder %s24, 0
      %p115 = por %p113, %p114
      %s116 = ssub.s32 %s26, %s33
      %p117 = scmp.eq.s32.totalorder %s116, 0
      %s119 = sadd.s32 %s118, 1
      %s120 = scalar_select %p117, %s118, %s119
      %p123 = pneg %p117
      %p124 = scmp.eq.s32.totalorder %s18, 1
      %p125 = por %p123, %p124
      %p126 = scmp.ne.s32.totalorder %s118, %s121
      %p127 = scmp.eq.s32.totalorder %s18, 0
      %p128 = por %p126, %p127
      %p129 = scmp.ne.s32.totalorder %s118, %s121
      %p130 = scmp.eq.s32.totalorder %s23, 1
      %p131 = por %p129, %p130
      %p132 = scmp.ne.s32.totalorder %s121, %s122
      %p133 = scmp.eq.s32.totalorder %s23, 0
      %p134 = por %p132, %p133
      %p135 = scmp.ne.s32.totalorder %s121, %s122
      %p136 = scmp.eq.s32.totalorder %s24, 1
      %p137 = por %p135, %p136
      %p139 = scmp.ne.s32.totalorder %s122, %s138
      %p140 = scmp.eq.s32.totalorder %s24, 0
      %p141 = por %p139, %p140
      %s143 = sadd.s32 %s142, 1
      %p146 = scmp.eq.s32.totalorder %s18, 1
      %p147 = scmp.ne.s32.totalorder %s142, %s144
      %p148 = scmp.eq.s32.totalorder %s18, 0
      %p149 = por %p147, %p148
      %p150 = scmp.ne.s32.totalorder %s142, %s144
      %p151 = scmp.eq.s32.totalorder %s23, 1
      %p152 = por %p150, %p151
      %p153 = scmp.ne.s32.totalorder %s144, %s145
      %p154 = scmp.eq.s32.totalorder %s23, 0
      %p155 = por %p153, %p154
      %p156 = scmp.ne.s32.totalorder %s144, %s145
      %p157 = scmp.eq.s32.totalorder %s24, 1
      %p158 = por %p156, %p157
      %p160 = scmp.ne.s32.totalorder %s145, %s159
      %p161 = scmp.eq.s32.totalorder %s24, 0
      %p162 = por %p160, %p161
      %s163 = ssub.s32 %s25, %s37
      %p164 = scmp.eq.s32.totalorder %s163, 0
      %s166 = sadd.s32 %s165, 1
      %s167 = scalar_select %p164, %s165, %s166
      %p170 = pneg %p164
      %p171 = scmp.eq.s32.totalorder %s18, 1
      %p172 = por %p170, %p171
      %p173 = scmp.ne.s32.totalorder %s165, %s168
      %p174 = scmp.eq.s32.totalorder %s18, 0
      %p175 = por %p173, %p174
      %p176 = scmp.ne.s32.totalorder %s165, %s168
      %p177 = scmp.eq.s32.totalorder %s23, 1
      %p178 = por %p176, %p177
      %p179 = scmp.ne.s32.totalorder %s168, %s169
      %p180 = scmp.eq.s32.totalorder %s23, 0
      %p181 = por %p179, %p180
      %p182 = scmp.ne.s32.totalorder %s168, %s169
      %p183 = scmp.eq.s32.totalorder %s24, 1
      %p184 = por %p182, %p183
      %p186 = scmp.ne.s32.totalorder %s169, %s185
      %p187 = scmp.eq.s32.totalorder %s24, 0
      %p188 = por %p186, %p187
      %p189 = scmp.le.s32.totalorder 1, %s18
      %p190 = scmp.lt.s32.totalorder %s18, 3
      %p191 = pnand %p189, %p190
      %p192 = pneg %p191
      // Predicated region
      $region9: #{gated_mlp.1} parent=5 // pred_check
        _
      $region10: #{gated_mlp.1} parent=5 // pred_check_branch
        %194 = sbr.rel (%p191) target = $region12
      $region11: #{gated_mlp.1} parent=5 // pred_region
        %s195 = ssub.s32 %s18, 1
        // Predicated region
        $region13: #{gated_mlp.1} parent=11 // pred_check
          %p196 = pneg %p56
        $region14: #{gated_mlp.1} parent=11 // pred_check_branch
          %198 = sbr.rel (%p196) target = $region16
        $region15: #{gated_mlp.1} parent=11 // pred_region
          %s199 = smul.u32 32, %s27
          %p200 = scmp.lt.s32.totalorder %s199, 31
          %s201 = scalar_select %p200, %s199, 31
          %s202 = smul.addr %s201, 2
          %s203 = smul.addr %s202, 4
          %s204 = scalar_lea.vmem %s0, %s203
          %s205 = smul.u32 32, %s27
        $region16: #{gated_mlp.1} parent=11 // pred_fallthru
          _
        // Predicated region
        $region17: #{gated_mlp.1} parent=11 // pred_check
          %p206 = pneg %p155
        $region18: #{gated_mlp.1} parent=11 // pred_check_branch
          %208 = sbr.rel (%p206) target = $region20
        $region19: #{gated_mlp.1} parent=11 // pred_region
          _
        $region20: #{gated_mlp.1} parent=11 // pred_fallthru
          _
      $region12: #{gated_mlp.1} parent=5 // pred_fallthru
        _
      %p209 = scmp.lt.s32.totalorder %s18, 2
      // Predicated region
      $region21: #{gated_mlp.1} parent=5 // pred_check
        %p210 = pneg %p209
      $region22: #{gated_mlp.1} parent=5 // pred_check_branch
        %212 = sbr.rel (%p210) target = $region24
      $region23: #{gated_mlp.1} parent=5 // pred_region
        // Predicated region
        $region25: #{gated_mlp.1} parent=23 // pred_check
          %p213 = pneg %p76
        $region26: #{gated_mlp.1} parent=23 // pred_check_branch
          %215 = sbr.rel (%p213) target = $region28
        $region27: #{gated_mlp.1} parent=23 // pred_region
          %s216 = sand.u32 %s66, 1
          %s217 = scalar_lea.sflag [#allocation4], %s216
          %s218 = sand.u32 %s66, 1
          %s219 = smul.addr %s218, 512
          %s220 = scalar_lea.vmem [#allocation3], %s219
          %s221 = smul.u32 4, %s26
          %223 = vsyncadd %s217, 0
          %s224 = smul.addr %s221, 4
          %s225 = scalar_lea.hbm %s1, %s224
          %s226 = sshll.u32 %s225, 4
          %s227 = int_to_ptr.hbm [resolvable:$true] %s226
          %s228 = sshll.u32 %s220, 4
          %s229 = int_to_ptr.vmem [resolvable:$true] %s228
          %234 = dma.hbm_to_vmem [thread:$0]  %s227, 8192, %s229, %s217, 512, 256, 16
        $region28: #{gated_mlp.1} parent=23 // pred_fallthru
          _
        // Predicated region
        $region29: #{gated_mlp.1} parent=23 // pred_check
          %p235 = pneg %p102
        $region30: #{gated_mlp.1} parent=23 // pred_check_branch
          %237 = sbr.rel (%p235) target = $region32
        $region31: #{gated_mlp.1} parent=23 // pred_region
          %s238 = sand.u32 %s92, 1
          %s239 = scalar_lea.sflag [#allocation7], %s238
          %s240 = sand.u32 %s92, 1
          %s241 = smul.addr %s240, 4
          %s242 = scalar_lea.vmem [#allocation6], %s241
          %s243 = smul.u32 4, %s26
          %245 = vsyncadd %s239, 0
          %s246 = scalar_lea.hbm %s2, %s243
          %s248 = sshll.u32 %s246, 4
          %s249 = int_to_ptr.hbm [resolvable:$true] %s248
          %s250 = sshll.u32 %s242, 4
          %s251 = int_to_ptr.vmem [resolvable:$true] %s250
          %253 = dma.hbm_to_vmem [thread:$0]  %s249, 64, %s251, %s239
        $region32: #{gated_mlp.1} parent=23 // pred_fallthru
          _
        // Predicated region
        $region33: #{gated_mlp.1} parent=23 // pred_check
          %p254 = pneg %p128
        $region34: #{gated_mlp.1} parent=23 // pred_check_branch
          %256 = sbr.rel (%p254) target = $region36
        $region35: #{gated_mlp.1} parent=23 // pred_region
          %s257 = smul.u32 32, %s26
          %p258 = scmp.lt.s32.totalorder %s257, 63
          %s259 = scalar_select %p258, %s257, 63
          %s260 = smul.addr %s259, 2
          %s261 = smul.addr %s260, 4
          %s262 = scalar_lea.vmem %s3, %s261
          %s263 = smul.u32 32, %s26
        $region36: #{gated_mlp.1} parent=23 // pred_fallthru
          _
      $region24: #{gated_mlp.1} parent=5 // pred_fallthru
        _
      %p264 = scmp.le.s32.totalorder 1, %s18
      %p265 = scmp.lt.s32.totalorder %s18, 3
      %p266 = pnand %p264, %p265
      %p267 = pneg %p266
      // Predicated region
      $region37: #{gated_mlp.1} parent=5 // pred_check
        _
      $region38: #{gated_mlp.1} parent=5 // pred_check_branch
        %269 = sbr.rel (%p266) target = $region40
      $region39: #{gated_mlp.1} parent=5 // pred_region
        %s270 = ssub.s32 %s18, 1
        %s271 = sand.u32 %s69, 1
        %s272 = scalar_lea.sflag [#allocation4], %s271
        %s273 = sand.u32 %s69, 1
        %s274 = smul.addr %s273, 512
        %s275 = scalar_lea.vmem [#allocation3], %s274
        // Predicated region
        $region41: #{gated_mlp.1} parent=39 // pred_check
          %p276 = pneg %p82
        $region42: #{gated_mlp.1} parent=39 // pred_check_branch
          %278 = sbr.rel (%p276) target = $region44
        $region43: #{gated_mlp.1} parent=39 // pred_region
          %280 = dma.done %s272, 8192
        $region44: #{gated_mlp.1} parent=39 // pred_fallthru
          _
        %s281 = sand.u32 %s95, 1
        %s282 = scalar_lea.sflag [#allocation7], %s281
        %s283 = sand.u32 %s95, 1
        %s284 = smul.addr %s283, 4
        %s285 = scalar_lea.vmem [#allocation6], %s284
        // Predicated region
        $region45: #{gated_mlp.1} parent=39 // pred_check
          %p286 = pneg %p108
        $region46: #{gated_mlp.1} parent=39 // pred_check_branch
          %288 = sbr.rel (%p286) target = $region48
        $region47: #{gated_mlp.1} parent=39 // pred_region
          %290 = dma.done %s282, 64
        $region48: #{gated_mlp.1} parent=39 // pred_fallthru
          _
        %s291 = smul.u32 32, %s27
        %p292 = scmp.lt.s32.totalorder %s291, 31
        %s293 = scalar_select %p292, %s291, 31
        %s294 = smul.addr %s293, 2
        %s295 = smul.addr %s294, 4
        %s296 = scalar_lea.vmem %s0, %s295
        %p297 = pneg %p56
        %p298 = pneg %p53
        %s299 = sand.u32 %s69, 1
        %s300 = scalar_lea.sflag [#allocation4], %s299
        %s301 = sand.u32 %s69, 1
        %s302 = smul.addr %s301, 512
        %s303 = scalar_lea.vmem [#allocation3], %s302
        %p304 = pneg %p82
        %p305 = pneg %p79
        %s306 = sand.u32 %s95, 1
        %s307 = scalar_lea.sflag [#allocation7], %s306
        %s308 = sand.u32 %s95, 1
        %s309 = smul.addr %s308, 4
        %s310 = scalar_lea.vmem [#allocation6], %s309
        %p311 = pneg %p108
        %p312 = pneg %p105
        %s313 = smul.u32 32, %s28
        %p314 = scmp.lt.s32.totalorder %s313, 63
        %s315 = scalar_select %p314, %s313, 63
        %s316 = smul.addr %s315, 2
        %s317 = smul.addr %s316, 4
        %s318 = scalar_lea.vmem %s3, %s317
        %p319 = pneg %p134
        %p320 = pneg %p131
        %p321 = pneg %p155
        %p322 = pneg %p152
        %p323 = pneg %p181
        %p324 = pneg %p178
        %s325 = smul.u32 32, %s27
        %p326 = scmp.lt.s32.totalorder %s325, 31
        %s327 = scalar_select %p326, %s325, 31
        %s328 = smul.addr %s327, 2
        %s329 = smul.addr %s328, 4
        %s330 = scalar_lea.vmem %s0, %s329
        %s331 = smul.u32 32, %s27
        %s332 = smul.u32 4, %s28
        %s333 = smul.u32 4, %s28
        %s334 = smul.u32 32, %s28
        %p335 = scmp.lt.s32.totalorder %s334, 63
        %s336 = scalar_select %p335, %s334, 63
        %s337 = smul.addr %s336, 2
        %s338 = smul.addr %s337, 4
        %s339 = scalar_lea.vmem %s3, %s338
        %s340 = smul.u32 32, %s28
        %s341 = smul.u32 32, %s27
        %p342 = scmp.eq.s32.totalorder %s28, 0
        // Predicated region
        $region49: #{gated_mlp.1} parent=39 // pred_check
          %p343 = pneg %p342
        $region50: #{gated_mlp.1} parent=39 // pred_check_branch
          %345 = sbr.rel (%p343) target = $region52
        $region51: #{gated_mlp.1} parent=39 // pred_region
          %346 = vst [vmem:[#allocation2] sm:$0xff] 0.0
          %347 = vst [vmem:[#allocation2 + $0x8] sm:$0xff] 0.0
          %348 = vst [vmem:[#allocation2 + $0x10] sm:$0xff] 0.0
          %349 = vst [vmem:[#allocation2 + $0x18] sm:$0xff] 0.0
          %350 = vst [vmem:[#allocation2 + $0x20] sm:$0xff] 0.0
          %351 = vst [vmem:[#allocation2 + $0x28] sm:$0xff] 0.0
          %352 = vst [vmem:[#allocation2 + $0x30] sm:$0xff] 0.0
          %353 = vst [vmem:[#allocation2 + $0x38] sm:$0xff] 0.0
          %354 = vst [vmem:[#allocation2 + $0x40] sm:$0xff] 0.0
          %355 = vst [vmem:[#allocation2 + $0x48] sm:$0xff] 0.0
          %356 = vst [vmem:[#allocation2 + $0x50] sm:$0xff] 0.0
          %357 = vst [vmem:[#allocation2 + $0x58] sm:$0xff] 0.0
          %358 = vst [vmem:[#allocation2 + $0x60] sm:$0xff] 0.0
          %359 = vst [vmem:[#allocation2 + $0x68] sm:$0xff] 0.0
          %360 = vst [vmem:[#allocation2 + $0x70] sm:$0xff] 0.0
          %361 = vst [vmem:[#allocation2 + $0x78] sm:$0xff] 0.0
          %362 = vst [vmem:[#allocation2 + $0x80] sm:$0xff] 0.0
          %363 = vst [vmem:[#allocation2 + $0x88] sm:$0xff] 0.0
          %364 = vst [vmem:[#allocation2 + $0x90] sm:$0xff] 0.0
          %365 = vst [vmem:[#allocation2 + $0x98] sm:$0xff] 0.0
          %366 = vst [vmem:[#allocation2 + $0xa0] sm:$0xff] 0.0
          %367 = vst [vmem:[#allocation2 + $0xa8] sm:$0xff] 0.0
          %368 = vst [vmem:[#allocation2 + $0xb0] sm:$0xff] 0.0
          %369 = vst [vmem:[#allocation2 + $0xb8] sm:$0xff] 0.0
          %370 = vst [vmem:[#allocation2 + $0xc0] sm:$0xff] 0.0
          %371 = vst [vmem:[#allocation2 + $0xc8] sm:$0xff] 0.0
          %372 = vst [vmem:[#allocation2 + $0xd0] sm:$0xff] 0.0
          %373 = vst [vmem:[#allocation2 + $0xd8] sm:$0xff] 0.0
          %374 = vst [vmem:[#allocation2 + $0xe0] sm:$0xff] 0.0
          %375 = vst [vmem:[#allocation2 + $0xe8] sm:$0xff] 0.0
          %376 = vst [vmem:[#allocation2 + $0xf0] sm:$0xff] 0.0
          %377 = vst [vmem:[#allocation2 + $0xf8] sm:$0xff] 0.0
          %378 = vst [vmem:[#allocation2 + $0x100] sm:$0xff] 0.0
          %379 = vst [vmem:[#allocation2 + $0x108] sm:$0xff] 0.0
          %380 = vst [vmem:[#allocation2 + $0x110] sm:$0xff] 0.0
          %381 = vst [vmem:[#allocation2 + $0x118] sm:$0xff] 0.0
          %382 = vst [vmem:[#allocation2 + $0x120] sm:$0xff] 0.0
          %383 = vst [vmem:[#allocation2 + $0x128] sm:$0xff] 0.0
          %384 = vst [vmem:[#allocation2 + $0x130] sm:$0xff] 0.0
          %385 = vst [vmem:[#allocation2 + $0x138] sm:$0xff] 0.0
          %386 = vst [vmem:[#allocation2 + $0x140] sm:$0xff] 0.0
          %387 = vst [vmem:[#allocation2 + $0x148] sm:$0xff] 0.0
          %388 = vst [vmem:[#allocation2 + $0x150] sm:$0xff] 0.0
          %389 = vst [vmem:[#allocation2 + $0x158] sm:$0xff] 0.0
          %390 = vst [vmem:[#allocation2 + $0x160] sm:$0xff] 0.0
          %391 = vst [vmem:[#allocation2 + $0x168] sm:$0xff] 0.0
          %392 = vst [vmem:[#allocation2 + $0x170] sm:$0xff] 0.0
          %393 = vst [vmem:[#allocation2 + $0x178] sm:$0xff] 0.0
          %394 = vst [vmem:[#allocation2 + $0x180] sm:$0xff] 0.0
          %395 = vst [vmem:[#allocation2 + $0x188] sm:$0xff] 0.0
          %396 = vst [vmem:[#allocation2 + $0x190] sm:$0xff] 0.0
          %397 = vst [vmem:[#allocation2 + $0x198] sm:$0xff] 0.0
          %398 = vst [vmem:[#allocation2 + $0x1a0] sm:$0xff] 0.0
          %399 = vst [vmem:[#allocation2 + $0x1a8] sm:$0xff] 0.0
          %400 = vst [vmem:[#allocation2 + $0x1b0] sm:$0xff] 0.0
          %401 = vst [vmem:[#allocation2 + $0x1b8] sm:$0xff] 0.0
          %402 = vst [vmem:[#allocation2 + $0x1c0] sm:$0xff] 0.0
          %403 = vst [vmem:[#allocation2 + $0x1c8] sm:$0xff] 0.0
          %404 = vst [vmem:[#allocation2 + $0x1d0] sm:$0xff] 0.0
          %405 = vst [vmem:[#allocation2 + $0x1d8] sm:$0xff] 0.0
          %406 = vst [vmem:[#allocation2 + $0x1e0] sm:$0xff] 0.0
          %407 = vst [vmem:[#allocation2 + $0x1e8] sm:$0xff] 0.0
          %408 = vst [vmem:[#allocation2 + $0x1f0] sm:$0xff] 0.0
          %409 = vst [vmem:[#allocation2 + $0x1f8] sm:$0xff] 0.0
        $region52: #{gated_mlp.1} parent=39 // pred_fallthru
          _
        %v410 = vld [vmem:[%s330] sm:$0xff]
        %v411 = vld [vmem:[%s330 + $0x8] sm:$0xff]
        %v412 = vld [vmem:[%s330 + $0x10] sm:$0xff]
        %v413 = vld [vmem:[%s330 + $0x18] sm:$0xff]
        %v414 = vld [vmem:[%s330 + $0x20] sm:$0xff]
        %v415 = vld [vmem:[%s330 + $0x28] sm:$0xff]
        %v416 = vld [vmem:[%s330 + $0x30] sm:$0xff]
        %v417 = vld [vmem:[%s330 + $0x38] sm:$0xff]
        %v418 = vld [vmem:[%s330 + $0x40] sm:$0xff]
        %v419 = vld [vmem:[%s330 + $0x48] sm:$0xff]
        %v420 = vld [vmem:[%s330 + $0x50] sm:$0xff]
        %v421 = vld [vmem:[%s330 + $0x58] sm:$0xff]
        %v422 = vld [vmem:[%s330 + $0x60] sm:$0xff]
        %v423 = vld [vmem:[%s330 + $0x68] sm:$0xff]
        %v424 = vld [vmem:[%s330 + $0x70] sm:$0xff]
        %v425 = vld [vmem:[%s330 + $0x78] sm:$0xff]
        %v426 = vld [vmem:[%s330 + $0x80] sm:$0xff]
        %v427 = vld [vmem:[%s330 + $0x88] sm:$0xff]
        %v428 = vld [vmem:[%s330 + $0x90] sm:$0xff]
        %v429 = vld [vmem:[%s330 + $0x98] sm:$0xff]
        %v430 = vld [vmem:[%s330 + $0xa0] sm:$0xff]
        %v431 = vld [vmem:[%s330 + $0xa8] sm:$0xff]
        %v432 = vld [vmem:[%s330 + $0xb0] sm:$0xff]
        %v433 = vld [vmem:[%s330 + $0xb8] sm:$0xff]
        %v434 = vld [vmem:[%s330 + $0xc0] sm:$0xff]
        %v435 = vld [vmem:[%s330 + $0xc8] sm:$0xff]
        %v436 = vld [vmem:[%s330 + $0xd0] sm:$0xff]
        %v437 = vld [vmem:[%s330 + $0xd8] sm:$0xff]
        %v438 = vld [vmem:[%s330 + $0xe0] sm:$0xff]
        %v439 = vld [vmem:[%s330 + $0xe8] sm:$0xff]
        %v440 = vld [vmem:[%s330 + $0xf0] sm:$0xff]
        %v441 = vld [vmem:[%s330 + $0xf8] sm:$0xff]
        %v442 = vld [vmem:[%s275] sm:$0xff]
        %v443 = vld [vmem:[%s275 + $0x8] sm:$0xff]
        %v444 = vld [vmem:[%s275 + $0x10] sm:$0xff]
        %v445 = vld [vmem:[%s275 + $0x18] sm:$0xff]
        %v446 = vld [vmem:[%s275 + $0x20] sm:$0xff]
        %v447 = vld [vmem:[%s275 + $0x28] sm:$0xff]
        %v448 = vld [vmem:[%s275 + $0x30] sm:$0xff]
        %v449 = vld [vmem:[%s275 + $0x38] sm:$0xff]
        %v450 = vld [vmem:[%s275 + $0x40] sm:$0xff]
        %v451 = vld [vmem:[%s275 + $0x48] sm:$0xff]
        %v452 = vld [vmem:[%s275 + $0x50] sm:$0xff]
        %v453 = vld [vmem:[%s275 + $0x58] sm:$0xff]
        %v454 = vld [vmem:[%s275 + $0x60] sm:$0xff]
        %v455 = vld [vmem:[%s275 + $0x68] sm:$0xff]
        %v456 = vld [vmem:[%s275 + $0x70] sm:$0xff]
        %v457 = vld [vmem:[%s275 + $0x78] sm:$0xff]
        %v458 = vld [vmem:[%s275 + $0x80] sm:$0xff]
        %v459 = vld [vmem:[%s275 + $0x88] sm:$0xff]
        %v460 = vld [vmem:[%s275 + $0x90] sm:$0xff]
        %v461 = vld [vmem:[%s275 + $0x98] sm:$0xff]
        %v462 = vld [vmem:[%s275 + $0xa0] sm:$0xff]
        %v463 = vld [vmem:[%s275 + $0xa8] sm:$0xff]
        %v464 = vld [vmem:[%s275 + $0xb0] sm:$0xff]
        %v465 = vld [vmem:[%s275 + $0xb8] sm:$0xff]
        %v466 = vld [vmem:[%s275 + $0xc0] sm:$0xff]
        %v467 = vld [vmem:[%s275 + $0xc8] sm:$0xff]
        %v468 = vld [vmem:[%s275 + $0xd0] sm:$0xff]
        %v469 = vld [vmem:[%s275 + $0xd8] sm:$0xff]
        %v470 = vld [vmem:[%s275 + $0xe0] sm:$0xff]
        %v471 = vld [vmem:[%s275 + $0xe8] sm:$0xff]
        %v472 = vld [vmem:[%s275 + $0xf0] sm:$0xff]
        %v473 = vld [vmem:[%s275 + $0xf8] sm:$0xff]
        %v474 = vld [vmem:[%s275 + $0x100] sm:$0xff]
        %v475 = vld [vmem:[%s275 + $0x108] sm:$0xff]
        %v476 = vld [vmem:[%s275 + $0x110] sm:$0xff]
        %v477 = vld [vmem:[%s275 + $0x118] sm:$0xff]
        %v478 = vld [vmem:[%s275 + $0x120] sm:$0xff]
        %v479 = vld [vmem:[%s275 + $0x128] sm:$0xff]
        %v480 = vld [vmem:[%s275 + $0x130] sm:$0xff]
        %v481 = vld [vmem:[%s275 + $0x138] sm:$0xff]
        %v482 = vld [vmem:[%s275 + $0x140] sm:$0xff]
        %v483 = vld [vmem:[%s275 + $0x148] sm:$0xff]
        %v484 = vld [vmem:[%s275 + $0x150] sm:$0xff]
        %v485 = vld [vmem:[%s275 + $0x158] sm:$0xff]
        %v486 = vld [vmem:[%s275 + $0x160] sm:$0xff]
        %v487 = vld [vmem:[%s275 + $0x168] sm:$0xff]
        %v488 = vld [vmem:[%s275 + $0x170] sm:$0xff]
        %v489 = vld [vmem:[%s275 + $0x178] sm:$0xff]
        %v490 = vld [vmem:[%s275 + $0x180] sm:$0xff]
        %v491 = vld [vmem:[%s275 + $0x188] sm:$0xff]
        %v492 = vld [vmem:[%s275 + $0x190] sm:$0xff]
        %v493 = vld [vmem:[%s275 + $0x198] sm:$0xff]
        %v494 = vld [vmem:[%s275 + $0x1a0] sm:$0xff]
        %v495 = vld [vmem:[%s275 + $0x1a8] sm:$0xff]
        %v496 = vld [vmem:[%s275 + $0x1b0] sm:$0xff]
        %v497 = vld [vmem:[%s275 + $0x1b8] sm:$0xff]
        %v498 = vld [vmem:[%s275 + $0x1c0] sm:$0xff]
        %v499 = vld [vmem:[%s275 + $0x1c8] sm:$0xff]
        %v500 = vld [vmem:[%s275 + $0x1d0] sm:$0xff]
        %v501 = vld [vmem:[%s275 + $0x1d8] sm:$0xff]
        %v502 = vld [vmem:[%s275 + $0x1e0] sm:$0xff]
        %v503 = vld [vmem:[%s275 + $0x1e8] sm:$0xff]
        %v504 = vld [vmem:[%s275 + $0x1f0] sm:$0xff]
        %v505 = vld [vmem:[%s275 + $0x1f8] sm:$0xff]
        %v506 = vld [vmem:[%s285] sm:$0xf]
        %v508 = vperm.slane %v506, 0
        %v509 = vperm.slane %v506, 1
        %v510 = vperm.slane %v506, 2
        %v511 = vperm.slane %v506, 3
        %v548 = vunpack.c.l.b16 %v410
        %v549 = vunpack.c.h.b16 %v410
        %v550 = vunpack.c.l.b16 %v411
        %v551 = vunpack.c.h.b16 %v411
        %v552 = vunpack.c.l.b16 %v412
        %v553 = vunpack.c.h.b16 %v412
        %v554 = vunpack.c.l.b16 %v413
        %v555 = vunpack.c.h.b16 %v413
        %v556 = vunpack.c.l.b16 %v414
        %v557 = vunpack.c.h.b16 %v414
        %v558 = vunpack.c.l.b16 %v415
        %v559 = vunpack.c.h.b16 %v415
        %v560 = vunpack.c.l.b16 %v416
        %v561 = vunpack.c.h.b16 %v416
        %v562 = vunpack.c.l.b16 %v417
        %v563 = vunpack.c.h.b16 %v417
        %v564 = vunpack.c.l.b16 %v418
        %v565 = vunpack.c.h.b16 %v418
        %v566 = vunpack.c.l.b16 %v419
        %v567 = vunpack.c.h.b16 %v419
        %v568 = vunpack.c.l.b16 %v420
        %v569 = vunpack.c.h.b16 %v420
        %v570 = vunpack.c.l.b16 %v421
        %v571 = vunpack.c.h.b16 %v421
        %v572 = vunpack.c.l.b16 %v422
        %v573 = vunpack.c.h.b16 %v422
        %v574 = vunpack.c.l.b16 %v423
        %v575 = vunpack.c.h.b16 %v423
        %v576 = vunpack.c.l.b16 %v424
        %v577 = vunpack.c.h.b16 %v424
        %v578 = vunpack.c.l.b16 %v425
        %v579 = vunpack.c.h.b16 %v425
        %v580 = vunpack.c.l.b16 %v426
        %v581 = vunpack.c.h.b16 %v426
        %v582 = vunpack.c.l.b16 %v427
        %v583 = vunpack.c.h.b16 %v427
        %v584 = vunpack.c.l.b16 %v428
        %v585 = vunpack.c.h.b16 %v428
        %v586 = vunpack.c.l.b16 %v429
        %v587 = vunpack.c.h.b16 %v429
        %v588 = vunpack.c.l.b16 %v430
        %v589 = vunpack.c.h.b16 %v430
        %v590 = vunpack.c.l.b16 %v431
        %v591 = vunpack.c.h.b16 %v431
        %v592 = vunpack.c.l.b16 %v432
        %v593 = vunpack.c.h.b16 %v432
        %v594 = vunpack.c.l.b16 %v433
        %v595 = vunpack.c.h.b16 %v433
        %v596 = vunpack.c.l.b16 %v434
        %v597 = vunpack.c.h.b16 %v434
        %v598 = vunpack.c.l.b16 %v435
        %v599 = vunpack.c.h.b16 %v435
        %v600 = vunpack.c.l.b16 %v436
        %v601 = vunpack.c.h.b16 %v436
        %v602 = vunpack.c.l.b16 %v437
        %v603 = vunpack.c.h.b16 %v437
        %v604 = vunpack.c.l.b16 %v438
        %v605 = vunpack.c.h.b16 %v438
        %v606 = vunpack.c.l.b16 %v439
        %v607 = vunpack.c.h.b16 %v439
        %v608 = vunpack.c.l.b16 %v440
        %v609 = vunpack.c.h.b16 %v440
        %v610 = vunpack.c.l.b16 %v441
        %v611 = vunpack.c.h.b16 %v441
        %v612 = vpack.c.b16 %v550, %v548
        %v613 = vpack.c.b16 %v551, %v549
        %v614 = vpack.c.b16 %v554, %v552
        %v615 = vpack.c.b16 %v555, %v553
        %v616 = vpack.c.b16 %v558, %v556
        %v617 = vpack.c.b16 %v559, %v557
        %v618 = vpack.c.b16 %v562, %v560
        %v619 = vpack.c.b16 %v563, %v561
        %v620 = vpack.c.b16 %v566, %v564
        %v621 = vpack.c.b16 %v567, %v565
        %v622 = vpack.c.b16 %v570, %v568
        %v623 = vpack.c.b16 %v571, %v569
        %v624 = vpack.c.b16 %v574, %v572
        %v625 = vpack.c.b16 %v575, %v573
        %v626 = vpack.c.b16 %v578, %v576
        %v627 = vpack.c.b16 %v579, %v577
        %v628 = vpack.c.b16 %v582, %v580
        %v629 = vpack.c.b16 %v583, %v581
        %v630 = vpack.c.b16 %v586, %v584
        %v631 = vpack.c.b16 %v587, %v585
        %v632 = vpack.c.b16 %v590, %v588
        %v633 = vpack.c.b16 %v591, %v589
        %v634 = vpack.c.b16 %v594, %v592
        %v635 = vpack.c.b16 %v595, %v593
        %v636 = vpack.c.b16 %v598, %v596
        %v637 = vpack.c.b16 %v599, %v597
        %v638 = vpack.c.b16 %v602, %v600
        %v639 = vpack.c.b16 %v603, %v601
        %v640 = vpack.c.b16 %v606, %v604
        %v641 = vpack.c.b16 %v607, %v605
        %v642 = vpack.c.b16 %v610, %v608
        %v643 = vpack.c.b16 %v611, %v609
        %v740 = vunpack.c.l.b16 %v442
        %v741 = vunpack.c.h.b16 %v442
        %v742 = vunpack.c.l.b16 %v443
        %v743 = vunpack.c.h.b16 %v443
        %v744 = vunpack.c.l.b16 %v444
        %v745 = vunpack.c.h.b16 %v444
        %v746 = vunpack.c.l.b16 %v445
        %v747 = vunpack.c.h.b16 %v445
        %v748 = vunpack.c.l.b16 %v446
        %v749 = vunpack.c.h.b16 %v446
        %v750 = vunpack.c.l.b16 %v447
        %v751 = vunpack.c.h.b16 %v447
        %v752 = vunpack.c.l.b16 %v448
        %v753 = vunpack.c.h.b16 %v448
        %v754 = vunpack.c.l.b16 %v449
        %v755 = vunpack.c.h.b16 %v449
        %v756 = vunpack.c.l.b16 %v450
        %v757 = vunpack.c.h.b16 %v450
        %v758 = vunpack.c.l.b16 %v451
        %v759 = vunpack.c.h.b16 %v451
        %v760 = vunpack.c.l.b16 %v452
        %v761 = vunpack.c.h.b16 %v452
        %v762 = vunpack.c.l.b16 %v453
        %v763 = vunpack.c.h.b16 %v453
        %v764 = vunpack.c.l.b16 %v454
        %v765 = vunpack.c.h.b16 %v454
        %v766 = vunpack.c.l.b16 %v455
        %v767 = vunpack.c.h.b16 %v455
        %v768 = vunpack.c.l.b16 %v456
        %v769 = vunpack.c.h.b16 %v456
        %v770 = vunpack.c.l.b16 %v457
        %v771 = vunpack.c.h.b16 %v457
        %v772 = vunpack.c.l.b16 %v458
        %v773 = vunpack.c.h.b16 %v458
        %v774 = vunpack.c.l.b16 %v459
        %v775 = vunpack.c.h.b16 %v459
        %v776 = vunpack.c.l.b16 %v460
        %v777 = vunpack.c.h.b16 %v460
        %v778 = vunpack.c.l.b16 %v461
        %v779 = vunpack.c.h.b16 %v461
        %v780 = vunpack.c.l.b16 %v462
        %v781 = vunpack.c.h.b16 %v462
        %v782 = vunpack.c.l.b16 %v463
        %v783 = vunpack.c.h.b16 %v463
        %v784 = vunpack.c.l.b16 %v464
        %v785 = vunpack.c.h.b16 %v464
        %v786 = vunpack.c.l.b16 %v465
        %v787 = vunpack.c.h.b16 %v465
        %v788 = vunpack.c.l.b16 %v466
        %v789 = vunpack.c.h.b16 %v466
        %v790 = vunpack.c.l.b16 %v467
        %v791 = vunpack.c.h.b16 %v467
        %v792 = vunpack.c.l.b16 %v468
        %v793 = vunpack.c.h.b16 %v468
        %v794 = vunpack.c.l.b16 %v469
        %v795 = vunpack.c.h.b16 %v469
        %v796 = vunpack.c.l.b16 %v470
        %v797 = vunpack.c.h.b16 %v470
        %v798 = vunpack.c.l.b16 %v471
        %v799 = vunpack.c.h.b16 %v471
        %v800 = vunpack.c.l.b16 %v472
        %v801 = vunpack.c.h.b16 %v472
        %v802 = vunpack.c.l.b16 %v473
        %v803 = vunpack.c.h.b16 %v473
        %v804 = vunpack.c.l.b16 %v474
        %v805 = vunpack.c.h.b16 %v474
        %v806 = vunpack.c.l.b16 %v475
        %v807 = vunpack.c.h.b16 %v475
        %v808 = vunpack.c.l.b16 %v476
        %v809 = vunpack.c.h.b16 %v476
        %v810 = vunpack.c.l.b16 %v477
        %v811 = vunpack.c.h.b16 %v477
        %v812 = vunpack.c.l.b16 %v478
        %v813 = vunpack.c.h.b16 %v478
        %v814 = vunpack.c.l.b16 %v479
        %v815 = vunpack.c.h.b16 %v479
        %v816 = vunpack.c.l.b16 %v480
        %v817 = vunpack.c.h.b16 %v480
        %v818 = vunpack.c.l.b16 %v481
        %v819 = vunpack.c.h.b16 %v481
        %v820 = vunpack.c.l.b16 %v482
        %v821 = vunpack.c.h.b16 %v482
        %v822 = vunpack.c.l.b16 %v483
        %v823 = vunpack.c.h.b16 %v483
        %v824 = vunpack.c.l.b16 %v484
        %v825 = vunpack.c.h.b16 %v484
        %v826 = vunpack.c.l.b16 %v485
        %v827 = vunpack.c.h.b16 %v485
        %v828 = vunpack.c.l.b16 %v486
        %v829 = vunpack.c.h.b16 %v486
        %v830 = vunpack.c.l.b16 %v487
        %v831 = vunpack.c.h.b16 %v487
        %v832 = vunpack.c.l.b16 %v488
        %v833 = vunpack.c.h.b16 %v488
        %v834 = vunpack.c.l.b16 %v489
        %v835 = vunpack.c.h.b16 %v489
        %v836 = vunpack.c.l.b16 %v490
        %v837 = vunpack.c.h.b16 %v490
        %v838 = vunpack.c.l.b16 %v491
        %v839 = vunpack.c.h.b16 %v491
        %v840 = vunpack.c.l.b16 %v492
        %v841 = vunpack.c.h.b16 %v492
        %v842 = vunpack.c.l.b16 %v493
        %v843 = vunpack.c.h.b16 %v493
        %v844 = vunpack.c.l.b16 %v494
        %v845 = vunpack.c.h.b16 %v494
        %v846 = vunpack.c.l.b16 %v495
        %v847 = vunpack.c.h.b16 %v495
        %v848 = vunpack.c.l.b16 %v496
        %v849 = vunpack.c.h.b16 %v496
        %v850 = vunpack.c.l.b16 %v497
        %v851 = vunpack.c.h.b16 %v497
        %v852 = vunpack.c.l.b16 %v498
        %v853 = vunpack.c.h.b16 %v498
        %v854 = vunpack.c.l.b16 %v499
        %v855 = vunpack.c.h.b16 %v499
        %v856 = vunpack.c.l.b16 %v500
        %v857 = vunpack.c.h.b16 %v500
        %v858 = vunpack.c.l.b16 %v501
        %v859 = vunpack.c.h.b16 %v501
        %v860 = vunpack.c.l.b16 %v502
        %v861 = vunpack.c.h.b16 %v502
        %v862 = vunpack.c.l.b16 %v503
        %v863 = vunpack.c.h.b16 %v503
        %v864 = vunpack.c.l.b16 %v504
        %v865 = vunpack.c.h.b16 %v504
        %v866 = vunpack.c.l.b16 %v505
        %v867 = vunpack.c.h.b16 %v505
        %v868 = vpack.c.b16 %v744, %v740
        %v869 = vpack.c.b16 %v745, %v741
        %v870 = vpack.c.b16 %v746, %v742
        %v871 = vpack.c.b16 %v747, %v743
        %v872 = vpack.c.b16 %v752, %v748
        %v873 = vpack.c.b16 %v753, %v749
        %v874 = vpack.c.b16 %v754, %v750
        %v875 = vpack.c.b16 %v755, %v751
        %v876 = vpack.c.b16 %v760, %v756
        %v877 = vpack.c.b16 %v761, %v757
        %v878 = vpack.c.b16 %v762, %v758
        %v879 = vpack.c.b16 %v763, %v759
        %v880 = vpack.c.b16 %v768, %v764
        %v881 = vpack.c.b16 %v769, %v765
        %v882 = vpack.c.b16 %v770, %v766
        %v883 = vpack.c.b16 %v771, %v767
        %v884 = vpack.c.b16 %v776, %v772
        %v885 = vpack.c.b16 %v777, %v773
        %v886 = vpack.c.b16 %v778, %v774
        %v887 = vpack.c.b16 %v779, %v775
        %v888 = vpack.c.b16 %v784, %v780
        %v889 = vpack.c.b16 %v785, %v781
        %v890 = vpack.c.b16 %v786, %v782
        %v891 = vpack.c.b16 %v787, %v783
        %v892 = vpack.c.b16 %v792, %v788
        %v893 = vpack.c.b16 %v793, %v789
        %v894 = vpack.c.b16 %v794, %v790
        %v895 = vpack.c.b16 %v795, %v791
        %v896 = vpack.c.b16 %v800, %v796
        %v897 = vpack.c.b16 %v801, %v797
        %v898 = vpack.c.b16 %v802, %v798
        %v899 = vpack.c.b16 %v803, %v799
        %v900 = vpack.c.b16 %v808, %v804
        %v901 = vpack.c.b16 %v809, %v805
        %v902 = vpack.c.b16 %v810, %v806
        %v903 = vpack.c.b16 %v811, %v807
        %v904 = vpack.c.b16 %v816, %v812
        %v905 = vpack.c.b16 %v817, %v813
        %v906 = vpack.c.b16 %v818, %v814
        %v907 = vpack.c.b16 %v819, %v815
        %v908 = vpack.c.b16 %v824, %v820
        %v909 = vpack.c.b16 %v825, %v821
        %v910 = vpack.c.b16 %v826, %v822
        %v911 = vpack.c.b16 %v827, %v823
        %v912 = vpack.c.b16 %v832, %v828
        %v913 = vpack.c.b16 %v833, %v829
        %v914 = vpack.c.b16 %v834, %v830
        %v915 = vpack.c.b16 %v835, %v831
        %v916 = vpack.c.b16 %v840, %v836
        %v917 = vpack.c.b16 %v841, %v837
        %v918 = vpack.c.b16 %v842, %v838
        %v919 = vpack.c.b16 %v843, %v839
        %v920 = vpack.c.b16 %v848, %v844
        %v921 = vpack.c.b16 %v849, %v845
        %v922 = vpack.c.b16 %v850, %v846
        %v923 = vpack.c.b16 %v851, %v847
        %v924 = vpack.c.b16 %v856, %v852
        %v925 = vpack.c.b16 %v857, %v853
        %v926 = vpack.c.b16 %v858, %v854
        %v927 = vpack.c.b16 %v859, %v855
        %v928 = vpack.c.b16 %v864, %v860
        %v929 = vpack.c.b16 %v865, %v861
        %v930 = vpack.c.b16 %v866, %v862
        %v931 = vpack.c.b16 %v867, %v863
        %996 = vmatpush.bf16.msra.mxu0 %v896
        %997 = vmatpush.bf16.msra.mxu0 %v892
        %998 = vmatpush.bf16.msra.mxu0 %v888
        %999 = vmatpush.bf16.msra.mxu0 %v884
        %1000 = vmatpush.bf16.msra.mxu0 %v880
        %1001 = vmatpush.bf16.msra.mxu0 %v876
        %1002 = vmatpush.bf16.msra.mxu0 %v872
        %1003 = vmatpush.bf16.msra.mxu0 %v868
        %1004 = vmatmul.bf16.gmra.mxu0 %v612
        %v1005 = vpop.f32.mrf.mxu0
        %v1006 = vadd.f32 %v508, %v1005
        %v1007 = vpop.f32.mrf.mxu0
        %v1008 = vadd.f32 %v508, %v1007
        %1009 = vmatmul.bf16.gmra.mxu0 %v614
        %v1010 = vpop.f32.mrf.mxu0
        %v1011 = vadd.f32 %v508, %v1010
        %v1012 = vpop.f32.mrf.mxu0
        %v1013 = vadd.f32 %v508, %v1012
        %1014 = vmatmul.bf16.gmra.mxu0 %v616
        %v1015 = vpop.f32.mrf.mxu0
        %v1016 = vadd.f32 %v508, %v1015
        %v1017 = vpop.f32.mrf.mxu0
        %v1018 = vadd.f32 %v508, %v1017
        %1019 = vmatmul.bf16.gmra.mxu0 %v618
        %v1020 = vpop.f32.mrf.mxu0
        %v1021 = vadd.f32 %v508, %v1020
        %v1022 = vpop.f32.mrf.mxu0
        %v1023 = vadd.f32 %v508, %v1022
        %1024 = vmatmul.bf16.gmra.mxu0 %v620
        %v1025 = vpop.f32.mrf.mxu0
        %v1026 = vadd.f32 %v508, %v1025
        %v1027 = vpop.f32.mrf.mxu0
        %v1028 = vadd.f32 %v508, %v1027
        %1029 = vmatmul.bf16.gmra.mxu0 %v622
        %v1030 = vpop.f32.mrf.mxu0
        %v1031 = vadd.f32 %v508, %v1030
        %v1032 = vpop.f32.mrf.mxu0
        %v1033 = vadd.f32 %v508, %v1032
        %1034 = vmatmul.bf16.gmra.mxu0 %v624
        %v1035 = vpop.f32.mrf.mxu0
        %v1036 = vadd.f32 %v508, %v1035
        %v1037 = vpop.f32.mrf.mxu0
        %v1038 = vadd.f32 %v508, %v1037
        %1039 = vmatmul.bf16.gmra.mxu0 %v626
        %v1040 = vpop.f32.mrf.mxu0
        %v1041 = vadd.f32 %v508, %v1040
        %v1042 = vpop.f32.mrf.mxu0
        %v1043 = vadd.f32 %v508, %v1042
        %1044 = vmatmul.bf16.gmra.mxu0 %v628
        %v1045 = vpop.f32.mrf.mxu0
        %v1046 = vadd.f32 %v508, %v1045
        %v1047 = vpop.f32.mrf.mxu0
        %v1048 = vadd.f32 %v508, %v1047
        %1049 = vmatmul.bf16.gmra.mxu0 %v630
        %v1050 = vpop.f32.mrf.mxu0
        %v1051 = vadd.f32 %v508, %v1050
        %v1052 = vpop.f32.mrf.mxu0
        %v1053 = vadd.f32 %v508, %v1052
        %1054 = vmatmul.bf16.gmra.mxu0 %v632
        %v1055 = vpop.f32.mrf.mxu0
        %v1056 = vadd.f32 %v508, %v1055
        %v1057 = vpop.f32.mrf.mxu0
        %v1058 = vadd.f32 %v508, %v1057
        %1059 = vmatmul.bf16.gmra.mxu0 %v634
        %v1060 = vpop.f32.mrf.mxu0
        %v1061 = vadd.f32 %v508, %v1060
        %v1062 = vpop.f32.mrf.mxu0
        %v1063 = vadd.f32 %v508, %v1062
        %1064 = vmatmul.bf16.gmra.mxu0 %v636
        %v1065 = vpop.f32.mrf.mxu0
        %v1066 = vadd.f32 %v508, %v1065
        %v1067 = vpop.f32.mrf.mxu0
        %v1068 = vadd.f32 %v508, %v1067
        %1069 = vmatmul.bf16.gmra.mxu0 %v638
        %v1070 = vpop.f32.mrf.mxu0
        %v1071 = vadd.f32 %v508, %v1070
        %v1072 = vpop.f32.mrf.mxu0
        %v1073 = vadd.f32 %v508, %v1072
        %1074 = vmatmul.bf16.gmra.mxu0 %v640
        %v1075 = vpop.f32.mrf.mxu0
        %v1076 = vadd.f32 %v508, %v1075
        %v1077 = vpop.f32.mrf.mxu0
        %v1078 = vadd.f32 %v508, %v1077
        %1079 = vmatmul.bf16.gmra.mxu0 %v642
        %v1080 = vpop.f32.mrf.mxu0
        %v1081 = vadd.f32 %v508, %v1080
        %v1082 = vpop.f32.mrf.mxu0
        %v1083 = vadd.f32 %v508, %v1082
        %1084 = vdwg.mxu0
        %1085 = vmatpush.bf16.msra.mxu0 %v928
        %1086 = vmatpush.bf16.msra.mxu0 %v924
        %1087 = vmatpush.bf16.msra.mxu0 %v920
        %1088 = vmatpush.bf16.msra.mxu0 %v916
        %1089 = vmatpush.bf16.msra.mxu0 %v912
        %1090 = vmatpush.bf16.msra.mxu0 %v908
        %1091 = vmatpush.bf16.msra.mxu0 %v904
        %1092 = vmatpush.bf16.msra.mxu0 %v900
        %1093 = vmatmul.bf16.gmra.mxu0 %v613
        %v1094 = vpop.f32.mrf.mxu0
        %v1095 = vadd.f32 %v1006, %v1094
        %v1096 = vpop.f32.mrf.mxu0
        %v1097 = vadd.f32 %v1008, %v1096
        %1098 = vmatmul.bf16.gmra.mxu0 %v615
        %v1099 = vpop.f32.mrf.mxu0
        %v1100 = vadd.f32 %v1011, %v1099
        %v1101 = vpop.f32.mrf.mxu0
        %v1102 = vadd.f32 %v1013, %v1101
        %1103 = vmatmul.bf16.gmra.mxu0 %v617
        %v1104 = vpop.f32.mrf.mxu0
        %v1105 = vadd.f32 %v1016, %v1104
        %v1106 = vpop.f32.mrf.mxu0
        %v1107 = vadd.f32 %v1018, %v1106
        %1108 = vmatmul.bf16.gmra.mxu0 %v619
        %v1109 = vpop.f32.mrf.mxu0
        %v1110 = vadd.f32 %v1021, %v1109
        %v1111 = vpop.f32.mrf.mxu0
        %v1112 = vadd.f32 %v1023, %v1111
        %1113 = vmatmul.bf16.gmra.mxu0 %v621
        %v1114 = vpop.f32.mrf.mxu0
        %v1115 = vadd.f32 %v1026, %v1114
        %v1116 = vpop.f32.mrf.mxu0
        %v1117 = vadd.f32 %v1028, %v1116
        %1118 = vmatmul.bf16.gmra.mxu0 %v623
        %v1119 = vpop.f32.mrf.mxu0
        %v1120 = vadd.f32 %v1031, %v1119
        %v1121 = vpop.f32.mrf.mxu0
        %v1122 = vadd.f32 %v1033, %v1121
        %1123 = vmatmul.bf16.gmra.mxu0 %v625
        %v1124 = vpop.f32.mrf.mxu0
        %v1125 = vadd.f32 %v1036, %v1124
        %v1126 = vpop.f32.mrf.mxu0
        %v1127 = vadd.f32 %v1038, %v1126
        %1128 = vmatmul.bf16.gmra.mxu0 %v627
        %v1129 = vpop.f32.mrf.mxu0
        %v1130 = vadd.f32 %v1041, %v1129
        %v1131 = vpop.f32.mrf.mxu0
        %v1132 = vadd.f32 %v1043, %v1131
        %1133 = vmatmul.bf16.gmra.mxu0 %v629
        %v1134 = vpop.f32.mrf.mxu0
        %v1135 = vadd.f32 %v1046, %v1134
        %v1136 = vpop.f32.mrf.mxu0
        %v1137 = vadd.f32 %v1048, %v1136
        %1138 = vmatmul.bf16.gmra.mxu0 %v631
        %v1139 = vpop.f32.mrf.mxu0
        %v1140 = vadd.f32 %v1051, %v1139
        %v1141 = vpop.f32.mrf.mxu0
        %v1142 = vadd.f32 %v1053, %v1141
        %1143 = vmatmul.bf16.gmra.mxu0 %v633
        %v1144 = vpop.f32.mrf.mxu0
        %v1145 = vadd.f32 %v1056, %v1144
        %v1146 = vpop.f32.mrf.mxu0
        %v1147 = vadd.f32 %v1058, %v1146
        %1148 = vmatmul.bf16.gmra.mxu0 %v635
        %v1149 = vpop.f32.mrf.mxu0
        %v1150 = vadd.f32 %v1061, %v1149
        %v1151 = vpop.f32.mrf.mxu0
        %v1152 = vadd.f32 %v1063, %v1151
        %1153 = vmatmul.bf16.gmra.mxu0 %v637
        %v1154 = vpop.f32.mrf.mxu0
        %v1155 = vadd.f32 %v1066, %v1154
        %v1156 = vpop.f32.mrf.mxu0
        %v1157 = vadd.f32 %v1068, %v1156
        %1158 = vmatmul.bf16.gmra.mxu0 %v639
        %v1159 = vpop.f32.mrf.mxu0
        %v1160 = vadd.f32 %v1071, %v1159
        %v1161 = vpop.f32.mrf.mxu0
        %v1162 = vadd.f32 %v1073, %v1161
        %1163 = vmatmul.bf16.gmra.mxu0 %v641
        %v1164 = vpop.f32.mrf.mxu0
        %v1165 = vadd.f32 %v1076, %v1164
        %v1166 = vpop.f32.mrf.mxu0
        %v1167 = vadd.f32 %v1078, %v1166
        %1168 = vmatmul.bf16.gmra.mxu0 %v643
        %v1169 = vpop.f32.mrf.mxu0
        %v1170 = vadd.f32 %v1081, %v1169
        %v1171 = vpop.f32.mrf.mxu0
        %v1172 = vadd.f32 %v1083, %v1171
        %1173 = vdwg.mxu0
        %1174 = vmatpush.bf16.msra.mxu0 %v897
        %1175 = vmatpush.bf16.msra.mxu0 %v893
        %1176 = vmatpush.bf16.msra.mxu0 %v889
        %1177 = vmatpush.bf16.msra.mxu0 %v885
        %1178 = vmatpush.bf16.msra.mxu0 %v881
        %1179 = vmatpush.bf16.msra.mxu0 %v877
        %1180 = vmatpush.bf16.msra.mxu0 %v873
        %1181 = vmatpush.bf16.msra.mxu0 %v869
        %1182 = vmatmul.bf16.gmra.mxu0 %v612
        %v1183 = vpop.f32.mrf.mxu0
        %v1184 = vadd.f32 %v509, %v1183
        %v1185 = vpop.f32.mrf.mxu0
        %v1186 = vadd.f32 %v509, %v1185
        %1187 = vmatmul.bf16.gmra.mxu0 %v614
        %v1188 = vpop.f32.mrf.mxu0
        %v1189 = vadd.f32 %v509, %v1188
        %v1190 = vpop.f32.mrf.mxu0
        %v1191 = vadd.f32 %v509, %v1190
        %1192 = vmatmul.bf16.gmra.mxu0 %v616
        %v1193 = vpop.f32.mrf.mxu0
        %v1194 = vadd.f32 %v509, %v1193
        %v1195 = vpop.f32.mrf.mxu0
        %v1196 = vadd.f32 %v509, %v1195
        %1197 = vmatmul.bf16.gmra.mxu0 %v618
        %v1198 = vpop.f32.mrf.mxu0
        %v1199 = vadd.f32 %v509, %v1198
        %v1200 = vpop.f32.mrf.mxu0
        %v1201 = vadd.f32 %v509, %v1200
        %1202 = vmatmul.bf16.gmra.mxu0 %v620
        %v1203 = vpop.f32.mrf.mxu0
        %v1204 = vadd.f32 %v509, %v1203
        %v1205 = vpop.f32.mrf.mxu0
        %v1206 = vadd.f32 %v509, %v1205
        %1207 = vmatmul.bf16.gmra.mxu0 %v622
        %v1208 = vpop.f32.mrf.mxu0
        %v1209 = vadd.f32 %v509, %v1208
        %v1210 = vpop.f32.mrf.mxu0
        %v1211 = vadd.f32 %v509, %v1210
        %1212 = vmatmul.bf16.gmra.mxu0 %v624
        %v1213 = vpop.f32.mrf.mxu0
        %v1214 = vadd.f32 %v509, %v1213
        %v1215 = vpop.f32.mrf.mxu0
        %v1216 = vadd.f32 %v509, %v1215
        %1217 = vmatmul.bf16.gmra.mxu0 %v626
        %v1218 = vpop.f32.mrf.mxu0
        %v1219 = vadd.f32 %v509, %v1218
        %v1220 = vpop.f32.mrf.mxu0
        %v1221 = vadd.f32 %v509, %v1220
        %1222 = vmatmul.bf16.gmra.mxu0 %v628
        %v1223 = vpop.f32.mrf.mxu0
        %v1224 = vadd.f32 %v509, %v1223
        %v1225 = vpop.f32.mrf.mxu0
        %v1226 = vadd.f32 %v509, %v1225
        %1227 = vmatmul.bf16.gmra.mxu0 %v630
        %v1228 = vpop.f32.mrf.mxu0
        %v1229 = vadd.f32 %v509, %v1228
        %v1230 = vpop.f32.mrf.mxu0
        %v1231 = vadd.f32 %v509, %v1230
        %1232 = vmatmul.bf16.gmra.mxu0 %v632
        %v1233 = vpop.f32.mrf.mxu0
        %v1234 = vadd.f32 %v509, %v1233
        %v1235 = vpop.f32.mrf.mxu0
        %v1236 = vadd.f32 %v509, %v1235
        %1237 = vmatmul.bf16.gmra.mxu0 %v634
        %v1238 = vpop.f32.mrf.mxu0
        %v1239 = vadd.f32 %v509, %v1238
        %v1240 = vpop.f32.mrf.mxu0
        %v1241 = vadd.f32 %v509, %v1240
        %1242 = vmatmul.bf16.gmra.mxu0 %v636
        %v1243 = vpop.f32.mrf.mxu0
        %v1244 = vadd.f32 %v509, %v1243
        %v1245 = vpop.f32.mrf.mxu0
        %v1246 = vadd.f32 %v509, %v1245
        %1247 = vmatmul.bf16.gmra.mxu0 %v638
        %v1248 = vpop.f32.mrf.mxu0
        %v1249 = vadd.f32 %v509, %v1248
        %v1250 = vpop.f32.mrf.mxu0
        %v1251 = vadd.f32 %v509, %v1250
        %1252 = vmatmul.bf16.gmra.mxu0 %v640
        %v1253 = vpop.f32.mrf.mxu0
        %v1254 = vadd.f32 %v509, %v1253
        %v1255 = vpop.f32.mrf.mxu0
        %v1256 = vadd.f32 %v509, %v1255
        %1257 = vmatmul.bf16.gmra.mxu0 %v642
        %v1258 = vpop.f32.mrf.mxu0
        %v1259 = vadd.f32 %v509, %v1258
        %v1260 = vpop.f32.mrf.mxu0
        %v1261 = vadd.f32 %v509, %v1260
        %1262 = vdwg.mxu0
        %1263 = vmatpush.bf16.msra.mxu0 %v929
        %1264 = vmatpush.bf16.msra.mxu0 %v925
        %1265 = vmatpush.bf16.msra.mxu0 %v921
        %1266 = vmatpush.bf16.msra.mxu0 %v917
        %1267 = vmatpush.bf16.msra.mxu0 %v913
        %1268 = vmatpush.bf16.msra.mxu0 %v909
        %1269 = vmatpush.bf16.msra.mxu0 %v905
        %1270 = vmatpush.bf16.msra.mxu0 %v901
        %1271 = vmatmul.bf16.gmra.mxu0 %v613
        %v1272 = vpop.f32.mrf.mxu0
        %v1273 = vadd.f32 %v1184, %v1272
        %v1274 = vpop.f32.mrf.mxu0
        %v1275 = vadd.f32 %v1186, %v1274
        %1276 = vmatmul.bf16.gmra.mxu0 %v615
        %v1277 = vpop.f32.mrf.mxu0
        %v1278 = vadd.f32 %v1189, %v1277
        %v1279 = vpop.f32.mrf.mxu0
        %v1280 = vadd.f32 %v1191, %v1279
        %1281 = vmatmul.bf16.gmra.mxu0 %v617
        %v1282 = vpop.f32.mrf.mxu0
        %v1283 = vadd.f32 %v1194, %v1282
        %v1284 = vpop.f32.mrf.mxu0
        %v1285 = vadd.f32 %v1196, %v1284
        %1286 = vmatmul.bf16.gmra.mxu0 %v619
        %v1287 = vpop.f32.mrf.mxu0
        %v1288 = vadd.f32 %v1199, %v1287
        %v1289 = vpop.f32.mrf.mxu0
        %v1290 = vadd.f32 %v1201, %v1289
        %1291 = vmatmul.bf16.gmra.mxu0 %v621
        %v1292 = vpop.f32.mrf.mxu0
        %v1293 = vadd.f32 %v1204, %v1292
        %v1294 = vpop.f32.mrf.mxu0
        %v1295 = vadd.f32 %v1206, %v1294
        %1296 = vmatmul.bf16.gmra.mxu0 %v623
        %v1297 = vpop.f32.mrf.mxu0
        %v1298 = vadd.f32 %v1209, %v1297
        %v1299 = vpop.f32.mrf.mxu0
        %v1300 = vadd.f32 %v1211, %v1299
        %1301 = vmatmul.bf16.gmra.mxu0 %v625
        %v1302 = vpop.f32.mrf.mxu0
        %v1303 = vadd.f32 %v1214, %v1302
        %v1304 = vpop.f32.mrf.mxu0
        %v1305 = vadd.f32 %v1216, %v1304
        %1306 = vmatmul.bf16.gmra.mxu0 %v627
        %v1307 = vpop.f32.mrf.mxu0
        %v1308 = vadd.f32 %v1219, %v1307
        %v1309 = vpop.f32.mrf.mxu0
        %v1310 = vadd.f32 %v1221, %v1309
        %1311 = vmatmul.bf16.gmra.mxu0 %v629
        %v1312 = vpop.f32.mrf.mxu0
        %v1313 = vadd.f32 %v1224, %v1312
        %v1314 = vpop.f32.mrf.mxu0
        %v1315 = vadd.f32 %v1226, %v1314
        %1316 = vmatmul.bf16.gmra.mxu0 %v631
        %v1317 = vpop.f32.mrf.mxu0
        %v1318 = vadd.f32 %v1229, %v1317
        %v1319 = vpop.f32.mrf.mxu0
        %v1320 = vadd.f32 %v1231, %v1319
        %1321 = vmatmul.bf16.gmra.mxu0 %v633
        %v1322 = vpop.f32.mrf.mxu0
        %v1323 = vadd.f32 %v1234, %v1322
        %v1324 = vpop.f32.mrf.mxu0
        %v1325 = vadd.f32 %v1236, %v1324
        %1326 = vmatmul.bf16.gmra.mxu0 %v635
        %v1327 = vpop.f32.mrf.mxu0
        %v1328 = vadd.f32 %v1239, %v1327
        %v1329 = vpop.f32.mrf.mxu0
        %v1330 = vadd.f32 %v1241, %v1329
        %1331 = vmatmul.bf16.gmra.mxu0 %v637
        %v1332 = vpop.f32.mrf.mxu0
        %v1333 = vadd.f32 %v1244, %v1332
        %v1334 = vpop.f32.mrf.mxu0
        %v1335 = vadd.f32 %v1246, %v1334
        %1336 = vmatmul.bf16.gmra.mxu0 %v639
        %v1337 = vpop.f32.mrf.mxu0
        %v1338 = vadd.f32 %v1249, %v1337
        %v1339 = vpop.f32.mrf.mxu0
        %v1340 = vadd.f32 %v1251, %v1339
        %1341 = vmatmul.bf16.gmra.mxu0 %v641
        %v1342 = vpop.f32.mrf.mxu0
        %v1343 = vadd.f32 %v1254, %v1342
        %v1344 = vpop.f32.mrf.mxu0
        %v1345 = vadd.f32 %v1256, %v1344
        %1346 = vmatmul.bf16.gmra.mxu0 %v643
        %v1347 = vpop.f32.mrf.mxu0
        %v1348 = vadd.f32 %v1259, %v1347
        %v1349 = vpop.f32.mrf.mxu0
        %v1350 = vadd.f32 %v1261, %v1349
        %1351 = vdwg.mxu0
        %1352 = vmatpush.bf16.msra.mxu0 %v898
        %1353 = vmatpush.bf16.msra.mxu0 %v894
        %1354 = vmatpush.bf16.msra.mxu0 %v890
        %1355 = vmatpush.bf16.msra.mxu0 %v886
        %1356 = vmatpush.bf16.msra.mxu0 %v882
        %1357 = vmatpush.bf16.msra.mxu0 %v878
        %1358 = vmatpush.bf16.msra.mxu0 %v874
        %1359 = vmatpush.bf16.msra.mxu0 %v870
        %1360 = vmatmul.bf16.gmra.mxu0 %v612
        %v1361 = vpop.f32.mrf.mxu0
        %v1362 = vadd.f32 %v510, %v1361
        %v1363 = vpop.f32.mrf.mxu0
        %v1364 = vadd.f32 %v510, %v1363
        %1365 = vmatmul.bf16.gmra.mxu0 %v614
        %v1366 = vpop.f32.mrf.mxu0
        %v1367 = vadd.f32 %v510, %v1366
        %v1368 = vpop.f32.mrf.mxu0
        %v1369 = vadd.f32 %v510, %v1368
        %1370 = vmatmul.bf16.gmra.mxu0 %v616
        %v1371 = vpop.f32.mrf.mxu0
        %v1372 = vadd.f32 %v510, %v1371
        %v1373 = vpop.f32.mrf.mxu0
        %v1374 = vadd.f32 %v510, %v1373
        %1375 = vmatmul.bf16.gmra.mxu0 %v618
        %v1376 = vpop.f32.mrf.mxu0
        %v1377 = vadd.f32 %v510, %v1376
        %v1378 = vpop.f32.mrf.mxu0
        %v1379 = vadd.f32 %v510, %v1378
        %1380 = vmatmul.bf16.gmra.mxu0 %v620
        %v1381 = vpop.f32.mrf.mxu0
        %v1382 = vadd.f32 %v510, %v1381
        %v1383 = vpop.f32.mrf.mxu0
        %v1384 = vadd.f32 %v510, %v1383
        %1385 = vmatmul.bf16.gmra.mxu0 %v622
        %v1386 = vpop.f32.mrf.mxu0
        %v1387 = vadd.f32 %v510, %v1386
        %v1388 = vpop.f32.mrf.mxu0
        %v1389 = vadd.f32 %v510, %v1388
        %1390 = vmatmul.bf16.gmra.mxu0 %v624
        %v1391 = vpop.f32.mrf.mxu0
        %v1392 = vadd.f32 %v510, %v1391
        %v1393 = vpop.f32.mrf.mxu0
        %v1394 = vadd.f32 %v510, %v1393
        %1395 = vmatmul.bf16.gmra.mxu0 %v626
        %v1396 = vpop.f32.mrf.mxu0
        %v1397 = vadd.f32 %v510, %v1396
        %v1398 = vpop.f32.mrf.mxu0
        %v1399 = vadd.f32 %v510, %v1398
        %1400 = vmatmul.bf16.gmra.mxu0 %v628
        %v1401 = vpop.f32.mrf.mxu0
        %v1402 = vadd.f32 %v510, %v1401
        %v1403 = vpop.f32.mrf.mxu0
        %v1404 = vadd.f32 %v510, %v1403
        %1405 = vmatmul.bf16.gmra.mxu0 %v630
        %v1406 = vpop.f32.mrf.mxu0
        %v1407 = vadd.f32 %v510, %v1406
        %v1408 = vpop.f32.mrf.mxu0
        %v1409 = vadd.f32 %v510, %v1408
        %1410 = vmatmul.bf16.gmra.mxu0 %v632
        %v1411 = vpop.f32.mrf.mxu0
        %v1412 = vadd.f32 %v510, %v1411
        %v1413 = vpop.f32.mrf.mxu0
        %v1414 = vadd.f32 %v510, %v1413
        %1415 = vmatmul.bf16.gmra.mxu0 %v634
        %v1416 = vpop.f32.mrf.mxu0
        %v1417 = vadd.f32 %v510, %v1416
        %v1418 = vpop.f32.mrf.mxu0
        %v1419 = vadd.f32 %v510, %v1418
        %1420 = vmatmul.bf16.gmra.mxu0 %v636
        %v1421 = vpop.f32.mrf.mxu0
        %v1422 = vadd.f32 %v510, %v1421
        %v1423 = vpop.f32.mrf.mxu0
        %v1424 = vadd.f32 %v510, %v1423
        %1425 = vmatmul.bf16.gmra.mxu0 %v638
        %v1426 = vpop.f32.mrf.mxu0
        %v1427 = vadd.f32 %v510, %v1426
        %v1428 = vpop.f32.mrf.mxu0
        %v1429 = vadd.f32 %v510, %v1428
        %1430 = vmatmul.bf16.gmra.mxu0 %v640
        %v1431 = vpop.f32.mrf.mxu0
        %v1432 = vadd.f32 %v510, %v1431
        %v1433 = vpop.f32.mrf.mxu0
        %v1434 = vadd.f32 %v510, %v1433
        %1435 = vmatmul.bf16.gmra.mxu0 %v642
        %v1436 = vpop.f32.mrf.mxu0
        %v1437 = vadd.f32 %v510, %v1436
        %v1438 = vpop.f32.mrf.mxu0
        %v1439 = vadd.f32 %v510, %v1438
        %1440 = vdwg.mxu0
        %1441 = vmatpush.bf16.msra.mxu0 %v930
        %1442 = vmatpush.bf16.msra.mxu0 %v926
        %1443 = vmatpush.bf16.msra.mxu0 %v922
        %1444 = vmatpush.bf16.msra.mxu0 %v918
        %1445 = vmatpush.bf16.msra.mxu0 %v914
        %1446 = vmatpush.bf16.msra.mxu0 %v910
        %1447 = vmatpush.bf16.msra.mxu0 %v906
        %1448 = vmatpush.bf16.msra.mxu0 %v902
        %1449 = vmatmul.bf16.gmra.mxu0 %v613
        %v1450 = vpop.f32.mrf.mxu0
        %v1451 = vadd.f32 %v1362, %v1450
        %v1452 = vpop.f32.mrf.mxu0
        %v1453 = vadd.f32 %v1364, %v1452
        %1454 = vmatmul.bf16.gmra.mxu0 %v615
        %v1455 = vpop.f32.mrf.mxu0
        %v1456 = vadd.f32 %v1367, %v1455
        %v1457 = vpop.f32.mrf.mxu0
        %v1458 = vadd.f32 %v1369, %v1457
        %1459 = vmatmul.bf16.gmra.mxu0 %v617
        %v1460 = vpop.f32.mrf.mxu0
        %v1461 = vadd.f32 %v1372, %v1460
        %v1462 = vpop.f32.mrf.mxu0
        %v1463 = vadd.f32 %v1374, %v1462
        %1464 = vmatmul.bf16.gmra.mxu0 %v619
        %v1465 = vpop.f32.mrf.mxu0
        %v1466 = vadd.f32 %v1377, %v1465
        %v1467 = vpop.f32.mrf.mxu0
        %v1468 = vadd.f32 %v1379, %v1467
        %1469 = vmatmul.bf16.gmra.mxu0 %v621
        %v1470 = vpop.f32.mrf.mxu0
        %v1471 = vadd.f32 %v1382, %v1470
        %v1472 = vpop.f32.mrf.mxu0
        %v1473 = vadd.f32 %v1384, %v1472
        %1474 = vmatmul.bf16.gmra.mxu0 %v623
        %v1475 = vpop.f32.mrf.mxu0
        %v1476 = vadd.f32 %v1387, %v1475
        %v1477 = vpop.f32.mrf.mxu0
        %v1478 = vadd.f32 %v1389, %v1477
        %1479 = vmatmul.bf16.gmra.mxu0 %v625
        %v1480 = vpop.f32.mrf.mxu0
        %v1481 = vadd.f32 %v1392, %v1480
        %v1482 = vpop.f32.mrf.mxu0
        %v1483 = vadd.f32 %v1394, %v1482
        %1484 = vmatmul.bf16.gmra.mxu0 %v627
        %v1485 = vpop.f32.mrf.mxu0
        %v1486 = vadd.f32 %v1397, %v1485
        %v1487 = vpop.f32.mrf.mxu0
        %v1488 = vadd.f32 %v1399, %v1487
        %1489 = vmatmul.bf16.gmra.mxu0 %v629
        %v1490 = vpop.f32.mrf.mxu0
        %v1491 = vadd.f32 %v1402, %v1490
        %v1492 = vpop.f32.mrf.mxu0
        %v1493 = vadd.f32 %v1404, %v1492
        %1494 = vmatmul.bf16.gmra.mxu0 %v631
        %v1495 = vpop.f32.mrf.mxu0
        %v1496 = vadd.f32 %v1407, %v1495
        %v1497 = vpop.f32.mrf.mxu0
        %v1498 = vadd.f32 %v1409, %v1497
        %1499 = vmatmul.bf16.gmra.mxu0 %v633
        %v1500 = vpop.f32.mrf.mxu0
        %v1501 = vadd.f32 %v1412, %v1500
        %v1502 = vpop.f32.mrf.mxu0
        %v1503 = vadd.f32 %v1414, %v1502
        %1504 = vmatmul.bf16.gmra.mxu0 %v635
        %v1505 = vpop.f32.mrf.mxu0
        %v1506 = vadd.f32 %v1417, %v1505
        %v1507 = vpop.f32.mrf.mxu0
        %v1508 = vadd.f32 %v1419, %v1507
        %1509 = vmatmul.bf16.gmra.mxu0 %v637
        %v1510 = vpop.f32.mrf.mxu0
        %v1511 = vadd.f32 %v1422, %v1510
        %v1512 = vpop.f32.mrf.mxu0
        %v1513 = vadd.f32 %v1424, %v1512
        %1514 = vmatmul.bf16.gmra.mxu0 %v639
        %v1515 = vpop.f32.mrf.mxu0
        %v1516 = vadd.f32 %v1427, %v1515
        %v1517 = vpop.f32.mrf.mxu0
        %v1518 = vadd.f32 %v1429, %v1517
        %1519 = vmatmul.bf16.gmra.mxu0 %v641
        %v1520 = vpop.f32.mrf.mxu0
        %v1521 = vadd.f32 %v1432, %v1520
        %v1522 = vpop.f32.mrf.mxu0
        %v1523 = vadd.f32 %v1434, %v1522
        %1524 = vmatmul.bf16.gmra.mxu0 %v643
        %v1525 = vpop.f32.mrf.mxu0
        %v1526 = vadd.f32 %v1437, %v1525
        %v1527 = vpop.f32.mrf.mxu0
        %v1528 = vadd.f32 %v1439, %v1527
        %1529 = vdwg.mxu0
        %1530 = vmatpush.bf16.msra.mxu0 %v899
        %1531 = vmatpush.bf16.msra.mxu0 %v895
        %1532 = vmatpush.bf16.msra.mxu0 %v891
        %1533 = vmatpush.bf16.msra.mxu0 %v887
        %1534 = vmatpush.bf16.msra.mxu0 %v883
        %1535 = vmatpush.bf16.msra.mxu0 %v879
        %1536 = vmatpush.bf16.msra.mxu0 %v875
        %1537 = vmatpush.bf16.msra.mxu0 %v871
        %1538 = vmatmul.bf16.gmra.mxu0 %v612
        %v1539 = vpop.f32.mrf.mxu0
        %v1540 = vadd.f32 %v511, %v1539
        %v1541 = vpop.f32.mrf.mxu0
        %v1542 = vadd.f32 %v511, %v1541
        %1543 = vmatmul.bf16.gmra.mxu0 %v614
        %v1544 = vpop.f32.mrf.mxu0
        %v1545 = vadd.f32 %v511, %v1544
        %v1546 = vpop.f32.mrf.mxu0
        %v1547 = vadd.f32 %v511, %v1546
        %1548 = vmatmul.bf16.gmra.mxu0 %v616
        %v1549 = vpop.f32.mrf.mxu0
        %v1550 = vadd.f32 %v511, %v1549
        %v1551 = vpop.f32.mrf.mxu0
        %v1552 = vadd.f32 %v511, %v1551
        %1553 = vmatmul.bf16.gmra.mxu0 %v618
        %v1554 = vpop.f32.mrf.mxu0
        %v1555 = vadd.f32 %v511, %v1554
        %v1556 = vpop.f32.mrf.mxu0
        %v1557 = vadd.f32 %v511, %v1556
        %1558 = vmatmul.bf16.gmra.mxu0 %v620
        %v1559 = vpop.f32.mrf.mxu0
        %v1560 = vadd.f32 %v511, %v1559
        %v1561 = vpop.f32.mrf.mxu0
        %v1562 = vadd.f32 %v511, %v1561
        %1563 = vmatmul.bf16.gmra.mxu0 %v622
        %v1564 = vpop.f32.mrf.mxu0
        %v1565 = vadd.f32 %v511, %v1564
        %v1566 = vpop.f32.mrf.mxu0
        %v1567 = vadd.f32 %v511, %v1566
        %1568 = vmatmul.bf16.gmra.mxu0 %v624
        %v1569 = vpop.f32.mrf.mxu0
        %v1570 = vadd.f32 %v511, %v1569
        %v1571 = vpop.f32.mrf.mxu0
        %v1572 = vadd.f32 %v511, %v1571
        %1573 = vmatmul.bf16.gmra.mxu0 %v626
        %v1574 = vpop.f32.mrf.mxu0
        %v1575 = vadd.f32 %v511, %v1574
        %v1576 = vpop.f32.mrf.mxu0
        %v1577 = vadd.f32 %v511, %v1576
        %1578 = vmatmul.bf16.gmra.mxu0 %v628
        %v1579 = vpop.f32.mrf.mxu0
        %v1580 = vadd.f32 %v511, %v1579
        %v1581 = vpop.f32.mrf.mxu0
        %v1582 = vadd.f32 %v511, %v1581
        %1583 = vmatmul.bf16.gmra.mxu0 %v630
        %v1584 = vpop.f32.mrf.mxu0
        %v1585 = vadd.f32 %v511, %v1584
        %v1586 = vpop.f32.mrf.mxu0
        %v1587 = vadd.f32 %v511, %v1586
        %1588 = vmatmul.bf16.gmra.mxu0 %v632
        %v1589 = vpop.f32.mrf.mxu0
        %v1590 = vadd.f32 %v511, %v1589
        %v1591 = vpop.f32.mrf.mxu0
        %v1592 = vadd.f32 %v511, %v1591
        %1593 = vmatmul.bf16.gmra.mxu0 %v634
        %v1594 = vpop.f32.mrf.mxu0
        %v1595 = vadd.f32 %v511, %v1594
        %v1596 = vpop.f32.mrf.mxu0
        %v1597 = vadd.f32 %v511, %v1596
        %1598 = vmatmul.bf16.gmra.mxu0 %v636
        %v1599 = vpop.f32.mrf.mxu0
        %v1600 = vadd.f32 %v511, %v1599
        %v1601 = vpop.f32.mrf.mxu0
        %v1602 = vadd.f32 %v511, %v1601
        %1603 = vmatmul.bf16.gmra.mxu0 %v638
        %v1604 = vpop.f32.mrf.mxu0
        %v1605 = vadd.f32 %v511, %v1604
        %v1606 = vpop.f32.mrf.mxu0
        %v1607 = vadd.f32 %v511, %v1606
        %1608 = vmatmul.bf16.gmra.mxu0 %v640
        %v1609 = vpop.f32.mrf.mxu0
        %v1610 = vadd.f32 %v511, %v1609
        %v1611 = vpop.f32.mrf.mxu0
        %v1612 = vadd.f32 %v511, %v1611
        %1613 = vmatmul.bf16.gmra.mxu0 %v642
        %v1614 = vpop.f32.mrf.mxu0
        %v1615 = vadd.f32 %v511, %v1614
        %v1616 = vpop.f32.mrf.mxu0
        %v1617 = vadd.f32 %v511, %v1616
        %1618 = vdwg.mxu0
        %1619 = vmatpush.bf16.msra.mxu0 %v931
        %1620 = vmatpush.bf16.msra.mxu0 %v927
        %1621 = vmatpush.bf16.msra.mxu0 %v923
        %1622 = vmatpush.bf16.msra.mxu0 %v919
        %1623 = vmatpush.bf16.msra.mxu0 %v915
        %1624 = vmatpush.bf16.msra.mxu0 %v911
        %1625 = vmatpush.bf16.msra.mxu0 %v907
        %1626 = vmatpush.bf16.msra.mxu0 %v903
        %1627 = vmatmul.bf16.gmra.mxu0 %v613
        %v1628 = vpop.f32.mrf.mxu0
        %v1629 = vadd.f32 %v1540, %v1628
        %v1630 = vpop.f32.mrf.mxu0
        %v1631 = vadd.f32 %v1542, %v1630
        %1632 = vmatmul.bf16.gmra.mxu0 %v615
        %v1633 = vpop.f32.mrf.mxu0
        %v1634 = vadd.f32 %v1545, %v1633
        %v1635 = vpop.f32.mrf.mxu0
        %v1636 = vadd.f32 %v1547, %v1635
        %1637 = vmatmul.bf16.gmra.mxu0 %v617
        %v1638 = vpop.f32.mrf.mxu0
        %v1639 = vadd.f32 %v1550, %v1638
        %v1640 = vpop.f32.mrf.mxu0
        %v1641 = vadd.f32 %v1552, %v1640
        %1642 = vmatmul.bf16.gmra.mxu0 %v619
        %v1643 = vpop.f32.mrf.mxu0
        %v1644 = vadd.f32 %v1555, %v1643
        %v1645 = vpop.f32.mrf.mxu0
        %v1646 = vadd.f32 %v1557, %v1645
        %1647 = vmatmul.bf16.gmra.mxu0 %v621
        %v1648 = vpop.f32.mrf.mxu0
        %v1649 = vadd.f32 %v1560, %v1648
        %v1650 = vpop.f32.mrf.mxu0
        %v1651 = vadd.f32 %v1562, %v1650
        %1652 = vmatmul.bf16.gmra.mxu0 %v623
        %v1653 = vpop.f32.mrf.mxu0
        %v1654 = vadd.f32 %v1565, %v1653
        %v1655 = vpop.f32.mrf.mxu0
        %v1656 = vadd.f32 %v1567, %v1655
        %1657 = vmatmul.bf16.gmra.mxu0 %v625
        %v1658 = vpop.f32.mrf.mxu0
        %v1659 = vadd.f32 %v1570, %v1658
        %v1660 = vpop.f32.mrf.mxu0
        %v1661 = vadd.f32 %v1572, %v1660
        %1662 = vmatmul.bf16.gmra.mxu0 %v627
        %v1663 = vpop.f32.mrf.mxu0
        %v1664 = vadd.f32 %v1575, %v1663
        %v1665 = vpop.f32.mrf.mxu0
        %v1666 = vadd.f32 %v1577, %v1665
        %1667 = vmatmul.bf16.gmra.mxu0 %v629
        %v1668 = vpop.f32.mrf.mxu0
        %v1669 = vadd.f32 %v1580, %v1668
        %v1670 = vpop.f32.mrf.mxu0
        %v1671 = vadd.f32 %v1582, %v1670
        %1672 = vmatmul.bf16.gmra.mxu0 %v631
        %v1673 = vpop.f32.mrf.mxu0
        %v1674 = vadd.f32 %v1585, %v1673
        %v1675 = vpop.f32.mrf.mxu0
        %v1676 = vadd.f32 %v1587, %v1675
        %1677 = vmatmul.bf16.gmra.mxu0 %v633
        %v1678 = vpop.f32.mrf.mxu0
        %v1679 = vadd.f32 %v1590, %v1678
        %v1680 = vpop.f32.mrf.mxu0
        %v1681 = vadd.f32 %v1592, %v1680
        %1682 = vmatmul.bf16.gmra.mxu0 %v635
        %v1683 = vpop.f32.mrf.mxu0
        %v1684 = vadd.f32 %v1595, %v1683
        %v1685 = vpop.f32.mrf.mxu0
        %v1686 = vadd.f32 %v1597, %v1685
        %1687 = vmatmul.bf16.gmra.mxu0 %v637
        %v1688 = vpop.f32.mrf.mxu0
        %v1689 = vadd.f32 %v1600, %v1688
        %v1690 = vpop.f32.mrf.mxu0
        %v1691 = vadd.f32 %v1602, %v1690
        %1692 = vmatmul.bf16.gmra.mxu0 %v639
        %v1693 = vpop.f32.mrf.mxu0
        %v1694 = vadd.f32 %v1605, %v1693
        %v1695 = vpop.f32.mrf.mxu0
        %v1696 = vadd.f32 %v1607, %v1695
        %1697 = vmatmul.bf16.gmra.mxu0 %v641
        %v1698 = vpop.f32.mrf.mxu0
        %v1699 = vadd.f32 %v1610, %v1698
        %v1700 = vpop.f32.mrf.mxu0
        %v1701 = vadd.f32 %v1612, %v1700
        %1702 = vmatmul.bf16.gmra.mxu0 %v643
        %v1703 = vpop.f32.mrf.mxu0
        %v1704 = vadd.f32 %v1615, %v1703
        %v1705 = vpop.f32.mrf.mxu0
        %v1706 = vadd.f32 %v1617, %v1705
        %1707 = vdwg.mxu0
        %v1708 = vmul.f32 %v1095, 0.5
        %v1709 = vmul.f32 %v1273, 0.5
        %v1710 = vmul.f32 %v1097, 0.5
        %v1711 = vmul.f32 %v1275, 0.5
        %v1712 = vmul.f32 %v1100, 0.5
        %v1713 = vmul.f32 %v1278, 0.5
        %v1714 = vmul.f32 %v1102, 0.5
        %v1715 = vmul.f32 %v1280, 0.5
        %v1716 = vmul.f32 %v1105, 0.5
        %v1717 = vmul.f32 %v1283, 0.5
        %v1718 = vmul.f32 %v1107, 0.5
        %v1719 = vmul.f32 %v1285, 0.5
        %v1720 = vmul.f32 %v1110, 0.5
        %v1721 = vmul.f32 %v1288, 0.5
        %v1722 = vmul.f32 %v1112, 0.5
        %v1723 = vmul.f32 %v1290, 0.5
        %v1724 = vmul.f32 %v1115, 0.5
        %v1725 = vmul.f32 %v1293, 0.5
        %v1726 = vmul.f32 %v1117, 0.5
        %v1727 = vmul.f32 %v1295, 0.5
        %v1728 = vmul.f32 %v1120, 0.5
        %v1729 = vmul.f32 %v1298, 0.5
        %v1730 = vmul.f32 %v1122, 0.5
        %v1731 = vmul.f32 %v1300, 0.5
        %v1732 = vmul.f32 %v1125, 0.5
        %v1733 = vmul.f32 %v1303, 0.5
        %v1734 = vmul.f32 %v1127, 0.5
        %v1735 = vmul.f32 %v1305, 0.5
        %v1736 = vmul.f32 %v1130, 0.5
        %v1737 = vmul.f32 %v1308, 0.5
        %v1738 = vmul.f32 %v1132, 0.5
        %v1739 = vmul.f32 %v1310, 0.5
        %v1740 = vmul.f32 %v1135, 0.5
        %v1741 = vmul.f32 %v1313, 0.5
        %v1742 = vmul.f32 %v1137, 0.5
        %v1743 = vmul.f32 %v1315, 0.5
        %v1744 = vmul.f32 %v1140, 0.5
        %v1745 = vmul.f32 %v1318, 0.5
        %v1746 = vmul.f32 %v1142, 0.5
        %v1747 = vmul.f32 %v1320, 0.5
        %v1748 = vmul.f32 %v1145, 0.5
        %v1749 = vmul.f32 %v1323, 0.5
        %v1750 = vmul.f32 %v1147, 0.5
        %v1751 = vmul.f32 %v1325, 0.5
        %v1752 = vmul.f32 %v1150, 0.5
        %v1753 = vmul.f32 %v1328, 0.5
        %v1754 = vmul.f32 %v1152, 0.5
        %v1755 = vmul.f32 %v1330, 0.5
        %v1756 = vmul.f32 %v1155, 0.5
        %v1757 = vmul.f32 %v1333, 0.5
        %v1758 = vmul.f32 %v1157, 0.5
        %v1759 = vmul.f32 %v1335, 0.5
        %v1760 = vmul.f32 %v1160, 0.5
        %v1761 = vmul.f32 %v1338, 0.5
        %v1762 = vmul.f32 %v1162, 0.5
        %v1763 = vmul.f32 %v1340, 0.5
        %v1764 = vmul.f32 %v1165, 0.5
        %v1765 = vmul.f32 %v1343, 0.5
        %v1766 = vmul.f32 %v1167, 0.5
        %v1767 = vmul.f32 %v1345, 0.5
        %v1768 = vmul.f32 %v1170, 0.5
        %v1769 = vmul.f32 %v1348, 0.5
        %v1770 = vmul.f32 %v1172, 0.5
        %v1771 = vmul.f32 %v1350, 0.5
        %v1772 = vmul.f32 %v1095, 0.044715
        %v1773 = vmul.f32 %v1273, 0.044715
        %v1774 = vmul.f32 %v1097, 0.044715
        %v1775 = vmul.f32 %v1275, 0.044715
        %v1776 = vmul.f32 %v1100, 0.044715
        %v1777 = vmul.f32 %v1278, 0.044715
        %v1778 = vmul.f32 %v1102, 0.044715
        %v1779 = vmul.f32 %v1280, 0.044715
        %v1780 = vmul.f32 %v1105, 0.044715
        %v1781 = vmul.f32 %v1283, 0.044715
        %v1782 = vmul.f32 %v1107, 0.044715
        %v1783 = vmul.f32 %v1285, 0.044715
        %v1784 = vmul.f32 %v1110, 0.044715
        %v1785 = vmul.f32 %v1288, 0.044715
        %v1786 = vmul.f32 %v1112, 0.044715
        %v1787 = vmul.f32 %v1290, 0.044715
        %v1788 = vmul.f32 %v1115, 0.044715
        %v1789 = vmul.f32 %v1293, 0.044715
        %v1790 = vmul.f32 %v1117, 0.044715
        %v1791 = vmul.f32 %v1295, 0.044715
        %v1792 = vmul.f32 %v1120, 0.044715
        %v1793 = vmul.f32 %v1298, 0.044715
        %v1794 = vmul.f32 %v1122, 0.044715
        %v1795 = vmul.f32 %v1300, 0.044715
        %v1796 = vmul.f32 %v1125, 0.044715
        %v1797 = vmul.f32 %v1303, 0.044715
        %v1798 = vmul.f32 %v1127, 0.044715
        %v1799 = vmul.f32 %v1305, 0.044715
        %v1800 = vmul.f32 %v1130, 0.044715
        %v1801 = vmul.f32 %v1308, 0.044715
        %v1802 = vmul.f32 %v1132, 0.044715
        %v1803 = vmul.f32 %v1310, 0.044715
        %v1804 = vmul.f32 %v1135, 0.044715
        %v1805 = vmul.f32 %v1313, 0.044715
        %v1806 = vmul.f32 %v1137, 0.044715
        %v1807 = vmul.f32 %v1315, 0.044715
        %v1808 = vmul.f32 %v1140, 0.044715
        %v1809 = vmul.f32 %v1318, 0.044715
        %v1810 = vmul.f32 %v1142, 0.044715
        %v1811 = vmul.f32 %v1320, 0.044715
        %v1812 = vmul.f32 %v1145, 0.044715
        %v1813 = vmul.f32 %v1323, 0.044715
        %v1814 = vmul.f32 %v1147, 0.044715
        %v1815 = vmul.f32 %v1325, 0.044715
        %v1816 = vmul.f32 %v1150, 0.044715
        %v1817 = vmul.f32 %v1328, 0.044715
        %v1818 = vmul.f32 %v1152, 0.044715
        %v1819 = vmul.f32 %v1330, 0.044715
        %v1820 = vmul.f32 %v1155, 0.044715
        %v1821 = vmul.f32 %v1333, 0.044715
        %v1822 = vmul.f32 %v1157, 0.044715
        %v1823 = vmul.f32 %v1335, 0.044715
        %v1824 = vmul.f32 %v1160, 0.044715
        %v1825 = vmul.f32 %v1338, 0.044715
        %v1826 = vmul.f32 %v1162, 0.044715
        %v1827 = vmul.f32 %v1340, 0.044715
        %v1828 = vmul.f32 %v1165, 0.044715
        %v1829 = vmul.f32 %v1343, 0.044715
        %v1830 = vmul.f32 %v1167, 0.044715
        %v1831 = vmul.f32 %v1345, 0.044715
        %v1832 = vmul.f32 %v1170, 0.044715
        %v1833 = vmul.f32 %v1348, 0.044715
        %v1834 = vmul.f32 %v1172, 0.044715
        %v1835 = vmul.f32 %v1350, 0.044715
        %v1836 = vmul.f32 %v1772, %v1095
        %v1837 = vmul.f32 %v1773, %v1273
        %v1838 = vmul.f32 %v1774, %v1097
        %v1839 = vmul.f32 %v1775, %v1275
        %v1840 = vmul.f32 %v1776, %v1100
        %v1841 = vmul.f32 %v1777, %v1278
        %v1842 = vmul.f32 %v1778, %v1102
        %v1843 = vmul.f32 %v1779, %v1280
        %v1844 = vmul.f32 %v1780, %v1105
        %v1845 = vmul.f32 %v1781, %v1283
        %v1846 = vmul.f32 %v1782, %v1107
        %v1847 = vmul.f32 %v1783, %v1285
        %v1848 = vmul.f32 %v1784, %v1110
        %v1849 = vmul.f32 %v1785, %v1288
        %v1850 = vmul.f32 %v1786, %v1112
        %v1851 = vmul.f32 %v1787, %v1290
        %v1852 = vmul.f32 %v1788, %v1115
        %v1853 = vmul.f32 %v1789, %v1293
        %v1854 = vmul.f32 %v1790, %v1117
        %v1855 = vmul.f32 %v1791, %v1295
        %v1856 = vmul.f32 %v1792, %v1120
        %v1857 = vmul.f32 %v1793, %v1298
        %v1858 = vmul.f32 %v1794, %v1122
        %v1859 = vmul.f32 %v1795, %v1300
        %v1860 = vmul.f32 %v1796, %v1125
        %v1861 = vmul.f32 %v1797, %v1303
        %v1862 = vmul.f32 %v1798, %v1127
        %v1863 = vmul.f32 %v1799, %v1305
        %v1864 = vmul.f32 %v1800, %v1130
        %v1865 = vmul.f32 %v1801, %v1308
        %v1866 = vmul.f32 %v1802, %v1132
        %v1867 = vmul.f32 %v1803, %v1310
        %v1868 = vmul.f32 %v1804, %v1135
        %v1869 = vmul.f32 %v1805, %v1313
        %v1870 = vmul.f32 %v1806, %v1137
        %v1871 = vmul.f32 %v1807, %v1315
        %v1872 = vmul.f32 %v1808, %v1140
        %v1873 = vmul.f32 %v1809, %v1318
        %v1874 = vmul.f32 %v1810, %v1142
        %v1875 = vmul.f32 %v1811, %v1320
        %v1876 = vmul.f32 %v1812, %v1145
        %v1877 = vmul.f32 %v1813, %v1323
        %v1878 = vmul.f32 %v1814, %v1147
        %v1879 = vmul.f32 %v1815, %v1325
        %v1880 = vmul.f32 %v1816, %v1150
        %v1881 = vmul.f32 %v1817, %v1328
        %v1882 = vmul.f32 %v1818, %v1152
        %v1883 = vmul.f32 %v1819, %v1330
        %v1884 = vmul.f32 %v1820, %v1155
        %v1885 = vmul.f32 %v1821, %v1333
        %v1886 = vmul.f32 %v1822, %v1157
        %v1887 = vmul.f32 %v1823, %v1335
        %v1888 = vmul.f32 %v1824, %v1160
        %v1889 = vmul.f32 %v1825, %v1338
        %v1890 = vmul.f32 %v1826, %v1162
        %v1891 = vmul.f32 %v1827, %v1340
        %v1892 = vmul.f32 %v1828, %v1165
        %v1893 = vmul.f32 %v1829, %v1343
        %v1894 = vmul.f32 %v1830, %v1167
        %v1895 = vmul.f32 %v1831, %v1345
        %v1896 = vmul.f32 %v1832, %v1170
        %v1897 = vmul.f32 %v1833, %v1348
        %v1898 = vmul.f32 %v1834, %v1172
        %v1899 = vmul.f32 %v1835, %v1350
        %v1900 = vmul.f32 %v1836, %v1095
        %v1901 = vmul.f32 %v1837, %v1273
        %v1902 = vmul.f32 %v1838, %v1097
        %v1903 = vmul.f32 %v1839, %v1275
        %v1904 = vmul.f32 %v1840, %v1100
        %v1905 = vmul.f32 %v1841, %v1278
        %v1906 = vmul.f32 %v1842, %v1102
        %v1907 = vmul.f32 %v1843, %v1280
        %v1908 = vmul.f32 %v1844, %v1105
        %v1909 = vmul.f32 %v1845, %v1283
        %v1910 = vmul.f32 %v1846, %v1107
        %v1911 = vmul.f32 %v1847, %v1285
        %v1912 = vmul.f32 %v1848, %v1110
        %v1913 = vmul.f32 %v1849, %v1288
        %v1914 = vmul.f32 %v1850, %v1112
        %v1915 = vmul.f32 %v1851, %v1290
        %v1916 = vmul.f32 %v1852, %v1115
        %v1917 = vmul.f32 %v1853, %v1293
        %v1918 = vmul.f32 %v1854, %v1117
        %v1919 = vmul.f32 %v1855, %v1295
        %v1920 = vmul.f32 %v1856, %v1120
        %v1921 = vmul.f32 %v1857, %v1298
        %v1922 = vmul.f32 %v1858, %v1122
        %v1923 = vmul.f32 %v1859, %v1300
        %v1924 = vmul.f32 %v1860, %v1125
        %v1925 = vmul.f32 %v1861, %v1303
        %v1926 = vmul.f32 %v1862, %v1127
        %v1927 = vmul.f32 %v1863, %v1305
        %v1928 = vmul.f32 %v1864, %v1130
        %v1929 = vmul.f32 %v1865, %v1308
        %v1930 = vmul.f32 %v1866, %v1132
        %v1931 = vmul.f32 %v1867, %v1310
        %v1932 = vmul.f32 %v1868, %v1135
        %v1933 = vmul.f32 %v1869, %v1313
        %v1934 = vmul.f32 %v1870, %v1137
        %v1935 = vmul.f32 %v1871, %v1315
        %v1936 = vmul.f32 %v1872, %v1140
        %v1937 = vmul.f32 %v1873, %v1318
        %v1938 = vmul.f32 %v1874, %v1142
        %v1939 = vmul.f32 %v1875, %v1320
        %v1940 = vmul.f32 %v1876, %v1145
        %v1941 = vmul.f32 %v1877, %v1323
        %v1942 = vmul.f32 %v1878, %v1147
        %v1943 = vmul.f32 %v1879, %v1325
        %v1944 = vmul.f32 %v1880, %v1150
        %v1945 = vmul.f32 %v1881, %v1328
        %v1946 = vmul.f32 %v1882, %v1152
        %v1947 = vmul.f32 %v1883, %v1330
        %v1948 = vmul.f32 %v1884, %v1155
        %v1949 = vmul.f32 %v1885, %v1333
        %v1950 = vmul.f32 %v1886, %v1157
        %v1951 = vmul.f32 %v1887, %v1335
        %v1952 = vmul.f32 %v1888, %v1160
        %v1953 = vmul.f32 %v1889, %v1338
        %v1954 = vmul.f32 %v1890, %v1162
        %v1955 = vmul.f32 %v1891, %v1340
        %v1956 = vmul.f32 %v1892, %v1165
        %v1957 = vmul.f32 %v1893, %v1343
        %v1958 = vmul.f32 %v1894, %v1167
        %v1959 = vmul.f32 %v1895, %v1345
        %v1960 = vmul.f32 %v1896, %v1170
        %v1961 = vmul.f32 %v1897, %v1348
        %v1962 = vmul.f32 %v1898, %v1172
        %v1963 = vmul.f32 %v1899, %v1350
        %v1964 = vadd.f32 %v1095, %v1900
        %v1965 = vadd.f32 %v1273, %v1901
        %v1966 = vadd.f32 %v1097, %v1902
        %v1967 = vadd.f32 %v1275, %v1903
        %v1968 = vadd.f32 %v1100, %v1904
        %v1969 = vadd.f32 %v1278, %v1905
        %v1970 = vadd.f32 %v1102, %v1906
        %v1971 = vadd.f32 %v1280, %v1907
        %v1972 = vadd.f32 %v1105, %v1908
        %v1973 = vadd.f32 %v1283, %v1909
        %v1974 = vadd.f32 %v1107, %v1910
        %v1975 = vadd.f32 %v1285, %v1911
        %v1976 = vadd.f32 %v1110, %v1912
        %v1977 = vadd.f32 %v1288, %v1913
        %v1978 = vadd.f32 %v1112, %v1914
        %v1979 = vadd.f32 %v1290, %v1915
        %v1980 = vadd.f32 %v1115, %v1916
        %v1981 = vadd.f32 %v1293, %v1917
        %v1982 = vadd.f32 %v1117, %v1918
        %v1983 = vadd.f32 %v1295, %v1919
        %v1984 = vadd.f32 %v1120, %v1920
        %v1985 = vadd.f32 %v1298, %v1921
        %v1986 = vadd.f32 %v1122, %v1922
        %v1987 = vadd.f32 %v1300, %v1923
        %v1988 = vadd.f32 %v1125, %v1924
        %v1989 = vadd.f32 %v1303, %v1925
        %v1990 = vadd.f32 %v1127, %v1926
        %v1991 = vadd.f32 %v1305, %v1927
        %v1992 = vadd.f32 %v1130, %v1928
        %v1993 = vadd.f32 %v1308, %v1929
        %v1994 = vadd.f32 %v1132, %v1930
        %v1995 = vadd.f32 %v1310, %v1931
        %v1996 = vadd.f32 %v1135, %v1932
        %v1997 = vadd.f32 %v1313, %v1933
        %v1998 = vadd.f32 %v1137, %v1934
        %v1999 = vadd.f32 %v1315, %v1935
        %v2000 = vadd.f32 %v1140, %v1936
        %v2001 = vadd.f32 %v1318, %v1937
        %v2002 = vadd.f32 %v1142, %v1938
        %v2003 = vadd.f32 %v1320, %v1939
        %v2004 = vadd.f32 %v1145, %v1940
        %v2005 = vadd.f32 %v1323, %v1941
        %v2006 = vadd.f32 %v1147, %v1942
        %v2007 = vadd.f32 %v1325, %v1943
        %v2008 = vadd.f32 %v1150, %v1944
        %v2009 = vadd.f32 %v1328, %v1945
        %v2010 = vadd.f32 %v1152, %v1946
        %v2011 = vadd.f32 %v1330, %v1947
        %v2012 = vadd.f32 %v1155, %v1948
        %v2013 = vadd.f32 %v1333, %v1949
        %v2014 = vadd.f32 %v1157, %v1950
        %v2015 = vadd.f32 %v1335, %v1951
        %v2016 = vadd.f32 %v1160, %v1952
        %v2017 = vadd.f32 %v1338, %v1953
        %v2018 = vadd.f32 %v1162, %v1954
        %v2019 = vadd.f32 %v1340, %v1955
        %v2020 = vadd.f32 %v1165, %v1956
        %v2021 = vadd.f32 %v1343, %v1957
        %v2022 = vadd.f32 %v1167, %v1958
        %v2023 = vadd.f32 %v1345, %v1959
        %v2024 = vadd.f32 %v1170, %v1960
        %v2025 = vadd.f32 %v1348, %v1961
        %v2026 = vadd.f32 %v1172, %v1962
        %v2027 = vadd.f32 %v1350, %v1963
        %v2028 = vmul.f32 %v1964, 0.7978846
        %v2029 = vmul.f32 %v1965, 0.7978846
        %v2030 = vmul.f32 %v1966, 0.7978846
        %v2031 = vmul.f32 %v1967, 0.7978846
        %v2032 = vmul.f32 %v1968, 0.7978846
        %v2033 = vmul.f32 %v1969, 0.7978846
        %v2034 = vmul.f32 %v1970, 0.7978846
        %v2035 = vmul.f32 %v1971, 0.7978846
        %v2036 = vmul.f32 %v1972, 0.7978846
        %v2037 = vmul.f32 %v1973, 0.7978846
        %v2038 = vmul.f32 %v1974, 0.7978846
        %v2039 = vmul.f32 %v1975, 0.7978846
        %v2040 = vmul.f32 %v1976, 0.7978846
        %v2041 = vmul.f32 %v1977, 0.7978846
        %v2042 = vmul.f32 %v1978, 0.7978846
        %v2043 = vmul.f32 %v1979, 0.7978846
        %v2044 = vmul.f32 %v1980, 0.7978846
        %v2045 = vmul.f32 %v1981, 0.7978846
        %v2046 = vmul.f32 %v1982, 0.7978846
        %v2047 = vmul.f32 %v1983, 0.7978846
        %v2048 = vmul.f32 %v1984, 0.7978846
        %v2049 = vmul.f32 %v1985, 0.7978846
        %v2050 = vmul.f32 %v1986, 0.7978846
        %v2051 = vmul.f32 %v1987, 0.7978846
        %v2052 = vmul.f32 %v1988, 0.7978846
        %v2053 = vmul.f32 %v1989, 0.7978846
        %v2054 = vmul.f32 %v1990, 0.7978846
        %v2055 = vmul.f32 %v1991, 0.7978846
        %v2056 = vmul.f32 %v1992, 0.7978846
        %v2057 = vmul.f32 %v1993, 0.7978846
        %v2058 = vmul.f32 %v1994, 0.7978846
        %v2059 = vmul.f32 %v1995, 0.7978846
        %v2060 = vmul.f32 %v1996, 0.7978846
        %v2061 = vmul.f32 %v1997, 0.7978846
        %v2062 = vmul.f32 %v1998, 0.7978846
        %v2063 = vmul.f32 %v1999, 0.7978846
        %v2064 = vmul.f32 %v2000, 0.7978846
        %v2065 = vmul.f32 %v2001, 0.7978846
        %v2066 = vmul.f32 %v2002, 0.7978846
        %v2067 = vmul.f32 %v2003, 0.7978846
        %v2068 = vmul.f32 %v2004, 0.7978846
        %v2069 = vmul.f32 %v2005, 0.7978846
        %v2070 = vmul.f32 %v2006, 0.7978846
        %v2071 = vmul.f32 %v2007, 0.7978846
        %v2072 = vmul.f32 %v2008, 0.7978846
        %v2073 = vmul.f32 %v2009, 0.7978846
        %v2074 = vmul.f32 %v2010, 0.7978846
        %v2075 = vmul.f32 %v2011, 0.7978846
        %v2076 = vmul.f32 %v2012, 0.7978846
        %v2077 = vmul.f32 %v2013, 0.7978846
        %v2078 = vmul.f32 %v2014, 0.7978846
        %v2079 = vmul.f32 %v2015, 0.7978846
        %v2080 = vmul.f32 %v2016, 0.7978846
        %v2081 = vmul.f32 %v2017, 0.7978846
        %v2082 = vmul.f32 %v2018, 0.7978846
        %v2083 = vmul.f32 %v2019, 0.7978846
        %v2084 = vmul.f32 %v2020, 0.7978846
        %v2085 = vmul.f32 %v2021, 0.7978846
        %v2086 = vmul.f32 %v2022, 0.7978846
        %v2087 = vmul.f32 %v2023, 0.7978846
        %v2088 = vmul.f32 %v2024, 0.7978846
        %v2089 = vmul.f32 %v2025, 0.7978846
        %v2090 = vmul.f32 %v2026, 0.7978846
        %v2091 = vmul.f32 %v2027, 0.7978846
        %v2092 = vtanh.pop %v2028
        %v2093 = vtanh.pop %v2029
        %v2094 = vtanh.pop %v2030
        %v2095 = vtanh.pop %v2031
        %v2096 = vtanh.pop %v2032
        %v2097 = vtanh.pop %v2033
        %v2098 = vtanh.pop %v2034
        %v2099 = vtanh.pop %v2035
        %v2100 = vtanh.pop %v2036
        %v2101 = vtanh.pop %v2037
        %v2102 = vtanh.pop %v2038
        %v2103 = vtanh.pop %v2039
        %v2104 = vtanh.pop %v2040
        %v2105 = vtanh.pop %v2041
        %v2106 = vtanh.pop %v2042
        %v2107 = vtanh.pop %v2043
        %v2108 = vtanh.pop %v2044
        %v2109 = vtanh.pop %v2045
        %v2110 = vtanh.pop %v2046
        %v2111 = vtanh.pop %v2047
        %v2112 = vtanh.pop %v2048
        %v2113 = vtanh.pop %v2049
        %v2114 = vtanh.pop %v2050
        %v2115 = vtanh.pop %v2051
        %v2116 = vtanh.pop %v2052
        %v2117 = vtanh.pop %v2053
        %v2118 = vtanh.pop %v2054
        %v2119 = vtanh.pop %v2055
        %v2120 = vtanh.pop %v2056
        %v2121 = vtanh.pop %v2057
        %v2122 = vtanh.pop %v2058
        %v2123 = vtanh.pop %v2059
        %v2124 = vtanh.pop %v2060
        %v2125 = vtanh.pop %v2061
        %v2126 = vtanh.pop %v2062
        %v2127 = vtanh.pop %v2063
        %v2128 = vtanh.pop %v2064
        %v2129 = vtanh.pop %v2065
        %v2130 = vtanh.pop %v2066
        %v2131 = vtanh.pop %v2067
        %v2132 = vtanh.pop %v2068
        %v2133 = vtanh.pop %v2069
        %v2134 = vtanh.pop %v2070
        %v2135 = vtanh.pop %v2071
        %v2136 = vtanh.pop %v2072
        %v2137 = vtanh.pop %v2073
        %v2138 = vtanh.pop %v2074
        %v2139 = vtanh.pop %v2075
        %v2140 = vtanh.pop %v2076
        %v2141 = vtanh.pop %v2077
        %v2142 = vtanh.pop %v2078
        %v2143 = vtanh.pop %v2079
        %v2144 = vtanh.pop %v2080
        %v2145 = vtanh.pop %v2081
        %v2146 = vtanh.pop %v2082
        %v2147 = vtanh.pop %v2083
        %v2148 = vtanh.pop %v2084
        %v2149 = vtanh.pop %v2085
        %v2150 = vtanh.pop %v2086
        %v2151 = vtanh.pop %v2087
        %v2152 = vtanh.pop %v2088
        %v2153 = vtanh.pop %v2089
        %v2154 = vtanh.pop %v2090
        %v2155 = vtanh.pop %v2091
        %v2156 = vadd.f32 %v2092, 1.0
        %v2157 = vadd.f32 %v2093, 1.0
        %v2158 = vadd.f32 %v2094, 1.0
        %v2159 = vadd.f32 %v2095, 1.0
        %v2160 = vadd.f32 %v2096, 1.0
        %v2161 = vadd.f32 %v2097, 1.0
        %v2162 = vadd.f32 %v2098, 1.0
        %v2163 = vadd.f32 %v2099, 1.0
        %v2164 = vadd.f32 %v2100, 1.0
        %v2165 = vadd.f32 %v2101, 1.0
        %v2166 = vadd.f32 %v2102, 1.0
        %v2167 = vadd.f32 %v2103, 1.0
        %v2168 = vadd.f32 %v2104, 1.0
        %v2169 = vadd.f32 %v2105, 1.0
        %v2170 = vadd.f32 %v2106, 1.0
        %v2171 = vadd.f32 %v2107, 1.0
        %v2172 = vadd.f32 %v2108, 1.0
        %v2173 = vadd.f32 %v2109, 1.0
        %v2174 = vadd.f32 %v2110, 1.0
        %v2175 = vadd.f32 %v2111, 1.0
        %v2176 = vadd.f32 %v2112, 1.0
        %v2177 = vadd.f32 %v2113, 1.0
        %v2178 = vadd.f32 %v2114, 1.0
        %v2179 = vadd.f32 %v2115, 1.0
        %v2180 = vadd.f32 %v2116, 1.0
        %v2181 = vadd.f32 %v2117, 1.0
        %v2182 = vadd.f32 %v2118, 1.0
        %v2183 = vadd.f32 %v2119, 1.0
        %v2184 = vadd.f32 %v2120, 1.0
        %v2185 = vadd.f32 %v2121, 1.0
        %v2186 = vadd.f32 %v2122, 1.0
        %v2187 = vadd.f32 %v2123, 1.0
        %v2188 = vadd.f32 %v2124, 1.0
        %v2189 = vadd.f32 %v2125, 1.0
        %v2190 = vadd.f32 %v2126, 1.0
        %v2191 = vadd.f32 %v2127, 1.0
        %v2192 = vadd.f32 %v2128, 1.0
        %v2193 = vadd.f32 %v2129, 1.0
        %v2194 = vadd.f32 %v2130, 1.0
        %v2195 = vadd.f32 %v2131, 1.0
        %v2196 = vadd.f32 %v2132, 1.0
        %v2197 = vadd.f32 %v2133, 1.0
        %v2198 = vadd.f32 %v2134, 1.0
        %v2199 = vadd.f32 %v2135, 1.0
        %v2200 = vadd.f32 %v2136, 1.0
        %v2201 = vadd.f32 %v2137, 1.0
        %v2202 = vadd.f32 %v2138, 1.0
        %v2203 = vadd.f32 %v2139, 1.0
        %v2204 = vadd.f32 %v2140, 1.0
        %v2205 = vadd.f32 %v2141, 1.0
        %v2206 = vadd.f32 %v2142, 1.0
        %v2207 = vadd.f32 %v2143, 1.0
        %v2208 = vadd.f32 %v2144, 1.0
        %v2209 = vadd.f32 %v2145, 1.0
        %v2210 = vadd.f32 %v2146, 1.0
        %v2211 = vadd.f32 %v2147, 1.0
        %v2212 = vadd.f32 %v2148, 1.0
        %v2213 = vadd.f32 %v2149, 1.0
        %v2214 = vadd.f32 %v2150, 1.0
        %v2215 = vadd.f32 %v2151, 1.0
        %v2216 = vadd.f32 %v2152, 1.0
        %v2217 = vadd.f32 %v2153, 1.0
        %v2218 = vadd.f32 %v2154, 1.0
        %v2219 = vadd.f32 %v2155, 1.0
        %v2220 = vmul.f32 %v1708, %v2156
        %v2221 = vmul.f32 %v1709, %v2157
        %v2222 = vmul.f32 %v1710, %v2158
        %v2223 = vmul.f32 %v1711, %v2159
        %v2224 = vmul.f32 %v1712, %v2160
        %v2225 = vmul.f32 %v1713, %v2161
        %v2226 = vmul.f32 %v1714, %v2162
        %v2227 = vmul.f32 %v1715, %v2163
        %v2228 = vmul.f32 %v1716, %v2164
        %v2229 = vmul.f32 %v1717, %v2165
        %v2230 = vmul.f32 %v1718, %v2166
        %v2231 = vmul.f32 %v1719, %v2167
        %v2232 = vmul.f32 %v1720, %v2168
        %v2233 = vmul.f32 %v1721, %v2169
        %v2234 = vmul.f32 %v1722, %v2170
        %v2235 = vmul.f32 %v1723, %v2171
        %v2236 = vmul.f32 %v1724, %v2172
        %v2237 = vmul.f32 %v1725, %v2173
        %v2238 = vmul.f32 %v1726, %v2174
        %v2239 = vmul.f32 %v1727, %v2175
        %v2240 = vmul.f32 %v1728, %v2176
        %v2241 = vmul.f32 %v1729, %v2177
        %v2242 = vmul.f32 %v1730, %v2178
        %v2243 = vmul.f32 %v1731, %v2179
        %v2244 = vmul.f32 %v1732, %v2180
        %v2245 = vmul.f32 %v1733, %v2181
        %v2246 = vmul.f32 %v1734, %v2182
        %v2247 = vmul.f32 %v1735, %v2183
        %v2248 = vmul.f32 %v1736, %v2184
        %v2249 = vmul.f32 %v1737, %v2185
        %v2250 = vmul.f32 %v1738, %v2186
        %v2251 = vmul.f32 %v1739, %v2187
        %v2252 = vmul.f32 %v1740, %v2188
        %v2253 = vmul.f32 %v1741, %v2189
        %v2254 = vmul.f32 %v1742, %v2190
        %v2255 = vmul.f32 %v1743, %v2191
        %v2256 = vmul.f32 %v1744, %v2192
        %v2257 = vmul.f32 %v1745, %v2193
        %v2258 = vmul.f32 %v1746, %v2194
        %v2259 = vmul.f32 %v1747, %v2195
        %v2260 = vmul.f32 %v1748, %v2196
        %v2261 = vmul.f32 %v1749, %v2197
        %v2262 = vmul.f32 %v1750, %v2198
        %v2263 = vmul.f32 %v1751, %v2199
        %v2264 = vmul.f32 %v1752, %v2200
        %v2265 = vmul.f32 %v1753, %v2201
        %v2266 = vmul.f32 %v1754, %v2202
        %v2267 = vmul.f32 %v1755, %v2203
        %v2268 = vmul.f32 %v1756, %v2204
        %v2269 = vmul.f32 %v1757, %v2205
        %v2270 = vmul.f32 %v1758, %v2206
        %v2271 = vmul.f32 %v1759, %v2207
        %v2272 = vmul.f32 %v1760, %v2208
        %v2273 = vmul.f32 %v1761, %v2209
        %v2274 = vmul.f32 %v1762, %v2210
        %v2275 = vmul.f32 %v1763, %v2211
        %v2276 = vmul.f32 %v1764, %v2212
        %v2277 = vmul.f32 %v1765, %v2213
        %v2278 = vmul.f32 %v1766, %v2214
        %v2279 = vmul.f32 %v1767, %v2215
        %v2280 = vmul.f32 %v1768, %v2216
        %v2281 = vmul.f32 %v1769, %v2217
        %v2282 = vmul.f32 %v1770, %v2218
        %v2283 = vmul.f32 %v1771, %v2219
        %v2284 = vmul.f32 %v2220, %v1451
        %v2285 = vmul.f32 %v2221, %v1629
        %v2286 = vmul.f32 %v2222, %v1453
        %v2287 = vmul.f32 %v2223, %v1631
        %v2288 = vmul.f32 %v2224, %v1456
        %v2289 = vmul.f32 %v2225, %v1634
        %v2290 = vmul.f32 %v2226, %v1458
        %v2291 = vmul.f32 %v2227, %v1636
        %v2292 = vmul.f32 %v2228, %v1461
        %v2293 = vmul.f32 %v2229, %v1639
        %v2294 = vmul.f32 %v2230, %v1463
        %v2295 = vmul.f32 %v2231, %v1641
        %v2296 = vmul.f32 %v2232, %v1466
        %v2297 = vmul.f32 %v2233, %v1644
        %v2298 = vmul.f32 %v2234, %v1468
        %v2299 = vmul.f32 %v2235, %v1646
        %v2300 = vmul.f32 %v2236, %v1471
        %v2301 = vmul.f32 %v2237, %v1649
        %v2302 = vmul.f32 %v2238, %v1473
        %v2303 = vmul.f32 %v2239, %v1651
        %v2304 = vmul.f32 %v2240, %v1476
        %v2305 = vmul.f32 %v2241, %v1654
        %v2306 = vmul.f32 %v2242, %v1478
        %v2307 = vmul.f32 %v2243, %v1656
        %v2308 = vmul.f32 %v2244, %v1481
        %v2309 = vmul.f32 %v2245, %v1659
        %v2310 = vmul.f32 %v2246, %v1483
        %v2311 = vmul.f32 %v2247, %v1661
        %v2312 = vmul.f32 %v2248, %v1486
        %v2313 = vmul.f32 %v2249, %v1664
        %v2314 = vmul.f32 %v2250, %v1488
        %v2315 = vmul.f32 %v2251, %v1666
        %v2316 = vmul.f32 %v2252, %v1491
        %v2317 = vmul.f32 %v2253, %v1669
        %v2318 = vmul.f32 %v2254, %v1493
        %v2319 = vmul.f32 %v2255, %v1671
        %v2320 = vmul.f32 %v2256, %v1496
        %v2321 = vmul.f32 %v2257, %v1674
        %v2322 = vmul.f32 %v2258, %v1498
        %v2323 = vmul.f32 %v2259, %v1676
        %v2324 = vmul.f32 %v2260, %v1501
        %v2325 = vmul.f32 %v2261, %v1679
        %v2326 = vmul.f32 %v2262, %v1503
        %v2327 = vmul.f32 %v2263, %v1681
        %v2328 = vmul.f32 %v2264, %v1506
        %v2329 = vmul.f32 %v2265, %v1684
        %v2330 = vmul.f32 %v2266, %v1508
        %v2331 = vmul.f32 %v2267, %v1686
        %v2332 = vmul.f32 %v2268, %v1511
        %v2333 = vmul.f32 %v2269, %v1689
        %v2334 = vmul.f32 %v2270, %v1513
        %v2335 = vmul.f32 %v2271, %v1691
        %v2336 = vmul.f32 %v2272, %v1516
        %v2337 = vmul.f32 %v2273, %v1694
        %v2338 = vmul.f32 %v2274, %v1518
        %v2339 = vmul.f32 %v2275, %v1696
        %v2340 = vmul.f32 %v2276, %v1521
        %v2341 = vmul.f32 %v2277, %v1699
        %v2342 = vmul.f32 %v2278, %v1523
        %v2343 = vmul.f32 %v2279, %v1701
        %v2344 = vmul.f32 %v2280, %v1526
        %v2345 = vmul.f32 %v2281, %v1704
        %v2346 = vmul.f32 %v2282, %v1528
        %v2347 = vmul.f32 %v2283, %v1706
        %v2348 = vld [vmem:[#allocation2] sm:$0xff]
        %v2349 = vld [vmem:[#allocation2 + $0x8] sm:$0xff]
        %v2350 = vld [vmem:[#allocation2 + $0x10] sm:$0xff]
        %v2351 = vld [vmem:[#allocation2 + $0x18] sm:$0xff]
        %v2352 = vld [vmem:[#allocation2 + $0x20] sm:$0xff]
        %v2353 = vld [vmem:[#allocation2 + $0x28] sm:$0xff]
        %v2354 = vld [vmem:[#allocation2 + $0x30] sm:$0xff]
        %v2355 = vld [vmem:[#allocation2 + $0x38] sm:$0xff]
        %v2356 = vld [vmem:[#allocation2 + $0x40] sm:$0xff]
        %v2357 = vld [vmem:[#allocation2 + $0x48] sm:$0xff]
        %v2358 = vld [vmem:[#allocation2 + $0x50] sm:$0xff]
        %v2359 = vld [vmem:[#allocation2 + $0x58] sm:$0xff]
        %v2360 = vld [vmem:[#allocation2 + $0x60] sm:$0xff]
        %v2361 = vld [vmem:[#allocation2 + $0x68] sm:$0xff]
        %v2362 = vld [vmem:[#allocation2 + $0x70] sm:$0xff]
        %v2363 = vld [vmem:[#allocation2 + $0x78] sm:$0xff]
        %v2364 = vld [vmem:[#allocation2 + $0x80] sm:$0xff]
        %v2365 = vld [vmem:[#allocation2 + $0x88] sm:$0xff]
        %v2366 = vld [vmem:[#allocation2 + $0x90] sm:$0xff]
        %v2367 = vld [vmem:[#allocation2 + $0x98] sm:$0xff]
        %v2368 = vld [vmem:[#allocation2 + $0xa0] sm:$0xff]
        %v2369 = vld [vmem:[#allocation2 + $0xa8] sm:$0xff]
        %v2370 = vld [vmem:[#allocation2 + $0xb0] sm:$0xff]
        %v2371 = vld [vmem:[#allocation2 + $0xb8] sm:$0xff]
        %v2372 = vld [vmem:[#allocation2 + $0xc0] sm:$0xff]
        %v2373 = vld [vmem:[#allocation2 + $0xc8] sm:$0xff]
        %v2374 = vld [vmem:[#allocation2 + $0xd0] sm:$0xff]
        %v2375 = vld [vmem:[#allocation2 + $0xd8] sm:$0xff]
        %v2376 = vld [vmem:[#allocation2 + $0xe0] sm:$0xff]
        %v2377 = vld [vmem:[#allocation2 + $0xe8] sm:$0xff]
        %v2378 = vld [vmem:[#allocation2 + $0xf0] sm:$0xff]
        %v2379 = vld [vmem:[#allocation2 + $0xf8] sm:$0xff]
        %v2380 = vld [vmem:[#allocation2 + $0x100] sm:$0xff]
        %v2381 = vld [vmem:[#allocation2 + $0x108] sm:$0xff]
        %v2382 = vld [vmem:[#allocation2 + $0x110] sm:$0xff]
        %v2383 = vld [vmem:[#allocation2 + $0x118] sm:$0xff]
        %v2384 = vld [vmem:[#allocation2 + $0x120] sm:$0xff]
        %v2385 = vld [vmem:[#allocation2 + $0x128] sm:$0xff]
        %v2386 = vld [vmem:[#allocation2 + $0x130] sm:$0xff]
        %v2387 = vld [vmem:[#allocation2 + $0x138] sm:$0xff]
        %v2388 = vld [vmem:[#allocation2 + $0x140] sm:$0xff]
        %v2389 = vld [vmem:[#allocation2 + $0x148] sm:$0xff]
        %v2390 = vld [vmem:[#allocation2 + $0x150] sm:$0xff]
        %v2391 = vld [vmem:[#allocation2 + $0x158] sm:$0xff]
        %v2392 = vld [vmem:[#allocation2 + $0x160] sm:$0xff]
        %v2393 = vld [vmem:[#allocation2 + $0x168] sm:$0xff]
        %v2394 = vld [vmem:[#allocation2 + $0x170] sm:$0xff]
        %v2395 = vld [vmem:[#allocation2 + $0x178] sm:$0xff]
        %v2396 = vld [vmem:[#allocation2 + $0x180] sm:$0xff]
        %v2397 = vld [vmem:[#allocation2 + $0x188] sm:$0xff]
        %v2398 = vld [vmem:[#allocation2 + $0x190] sm:$0xff]
        %v2399 = vld [vmem:[#allocation2 + $0x198] sm:$0xff]
        %v2400 = vld [vmem:[#allocation2 + $0x1a0] sm:$0xff]
        %v2401 = vld [vmem:[#allocation2 + $0x1a8] sm:$0xff]
        %v2402 = vld [vmem:[#allocation2 + $0x1b0] sm:$0xff]
        %v2403 = vld [vmem:[#allocation2 + $0x1b8] sm:$0xff]
        %v2404 = vld [vmem:[#allocation2 + $0x1c0] sm:$0xff]
        %v2405 = vld [vmem:[#allocation2 + $0x1c8] sm:$0xff]
        %v2406 = vld [vmem:[#allocation2 + $0x1d0] sm:$0xff]
        %v2407 = vld [vmem:[#allocation2 + $0x1d8] sm:$0xff]
        %v2408 = vld [vmem:[#allocation2 + $0x1e0] sm:$0xff]
        %v2409 = vld [vmem:[#allocation2 + $0x1e8] sm:$0xff]
        %v2410 = vld [vmem:[#allocation2 + $0x1f0] sm:$0xff]
        %v2411 = vld [vmem:[#allocation2 + $0x1f8] sm:$0xff]
        %v2412 = vpack.c.bf16 %v2286, %v2284
        %v2413 = vpack.c.bf16 %v2287, %v2285
        %v2414 = vpack.c.bf16 %v2290, %v2288
        %v2415 = vpack.c.bf16 %v2291, %v2289
        %v2416 = vpack.c.bf16 %v2294, %v2292
        %v2417 = vpack.c.bf16 %v2295, %v2293
        %v2418 = vpack.c.bf16 %v2298, %v2296
        %v2419 = vpack.c.bf16 %v2299, %v2297
        %v2420 = vpack.c.bf16 %v2302, %v2300
        %v2421 = vpack.c.bf16 %v2303, %v2301
        %v2422 = vpack.c.bf16 %v2306, %v2304
        %v2423 = vpack.c.bf16 %v2307, %v2305
        %v2424 = vpack.c.bf16 %v2310, %v2308
        %v2425 = vpack.c.bf16 %v2311, %v2309
        %v2426 = vpack.c.bf16 %v2314, %v2312
        %v2427 = vpack.c.bf16 %v2315, %v2313
        %v2428 = vpack.c.bf16 %v2318, %v2316
        %v2429 = vpack.c.bf16 %v2319, %v2317
        %v2430 = vpack.c.bf16 %v2322, %v2320
        %v2431 = vpack.c.bf16 %v2323, %v2321
        %v2432 = vpack.c.bf16 %v2326, %v2324
        %v2433 = vpack.c.bf16 %v2327, %v2325
        %v2434 = vpack.c.bf16 %v2330, %v2328
        %v2435 = vpack.c.bf16 %v2331, %v2329
        %v2436 = vpack.c.bf16 %v2334, %v2332
        %v2437 = vpack.c.bf16 %v2335, %v2333
        %v2438 = vpack.c.bf16 %v2338, %v2336
        %v2439 = vpack.c.bf16 %v2339, %v2337
        %v2440 = vpack.c.bf16 %v2342, %v2340
        %v2441 = vpack.c.bf16 %v2343, %v2341
        %v2442 = vpack.c.bf16 %v2346, %v2344
        %v2443 = vpack.c.bf16 %v2347, %v2345
        %v2444 = vld [vmem:[%s339] sm:$0xff]
        %v2445 = vld [vmem:[%s339 + $0x8] sm:$0xff]
        %v2446 = vld [vmem:[%s339 + $0x10] sm:$0xff]
        %v2447 = vld [vmem:[%s339 + $0x18] sm:$0xff]
        %v2448 = vld [vmem:[%s339 + $0x20] sm:$0xff]
        %v2449 = vld [vmem:[%s339 + $0x28] sm:$0xff]
        %v2450 = vld [vmem:[%s339 + $0x30] sm:$0xff]
        %v2451 = vld [vmem:[%s339 + $0x38] sm:$0xff]
        %v2452 = vld [vmem:[%s339 + $0x40] sm:$0xff]
        %v2453 = vld [vmem:[%s339 + $0x48] sm:$0xff]
        %v2454 = vld [vmem:[%s339 + $0x50] sm:$0xff]
        %v2455 = vld [vmem:[%s339 + $0x58] sm:$0xff]
        %v2456 = vld [vmem:[%s339 + $0x60] sm:$0xff]
        %v2457 = vld [vmem:[%s339 + $0x68] sm:$0xff]
        %v2458 = vld [vmem:[%s339 + $0x70] sm:$0xff]
        %v2459 = vld [vmem:[%s339 + $0x78] sm:$0xff]
        %v2460 = vld [vmem:[%s339 + $0x80] sm:$0xff]
        %v2461 = vld [vmem:[%s339 + $0x88] sm:$0xff]
        %v2462 = vld [vmem:[%s339 + $0x90] sm:$0xff]
        %v2463 = vld [vmem:[%s339 + $0x98] sm:$0xff]
        %v2464 = vld [vmem:[%s339 + $0xa0] sm:$0xff]
        %v2465 = vld [vmem:[%s339 + $0xa8] sm:$0xff]
        %v2466 = vld [vmem:[%s339 + $0xb0] sm:$0xff]
        %v2467 = vld [vmem:[%s339 + $0xb8] sm:$0xff]
        %v2468 = vld [vmem:[%s339 + $0xc0] sm:$0xff]
        %v2469 = vld [vmem:[%s339 + $0xc8] sm:$0xff]
        %v2470 = vld [vmem:[%s339 + $0xd0] sm:$0xff]
        %v2471 = vld [vmem:[%s339 + $0xd8] sm:$0xff]
        %v2472 = vld [vmem:[%s339 + $0xe0] sm:$0xff]
        %v2473 = vld [vmem:[%s339 + $0xe8] sm:$0xff]
        %v2474 = vld [vmem:[%s339 + $0xf0] sm:$0xff]
        %v2475 = vld [vmem:[%s339 + $0xf8] sm:$0xff]
        %v2508 = vunpack.c.l.b16 %v2444
        %v2509 = vunpack.c.h.b16 %v2444
        %v2510 = vunpack.c.l.b16 %v2445
        %v2511 = vunpack.c.h.b16 %v2445
        %v2512 = vunpack.c.l.b16 %v2446
        %v2513 = vunpack.c.h.b16 %v2446
        %v2514 = vunpack.c.l.b16 %v2447
        %v2515 = vunpack.c.h.b16 %v2447
        %v2516 = vunpack.c.l.b16 %v2448
        %v2517 = vunpack.c.h.b16 %v2448
        %v2518 = vunpack.c.l.b16 %v2449
        %v2519 = vunpack.c.h.b16 %v2449
        %v2520 = vunpack.c.l.b16 %v2450
        %v2521 = vunpack.c.h.b16 %v2450
        %v2522 = vunpack.c.l.b16 %v2451
        %v2523 = vunpack.c.h.b16 %v2451
        %v2524 = vunpack.c.l.b16 %v2452
        %v2525 = vunpack.c.h.b16 %v2452
        %v2526 = vunpack.c.l.b16 %v2453
        %v2527 = vunpack.c.h.b16 %v2453
        %v2528 = vunpack.c.l.b16 %v2454
        %v2529 = vunpack.c.h.b16 %v2454
        %v2530 = vunpack.c.l.b16 %v2455
        %v2531 = vunpack.c.h.b16 %v2455
        %v2532 = vunpack.c.l.b16 %v2456
        %v2533 = vunpack.c.h.b16 %v2456
        %v2534 = vunpack.c.l.b16 %v2457
        %v2535 = vunpack.c.h.b16 %v2457
        %v2536 = vunpack.c.l.b16 %v2458
        %v2537 = vunpack.c.h.b16 %v2458
        %v2538 = vunpack.c.l.b16 %v2459
        %v2539 = vunpack.c.h.b16 %v2459
        %v2540 = vunpack.c.l.b16 %v2460
        %v2541 = vunpack.c.h.b16 %v2460
        %v2542 = vunpack.c.l.b16 %v2461
        %v2543 = vunpack.c.h.b16 %v2461
        %v2544 = vunpack.c.l.b16 %v2462
        %v2545 = vunpack.c.h.b16 %v2462
        %v2546 = vunpack.c.l.b16 %v2463
        %v2547 = vunpack.c.h.b16 %v2463
        %v2548 = vunpack.c.l.b16 %v2464
        %v2549 = vunpack.c.h.b16 %v2464
        %v2550 = vunpack.c.l.b16 %v2465
        %v2551 = vunpack.c.h.b16 %v2465
        %v2552 = vunpack.c.l.b16 %v2466
        %v2553 = vunpack.c.h.b16 %v2466
        %v2554 = vunpack.c.l.b16 %v2467
        %v2555 = vunpack.c.h.b16 %v2467
        %v2556 = vunpack.c.l.b16 %v2468
        %v2557 = vunpack.c.h.b16 %v2468
        %v2558 = vunpack.c.l.b16 %v2469
        %v2559 = vunpack.c.h.b16 %v2469
        %v2560 = vunpack.c.l.b16 %v2470
        %v2561 = vunpack.c.h.b16 %v2470
        %v2562 = vunpack.c.l.b16 %v2471
        %v2563 = vunpack.c.h.b16 %v2471
        %v2564 = vunpack.c.l.b16 %v2472
        %v2565 = vunpack.c.h.b16 %v2472
        %v2566 = vunpack.c.l.b16 %v2473
        %v2567 = vunpack.c.h.b16 %v2473
        %v2568 = vunpack.c.l.b16 %v2474
        %v2569 = vunpack.c.h.b16 %v2474
        %v2570 = vunpack.c.l.b16 %v2475
        %v2571 = vunpack.c.h.b16 %v2475
        %v2572 = vpack.c.b16 %v2510, %v2508
        %v2573 = vpack.c.b16 %v2511, %v2509
        %v2574 = vpack.c.b16 %v2514, %v2512
        %v2575 = vpack.c.b16 %v2515, %v2513
        %v2576 = vpack.c.b16 %v2518, %v2516
        %v2577 = vpack.c.b16 %v2519, %v2517
        %v2578 = vpack.c.b16 %v2522, %v2520
        %v2579 = vpack.c.b16 %v2523, %v2521
        %v2580 = vpack.c.b16 %v2526, %v2524
        %v2581 = vpack.c.b16 %v2527, %v2525
        %v2582 = vpack.c.b16 %v2530, %v2528
        %v2583 = vpack.c.b16 %v2531, %v2529
        %v2584 = vpack.c.b16 %v2534, %v2532
        %v2585 = vpack.c.b16 %v2535, %v2533
        %v2586 = vpack.c.b16 %v2538, %v2536
        %v2587 = vpack.c.b16 %v2539, %v2537
        %v2588 = vpack.c.b16 %v2542, %v2540
        %v2589 = vpack.c.b16 %v2543, %v2541
        %v2590 = vpack.c.b16 %v2546, %v2544
        %v2591 = vpack.c.b16 %v2547, %v2545
        %v2592 = vpack.c.b16 %v2550, %v2548
        %v2593 = vpack.c.b16 %v2551, %v2549
        %v2594 = vpack.c.b16 %v2554, %v2552
        %v2595 = vpack.c.b16 %v2555, %v2553
        %v2596 = vpack.c.b16 %v2558, %v2556
        %v2597 = vpack.c.b16 %v2559, %v2557
        %v2598 = vpack.c.b16 %v2562, %v2560
        %v2599 = vpack.c.b16 %v2563, %v2561
        %v2600 = vpack.c.b16 %v2566, %v2564
        %v2601 = vpack.c.b16 %v2567, %v2565
        %v2602 = vpack.c.b16 %v2570, %v2568
        %v2603 = vpack.c.b16 %v2571, %v2569
        %2636 = vmatpush.bf16.msra.mxu0 %v2586
        %2637 = vmatpush.bf16.msra.mxu0 %v2584
        %2638 = vmatpush.bf16.msra.mxu0 %v2582
        %2639 = vmatpush.bf16.msra.mxu0 %v2580
        %2640 = vmatpush.bf16.msra.mxu0 %v2578
        %2641 = vmatpush.bf16.msra.mxu0 %v2576
        %2642 = vmatpush.bf16.msra.mxu0 %v2574
        %2643 = vmatpush.bf16.msra.mxu0 %v2572
        %2644 = vmatmul.bf16.gmra.mxu0 %v2412
        %v2645 = vpop.f32.mrf.mxu0
        %v2646 = vadd.f32 0.0, %v2645
        %v2647 = vpop.f32.mrf.mxu0
        %v2648 = vadd.f32 0.0, %v2647
        %2649 = vmatmul.bf16.gmra.mxu0 %v2414
        %v2650 = vpop.f32.mrf.mxu0
        %v2651 = vadd.f32 0.0, %v2650
        %v2652 = vpop.f32.mrf.mxu0
        %v2653 = vadd.f32 0.0, %v2652
        %2654 = vmatmul.bf16.gmra.mxu0 %v2416
        %v2655 = vpop.f32.mrf.mxu0
        %v2656 = vadd.f32 0.0, %v2655
        %v2657 = vpop.f32.mrf.mxu0
        %v2658 = vadd.f32 0.0, %v2657
        %2659 = vmatmul.bf16.gmra.mxu0 %v2418
        %v2660 = vpop.f32.mrf.mxu0
        %v2661 = vadd.f32 0.0, %v2660
        %v2662 = vpop.f32.mrf.mxu0
        %v2663 = vadd.f32 0.0, %v2662
        %2664 = vmatmul.bf16.gmra.mxu0 %v2420
        %v2665 = vpop.f32.mrf.mxu0
        %v2666 = vadd.f32 0.0, %v2665
        %v2667 = vpop.f32.mrf.mxu0
        %v2668 = vadd.f32 0.0, %v2667
        %2669 = vmatmul.bf16.gmra.mxu0 %v2422
        %v2670 = vpop.f32.mrf.mxu0
        %v2671 = vadd.f32 0.0, %v2670
        %v2672 = vpop.f32.mrf.mxu0
        %v2673 = vadd.f32 0.0, %v2672
        %2674 = vmatmul.bf16.gmra.mxu0 %v2424
        %v2675 = vpop.f32.mrf.mxu0
        %v2676 = vadd.f32 0.0, %v2675
        %v2677 = vpop.f32.mrf.mxu0
        %v2678 = vadd.f32 0.0, %v2677
        %2679 = vmatmul.bf16.gmra.mxu0 %v2426
        %v2680 = vpop.f32.mrf.mxu0
        %v2681 = vadd.f32 0.0, %v2680
        %v2682 = vpop.f32.mrf.mxu0
        %v2683 = vadd.f32 0.0, %v2682
        %2684 = vmatmul.bf16.gmra.mxu0 %v2428
        %v2685 = vpop.f32.mrf.mxu0
        %v2686 = vadd.f32 0.0, %v2685
        %v2687 = vpop.f32.mrf.mxu0
        %v2688 = vadd.f32 0.0, %v2687
        %2689 = vmatmul.bf16.gmra.mxu0 %v2430
        %v2690 = vpop.f32.mrf.mxu0
        %v2691 = vadd.f32 0.0, %v2690
        %v2692 = vpop.f32.mrf.mxu0
        %v2693 = vadd.f32 0.0, %v2692
        %2694 = vmatmul.bf16.gmra.mxu0 %v2432
        %v2695 = vpop.f32.mrf.mxu0
        %v2696 = vadd.f32 0.0, %v2695
        %v2697 = vpop.f32.mrf.mxu0
        %v2698 = vadd.f32 0.0, %v2697
        %2699 = vmatmul.bf16.gmra.mxu0 %v2434
        %v2700 = vpop.f32.mrf.mxu0
        %v2701 = vadd.f32 0.0, %v2700
        %v2702 = vpop.f32.mrf.mxu0
        %v2703 = vadd.f32 0.0, %v2702
        %2704 = vmatmul.bf16.gmra.mxu0 %v2436
        %v2705 = vpop.f32.mrf.mxu0
        %v2706 = vadd.f32 0.0, %v2705
        %v2707 = vpop.f32.mrf.mxu0
        %v2708 = vadd.f32 0.0, %v2707
        %2709 = vmatmul.bf16.gmra.mxu0 %v2438
        %v2710 = vpop.f32.mrf.mxu0
        %v2711 = vadd.f32 0.0, %v2710
        %v2712 = vpop.f32.mrf.mxu0
        %v2713 = vadd.f32 0.0, %v2712
        %2714 = vmatmul.bf16.gmra.mxu0 %v2440
        %v2715 = vpop.f32.mrf.mxu0
        %v2716 = vadd.f32 0.0, %v2715
        %v2717 = vpop.f32.mrf.mxu0
        %v2718 = vadd.f32 0.0, %v2717
        %2719 = vmatmul.bf16.gmra.mxu0 %v2442
        %v2720 = vpop.f32.mrf.mxu0
        %v2721 = vadd.f32 0.0, %v2720
        %v2722 = vpop.f32.mrf.mxu0
        %v2723 = vadd.f32 0.0, %v2722
        %2724 = vdwg.mxu0
        %2725 = vmatpush.bf16.msra.mxu0 %v2602
        %2726 = vmatpush.bf16.msra.mxu0 %v2600
        %2727 = vmatpush.bf16.msra.mxu0 %v2598
        %2728 = vmatpush.bf16.msra.mxu0 %v2596
        %2729 = vmatpush.bf16.msra.mxu0 %v2594
        %2730 = vmatpush.bf16.msra.mxu0 %v2592
        %2731 = vmatpush.bf16.msra.mxu0 %v2590
        %2732 = vmatpush.bf16.msra.mxu0 %v2588
        %2733 = vmatmul.bf16.gmra.mxu0 %v2413
        %v2734 = vpop.f32.mrf.mxu0
        %v2735 = vadd.f32 %v2646, %v2734
        %v2736 = vpop.f32.mrf.mxu0
        %v2737 = vadd.f32 %v2648, %v2736
        %2738 = vmatmul.bf16.gmra.mxu0 %v2415
        %v2739 = vpop.f32.mrf.mxu0
        %v2740 = vadd.f32 %v2651, %v2739
        %v2741 = vpop.f32.mrf.mxu0
        %v2742 = vadd.f32 %v2653, %v2741
        %2743 = vmatmul.bf16.gmra.mxu0 %v2417
        %v2744 = vpop.f32.mrf.mxu0
        %v2745 = vadd.f32 %v2656, %v2744
        %v2746 = vpop.f32.mrf.mxu0
        %v2747 = vadd.f32 %v2658, %v2746
        %2748 = vmatmul.bf16.gmra.mxu0 %v2419
        %v2749 = vpop.f32.mrf.mxu0
        %v2750 = vadd.f32 %v2661, %v2749
        %v2751 = vpop.f32.mrf.mxu0
        %v2752 = vadd.f32 %v2663, %v2751
        %2753 = vmatmul.bf16.gmra.mxu0 %v2421
        %v2754 = vpop.f32.mrf.mxu0
        %v2755 = vadd.f32 %v2666, %v2754
        %v2756 = vpop.f32.mrf.mxu0
        %v2757 = vadd.f32 %v2668, %v2756
        %2758 = vmatmul.bf16.gmra.mxu0 %v2423
        %v2759 = vpop.f32.mrf.mxu0
        %v2760 = vadd.f32 %v2671, %v2759
        %v2761 = vpop.f32.mrf.mxu0
        %v2762 = vadd.f32 %v2673, %v2761
        %2763 = vmatmul.bf16.gmra.mxu0 %v2425
        %v2764 = vpop.f32.mrf.mxu0
        %v2765 = vadd.f32 %v2676, %v2764
        %v2766 = vpop.f32.mrf.mxu0
        %v2767 = vadd.f32 %v2678, %v2766
        %2768 = vmatmul.bf16.gmra.mxu0 %v2427
        %v2769 = vpop.f32.mrf.mxu0
        %v2770 = vadd.f32 %v2681, %v2769
        %v2771 = vpop.f32.mrf.mxu0
        %v2772 = vadd.f32 %v2683, %v2771
        %2773 = vmatmul.bf16.gmra.mxu0 %v2429
        %v2774 = vpop.f32.mrf.mxu0
        %v2775 = vadd.f32 %v2686, %v2774
        %v2776 = vpop.f32.mrf.mxu0
        %v2777 = vadd.f32 %v2688, %v2776
        %2778 = vmatmul.bf16.gmra.mxu0 %v2431
        %v2779 = vpop.f32.mrf.mxu0
        %v2780 = vadd.f32 %v2691, %v2779
        %v2781 = vpop.f32.mrf.mxu0
        %v2782 = vadd.f32 %v2693, %v2781
        %2783 = vmatmul.bf16.gmra.mxu0 %v2433
        %v2784 = vpop.f32.mrf.mxu0
        %v2785 = vadd.f32 %v2696, %v2784
        %v2786 = vpop.f32.mrf.mxu0
        %v2787 = vadd.f32 %v2698, %v2786
        %2788 = vmatmul.bf16.gmra.mxu0 %v2435
        %v2789 = vpop.f32.mrf.mxu0
        %v2790 = vadd.f32 %v2701, %v2789
        %v2791 = vpop.f32.mrf.mxu0
        %v2792 = vadd.f32 %v2703, %v2791
        %2793 = vmatmul.bf16.gmra.mxu0 %v2437
        %v2794 = vpop.f32.mrf.mxu0
        %v2795 = vadd.f32 %v2706, %v2794
        %v2796 = vpop.f32.mrf.mxu0
        %v2797 = vadd.f32 %v2708, %v2796
        %2798 = vmatmul.bf16.gmra.mxu0 %v2439
        %v2799 = vpop.f32.mrf.mxu0
        %v2800 = vadd.f32 %v2711, %v2799
        %v2801 = vpop.f32.mrf.mxu0
        %v2802 = vadd.f32 %v2713, %v2801
        %2803 = vmatmul.bf16.gmra.mxu0 %v2441
        %v2804 = vpop.f32.mrf.mxu0
        %v2805 = vadd.f32 %v2716, %v2804
        %v2806 = vpop.f32.mrf.mxu0
        %v2807 = vadd.f32 %v2718, %v2806
        %2808 = vmatmul.bf16.gmra.mxu0 %v2443
        %v2809 = vpop.f32.mrf.mxu0
        %v2810 = vadd.f32 %v2721, %v2809
        %v2811 = vpop.f32.mrf.mxu0
        %v2812 = vadd.f32 %v2723, %v2811
        %2813 = vdwg.mxu0
        %2814 = vmatpush.bf16.msra.mxu0 %v2587
        %2815 = vmatpush.bf16.msra.mxu0 %v2585
        %2816 = vmatpush.bf16.msra.mxu0 %v2583
        %2817 = vmatpush.bf16.msra.mxu0 %v2581
        %2818 = vmatpush.bf16.msra.mxu0 %v2579
        %2819 = vmatpush.bf16.msra.mxu0 %v2577
        %2820 = vmatpush.bf16.msra.mxu0 %v2575
        %2821 = vmatpush.bf16.msra.mxu0 %v2573
        %2822 = vmatmul.bf16.gmra.mxu0 %v2412
        %v2823 = vpop.f32.mrf.mxu0
        %v2824 = vadd.f32 0.0, %v2823
        %v2825 = vpop.f32.mrf.mxu0
        %v2826 = vadd.f32 0.0, %v2825
        %2827 = vmatmul.bf16.gmra.mxu0 %v2414
        %v2828 = vpop.f32.mrf.mxu0
        %v2829 = vadd.f32 0.0, %v2828
        %v2830 = vpop.f32.mrf.mxu0
        %v2831 = vadd.f32 0.0, %v2830
        %2832 = vmatmul.bf16.gmra.mxu0 %v2416
        %v2833 = vpop.f32.mrf.mxu0
        %v2834 = vadd.f32 0.0, %v2833
        %v2835 = vpop.f32.mrf.mxu0
        %v2836 = vadd.f32 0.0, %v2835
        %2837 = vmatmul.bf16.gmra.mxu0 %v2418
        %v2838 = vpop.f32.mrf.mxu0
        %v2839 = vadd.f32 0.0, %v2838
        %v2840 = vpop.f32.mrf.mxu0
        %v2841 = vadd.f32 0.0, %v2840
        %2842 = vmatmul.bf16.gmra.mxu0 %v2420
        %v2843 = vpop.f32.mrf.mxu0
        %v2844 = vadd.f32 0.0, %v2843
        %v2845 = vpop.f32.mrf.mxu0
        %v2846 = vadd.f32 0.0, %v2845
        %2847 = vmatmul.bf16.gmra.mxu0 %v2422
        %v2848 = vpop.f32.mrf.mxu0
        %v2849 = vadd.f32 0.0, %v2848
        %v2850 = vpop.f32.mrf.mxu0
        %v2851 = vadd.f32 0.0, %v2850
        %2852 = vmatmul.bf16.gmra.mxu0 %v2424
        %v2853 = vpop.f32.mrf.mxu0
        %v2854 = vadd.f32 0.0, %v2853
        %v2855 = vpop.f32.mrf.mxu0
        %v2856 = vadd.f32 0.0, %v2855
        %2857 = vmatmul.bf16.gmra.mxu0 %v2426
        %v2858 = vpop.f32.mrf.mxu0
        %v2859 = vadd.f32 0.0, %v2858
        %v2860 = vpop.f32.mrf.mxu0
        %v2861 = vadd.f32 0.0, %v2860
        %2862 = vmatmul.bf16.gmra.mxu0 %v2428
        %v2863 = vpop.f32.mrf.mxu0
        %v2864 = vadd.f32 0.0, %v2863
        %v2865 = vpop.f32.mrf.mxu0
        %v2866 = vadd.f32 0.0, %v2865
        %2867 = vmatmul.bf16.gmra.mxu0 %v2430
        %v2868 = vpop.f32.mrf.mxu0
        %v2869 = vadd.f32 0.0, %v2868
        %v2870 = vpop.f32.mrf.mxu0
        %v2871 = vadd.f32 0.0, %v2870
        %2872 = vmatmul.bf16.gmra.mxu0 %v2432
        %v2873 = vpop.f32.mrf.mxu0
        %v2874 = vadd.f32 0.0, %v2873
        %v2875 = vpop.f32.mrf.mxu0
        %v2876 = vadd.f32 0.0, %v2875
        %2877 = vmatmul.bf16.gmra.mxu0 %v2434
        %v2878 = vpop.f32.mrf.mxu0
        %v2879 = vadd.f32 0.0, %v2878
        %v2880 = vpop.f32.mrf.mxu0
        %v2881 = vadd.f32 0.0, %v2880
        %2882 = vmatmul.bf16.gmra.mxu0 %v2436
        %v2883 = vpop.f32.mrf.mxu0
        %v2884 = vadd.f32 0.0, %v2883
        %v2885 = vpop.f32.mrf.mxu0
        %v2886 = vadd.f32 0.0, %v2885
        %2887 = vmatmul.bf16.gmra.mxu0 %v2438
        %v2888 = vpop.f32.mrf.mxu0
        %v2889 = vadd.f32 0.0, %v2888
        %v2890 = vpop.f32.mrf.mxu0
        %v2891 = vadd.f32 0.0, %v2890
        %2892 = vmatmul.bf16.gmra.mxu0 %v2440
        %v2893 = vpop.f32.mrf.mxu0
        %v2894 = vadd.f32 0.0, %v2893
        %v2895 = vpop.f32.mrf.mxu0
        %v2896 = vadd.f32 0.0, %v2895
        %2897 = vmatmul.bf16.gmra.mxu0 %v2442
        %v2898 = vpop.f32.mrf.mxu0
        %v2899 = vadd.f32 0.0, %v2898
        %v2900 = vpop.f32.mrf.mxu0
        %v2901 = vadd.f32 0.0, %v2900
        %2902 = vdwg.mxu0
        %2903 = vmatpush.bf16.msra.mxu0 %v2603
        %2904 = vmatpush.bf16.msra.mxu0 %v2601
        %2905 = vmatpush.bf16.msra.mxu0 %v2599
        %2906 = vmatpush.bf16.msra.mxu0 %v2597
        %2907 = vmatpush.bf16.msra.mxu0 %v2595
        %2908 = vmatpush.bf16.msra.mxu0 %v2593
        %2909 = vmatpush.bf16.msra.mxu0 %v2591
        %2910 = vmatpush.bf16.msra.mxu0 %v2589
        %2911 = vmatmul.bf16.gmra.mxu0 %v2413
        %v2912 = vpop.f32.mrf.mxu0
        %v2913 = vadd.f32 %v2824, %v2912
        %v2914 = vpop.f32.mrf.mxu0
        %v2915 = vadd.f32 %v2826, %v2914
        %2916 = vmatmul.bf16.gmra.mxu0 %v2415
        %v2917 = vpop.f32.mrf.mxu0
        %v2918 = vadd.f32 %v2829, %v2917
        %v2919 = vpop.f32.mrf.mxu0
        %v2920 = vadd.f32 %v2831, %v2919
        %2921 = vmatmul.bf16.gmra.mxu0 %v2417
        %v2922 = vpop.f32.mrf.mxu0
        %v2923 = vadd.f32 %v2834, %v2922
        %v2924 = vpop.f32.mrf.mxu0
        %v2925 = vadd.f32 %v2836, %v2924
        %2926 = vmatmul.bf16.gmra.mxu0 %v2419
        %v2927 = vpop.f32.mrf.mxu0
        %v2928 = vadd.f32 %v2839, %v2927
        %v2929 = vpop.f32.mrf.mxu0
        %v2930 = vadd.f32 %v2841, %v2929
        %2931 = vmatmul.bf16.gmra.mxu0 %v2421
        %v2932 = vpop.f32.mrf.mxu0
        %v2933 = vadd.f32 %v2844, %v2932
        %v2934 = vpop.f32.mrf.mxu0
        %v2935 = vadd.f32 %v2846, %v2934
        %2936 = vmatmul.bf16.gmra.mxu0 %v2423
        %v2937 = vpop.f32.mrf.mxu0
        %v2938 = vadd.f32 %v2849, %v2937
        %v2939 = vpop.f32.mrf.mxu0
        %v2940 = vadd.f32 %v2851, %v2939
        %2941 = vmatmul.bf16.gmra.mxu0 %v2425
        %v2942 = vpop.f32.mrf.mxu0
        %v2943 = vadd.f32 %v2854, %v2942
        %v2944 = vpop.f32.mrf.mxu0
        %v2945 = vadd.f32 %v2856, %v2944
        %2946 = vmatmul.bf16.gmra.mxu0 %v2427
        %v2947 = vpop.f32.mrf.mxu0
        %v2948 = vadd.f32 %v2859, %v2947
        %v2949 = vpop.f32.mrf.mxu0
        %v2950 = vadd.f32 %v2861, %v2949
        %2951 = vmatmul.bf16.gmra.mxu0 %v2429
        %v2952 = vpop.f32.mrf.mxu0
        %v2953 = vadd.f32 %v2864, %v2952
        %v2954 = vpop.f32.mrf.mxu0
        %v2955 = vadd.f32 %v2866, %v2954
        %2956 = vmatmul.bf16.gmra.mxu0 %v2431
        %v2957 = vpop.f32.mrf.mxu0
        %v2958 = vadd.f32 %v2869, %v2957
        %v2959 = vpop.f32.mrf.mxu0
        %v2960 = vadd.f32 %v2871, %v2959
        %2961 = vmatmul.bf16.gmra.mxu0 %v2433
        %v2962 = vpop.f32.mrf.mxu0
        %v2963 = vadd.f32 %v2874, %v2962
        %v2964 = vpop.f32.mrf.mxu0
        %v2965 = vadd.f32 %v2876, %v2964
        %2966 = vmatmul.bf16.gmra.mxu0 %v2435
        %v2967 = vpop.f32.mrf.mxu0
        %v2968 = vadd.f32 %v2879, %v2967
        %v2969 = vpop.f32.mrf.mxu0
        %v2970 = vadd.f32 %v2881, %v2969
        %2971 = vmatmul.bf16.gmra.mxu0 %v2437
        %v2972 = vpop.f32.mrf.mxu0
        %v2973 = vadd.f32 %v2884, %v2972
        %v2974 = vpop.f32.mrf.mxu0
        %v2975 = vadd.f32 %v2886, %v2974
        %2976 = vmatmul.bf16.gmra.mxu0 %v2439
        %v2977 = vpop.f32.mrf.mxu0
        %v2978 = vadd.f32 %v2889, %v2977
        %v2979 = vpop.f32.mrf.mxu0
        %v2980 = vadd.f32 %v2891, %v2979
        %2981 = vmatmul.bf16.gmra.mxu0 %v2441
        %v2982 = vpop.f32.mrf.mxu0
        %v2983 = vadd.f32 %v2894, %v2982
        %v2984 = vpop.f32.mrf.mxu0
        %v2985 = vadd.f32 %v2896, %v2984
        %2986 = vmatmul.bf16.gmra.mxu0 %v2443
        %v2987 = vpop.f32.mrf.mxu0
        %v2988 = vadd.f32 %v2899, %v2987
        %v2989 = vpop.f32.mrf.mxu0
        %v2990 = vadd.f32 %v2901, %v2989
        %2991 = vdwg.mxu0
        %v2992 = vadd.f32 %v2348, %v2735
        %v2993 = vadd.f32 %v2349, %v2913
        %v2994 = vadd.f32 %v2350, %v2737
        %v2995 = vadd.f32 %v2351, %v2915
        %v2996 = vadd.f32 %v2352, %v2740
        %v2997 = vadd.f32 %v2353, %v2918
        %v2998 = vadd.f32 %v2354, %v2742
        %v2999 = vadd.f32 %v2355, %v2920
        %v3000 = vadd.f32 %v2356, %v2745
        %v3001 = vadd.f32 %v2357, %v2923
        %v3002 = vadd.f32 %v2358, %v2747
        %v3003 = vadd.f32 %v2359, %v2925
        %v3004 = vadd.f32 %v2360, %v2750
        %v3005 = vadd.f32 %v2361, %v2928
        %v3006 = vadd.f32 %v2362, %v2752
        %v3007 = vadd.f32 %v2363, %v2930
        %v3008 = vadd.f32 %v2364, %v2755
        %v3009 = vadd.f32 %v2365, %v2933
        %v3010 = vadd.f32 %v2366, %v2757
        %v3011 = vadd.f32 %v2367, %v2935
        %v3012 = vadd.f32 %v2368, %v2760
        %v3013 = vadd.f32 %v2369, %v2938
        %v3014 = vadd.f32 %v2370, %v2762
        %v3015 = vadd.f32 %v2371, %v2940
        %v3016 = vadd.f32 %v2372, %v2765
        %v3017 = vadd.f32 %v2373, %v2943
        %v3018 = vadd.f32 %v2374, %v2767
        %v3019 = vadd.f32 %v2375, %v2945
        %v3020 = vadd.f32 %v2376, %v2770
        %v3021 = vadd.f32 %v2377, %v2948
        %v3022 = vadd.f32 %v2378, %v2772
        %v3023 = vadd.f32 %v2379, %v2950
        %v3024 = vadd.f32 %v2380, %v2775
        %v3025 = vadd.f32 %v2381, %v2953
        %v3026 = vadd.f32 %v2382, %v2777
        %v3027 = vadd.f32 %v2383, %v2955
        %v3028 = vadd.f32 %v2384, %v2780
        %v3029 = vadd.f32 %v2385, %v2958
        %v3030 = vadd.f32 %v2386, %v2782
        %v3031 = vadd.f32 %v2387, %v2960
        %v3032 = vadd.f32 %v2388, %v2785
        %v3033 = vadd.f32 %v2389, %v2963
        %v3034 = vadd.f32 %v2390, %v2787
        %v3035 = vadd.f32 %v2391, %v2965
        %v3036 = vadd.f32 %v2392, %v2790
        %v3037 = vadd.f32 %v2393, %v2968
        %v3038 = vadd.f32 %v2394, %v2792
        %v3039 = vadd.f32 %v2395, %v2970
        %v3040 = vadd.f32 %v2396, %v2795
        %v3041 = vadd.f32 %v2397, %v2973
        %v3042 = vadd.f32 %v2398, %v2797
        %v3043 = vadd.f32 %v2399, %v2975
        %v3044 = vadd.f32 %v2400, %v2800
        %v3045 = vadd.f32 %v2401, %v2978
        %v3046 = vadd.f32 %v2402, %v2802
        %v3047 = vadd.f32 %v2403, %v2980
        %v3048 = vadd.f32 %v2404, %v2805
        %v3049 = vadd.f32 %v2405, %v2983
        %v3050 = vadd.f32 %v2406, %v2807
        %v3051 = vadd.f32 %v2407, %v2985
        %v3052 = vadd.f32 %v2408, %v2810
        %v3053 = vadd.f32 %v2409, %v2988
        %v3054 = vadd.f32 %v2410, %v2812
        %v3055 = vadd.f32 %v2411, %v2990
        %3056 = vst [vmem:[#allocation2] sm:$0xff] %v2992
        %3057 = vst [vmem:[#allocation2 + $0x8] sm:$0xff] %v2993
        %3058 = vst [vmem:[#allocation2 + $0x10] sm:$0xff] %v2994
        %3059 = vst [vmem:[#allocation2 + $0x18] sm:$0xff] %v2995
        %3060 = vst [vmem:[#allocation2 + $0x20] sm:$0xff] %v2996
        %3061 = vst [vmem:[#allocation2 + $0x28] sm:$0xff] %v2997
        %3062 = vst [vmem:[#allocation2 + $0x30] sm:$0xff] %v2998
        %3063 = vst [vmem:[#allocation2 + $0x38] sm:$0xff] %v2999
        %3064 = vst [vmem:[#allocation2 + $0x40] sm:$0xff] %v3000
        %3065 = vst [vmem:[#allocation2 + $0x48] sm:$0xff] %v3001
        %3066 = vst [vmem:[#allocation2 + $0x50] sm:$0xff] %v3002
        %3067 = vst [vmem:[#allocation2 + $0x58] sm:$0xff] %v3003
        %3068 = vst [vmem:[#allocation2 + $0x60] sm:$0xff] %v3004
        %3069 = vst [vmem:[#allocation2 + $0x68] sm:$0xff] %v3005
        %3070 = vst [vmem:[#allocation2 + $0x70] sm:$0xff] %v3006
        %3071 = vst [vmem:[#allocation2 + $0x78] sm:$0xff] %v3007
        %3072 = vst [vmem:[#allocation2 + $0x80] sm:$0xff] %v3008
        %3073 = vst [vmem:[#allocation2 + $0x88] sm:$0xff] %v3009
        %3074 = vst [vmem:[#allocation2 + $0x90] sm:$0xff] %v3010
        %3075 = vst [vmem:[#allocation2 + $0x98] sm:$0xff] %v3011
        %3076 = vst [vmem:[#allocation2 + $0xa0] sm:$0xff] %v3012
        %3077 = vst [vmem:[#allocation2 + $0xa8] sm:$0xff] %v3013
        %3078 = vst [vmem:[#allocation2 + $0xb0] sm:$0xff] %v3014
        %3079 = vst [vmem:[#allocation2 + $0xb8] sm:$0xff] %v3015
        %3080 = vst [vmem:[#allocation2 + $0xc0] sm:$0xff] %v3016
        %3081 = vst [vmem:[#allocation2 + $0xc8] sm:$0xff] %v3017
        %3082 = vst [vmem:[#allocation2 + $0xd0] sm:$0xff] %v3018
        %3083 = vst [vmem:[#allocation2 + $0xd8] sm:$0xff] %v3019
        %3084 = vst [vmem:[#allocation2 + $0xe0] sm:$0xff] %v3020
        %3085 = vst [vmem:[#allocation2 + $0xe8] sm:$0xff] %v3021
        %3086 = vst [vmem:[#allocation2 + $0xf0] sm:$0xff] %v3022
        %3087 = vst [vmem:[#allocation2 + $0xf8] sm:$0xff] %v3023
        %3088 = vst [vmem:[#allocation2 + $0x100] sm:$0xff] %v3024
        %3089 = vst [vmem:[#allocation2 + $0x108] sm:$0xff] %v3025
        %3090 = vst [vmem:[#allocation2 + $0x110] sm:$0xff] %v3026
        %3091 = vst [vmem:[#allocation2 + $0x118] sm:$0xff] %v3027
        %3092 = vst [vmem:[#allocation2 + $0x120] sm:$0xff] %v3028
        %3093 = vst [vmem:[#allocation2 + $0x128] sm:$0xff] %v3029
        %3094 = vst [vmem:[#allocation2 + $0x130] sm:$0xff] %v3030
        %3095 = vst [vmem:[#allocation2 + $0x138] sm:$0xff] %v3031
        %3096 = vst [vmem:[#allocation2 + $0x140] sm:$0xff] %v3032
        %3097 = vst [vmem:[#allocation2 + $0x148] sm:$0xff] %v3033
        %3098 = vst [vmem:[#allocation2 + $0x150] sm:$0xff] %v3034
        %3099 = vst [vmem:[#allocation2 + $0x158] sm:$0xff] %v3035
        %3100 = vst [vmem:[#allocation2 + $0x160] sm:$0xff] %v3036
        %3101 = vst [vmem:[#allocation2 + $0x168] sm:$0xff] %v3037
        %3102 = vst [vmem:[#allocation2 + $0x170] sm:$0xff] %v3038
        %3103 = vst [vmem:[#allocation2 + $0x178] sm:$0xff] %v3039
        %3104 = vst [vmem:[#allocation2 + $0x180] sm:$0xff] %v3040
        %3105 = vst [vmem:[#allocation2 + $0x188] sm:$0xff] %v3041
        %3106 = vst [vmem:[#allocation2 + $0x190] sm:$0xff] %v3042
        %3107 = vst [vmem:[#allocation2 + $0x198] sm:$0xff] %v3043
        %3108 = vst [vmem:[#allocation2 + $0x1a0] sm:$0xff] %v3044
        %3109 = vst [vmem:[#allocation2 + $0x1a8] sm:$0xff] %v3045
        %3110 = vst [vmem:[#allocation2 + $0x1b0] sm:$0xff] %v3046
        %3111 = vst [vmem:[#allocation2 + $0x1b8] sm:$0xff] %v3047
        %3112 = vst [vmem:[#allocation2 + $0x1c0] sm:$0xff] %v3048
        %3113 = vst [vmem:[#allocation2 + $0x1c8] sm:$0xff] %v3049
        %3114 = vst [vmem:[#allocation2 + $0x1d0] sm:$0xff] %v3050
        %3115 = vst [vmem:[#allocation2 + $0x1d8] sm:$0xff] %v3051
        %3116 = vst [vmem:[#allocation2 + $0x1e0] sm:$0xff] %v3052
        %3117 = vst [vmem:[#allocation2 + $0x1e8] sm:$0xff] %v3053
        %3118 = vst [vmem:[#allocation2 + $0x1f0] sm:$0xff] %v3054
        %3119 = vst [vmem:[#allocation2 + $0x1f8] sm:$0xff] %v3055
        %p3120 = scmp.eq.s32.totalorder %s28, 1
        // Predicated region
        $region53: #{gated_mlp.1} parent=39 // pred_check
          %p3121 = pneg %p3120
        $region54: #{gated_mlp.1} parent=39 // pred_check_branch
          %3123 = sbr.rel (%p3121) target = $region56
        $region55: #{gated_mlp.1} parent=39 // pred_region
          %v3124 = vld [vmem:[#allocation2] sm:$0xff]
          %v3125 = vld [vmem:[#allocation2 + $0x8] sm:$0xff]
          %v3126 = vld [vmem:[#allocation2 + $0x10] sm:$0xff]
          %v3127 = vld [vmem:[#allocation2 + $0x18] sm:$0xff]
          %v3128 = vld [vmem:[#allocation2 + $0x20] sm:$0xff]
          %v3129 = vld [vmem:[#allocation2 + $0x28] sm:$0xff]
          %v3130 = vld [vmem:[#allocation2 + $0x30] sm:$0xff]
          %v3131 = vld [vmem:[#allocation2 + $0x38] sm:$0xff]
          %v3132 = vld [vmem:[#allocation2 + $0x40] sm:$0xff]
          %v3133 = vld [vmem:[#allocation2 + $0x48] sm:$0xff]
          %v3134 = vld [vmem:[#allocation2 + $0x50] sm:$0xff]
          %v3135 = vld [vmem:[#allocation2 + $0x58] sm:$0xff]
          %v3136 = vld [vmem:[#allocation2 + $0x60] sm:$0xff]
          %v3137 = vld [vmem:[#allocation2 + $0x68] sm:$0xff]
          %v3138 = vld [vmem:[#allocation2 + $0x70] sm:$0xff]
          %v3139 = vld [vmem:[#allocation2 + $0x78] sm:$0xff]
          %v3140 = vld [vmem:[#allocation2 + $0x80] sm:$0xff]
          %v3141 = vld [vmem:[#allocation2 + $0x88] sm:$0xff]
          %v3142 = vld [vmem:[#allocation2 + $0x90] sm:$0xff]
          %v3143 = vld [vmem:[#allocation2 + $0x98] sm:$0xff]
          %v3144 = vld [vmem:[#allocation2 + $0xa0] sm:$0xff]
          %v3145 = vld [vmem:[#allocation2 + $0xa8] sm:$0xff]
          %v3146 = vld [vmem:[#allocation2 + $0xb0] sm:$0xff]
          %v3147 = vld [vmem:[#allocation2 + $0xb8] sm:$0xff]
          %v3148 = vld [vmem:[#allocation2 + $0xc0] sm:$0xff]
          %v3149 = vld [vmem:[#allocation2 + $0xc8] sm:$0xff]
          %v3150 = vld [vmem:[#allocation2 + $0xd0] sm:$0xff]
          %v3151 = vld [vmem:[#allocation2 + $0xd8] sm:$0xff]
          %v3152 = vld [vmem:[#allocation2 + $0xe0] sm:$0xff]
          %v3153 = vld [vmem:[#allocation2 + $0xe8] sm:$0xff]
          %v3154 = vld [vmem:[#allocation2 + $0xf0] sm:$0xff]
          %v3155 = vld [vmem:[#allocation2 + $0xf8] sm:$0xff]
          %v3156 = vld [vmem:[#allocation2 + $0x100] sm:$0xff]
          %v3157 = vld [vmem:[#allocation2 + $0x108] sm:$0xff]
          %v3158 = vld [vmem:[#allocation2 + $0x110] sm:$0xff]
          %v3159 = vld [vmem:[#allocation2 + $0x118] sm:$0xff]
          %v3160 = vld [vmem:[#allocation2 + $0x120] sm:$0xff]
          %v3161 = vld [vmem:[#allocation2 + $0x128] sm:$0xff]
          %v3162 = vld [vmem:[#allocation2 + $0x130] sm:$0xff]
          %v3163 = vld [vmem:[#allocation2 + $0x138] sm:$0xff]
          %v3164 = vld [vmem:[#allocation2 + $0x140] sm:$0xff]
          %v3165 = vld [vmem:[#allocation2 + $0x148] sm:$0xff]
          %v3166 = vld [vmem:[#allocation2 + $0x150] sm:$0xff]
          %v3167 = vld [vmem:[#allocation2 + $0x158] sm:$0xff]
          %v3168 = vld [vmem:[#allocation2 + $0x160] sm:$0xff]
          %v3169 = vld [vmem:[#allocation2 + $0x168] sm:$0xff]
          %v3170 = vld [vmem:[#allocation2 + $0x170] sm:$0xff]
          %v3171 = vld [vmem:[#allocation2 + $0x178] sm:$0xff]
          %v3172 = vld [vmem:[#allocation2 + $0x180] sm:$0xff]
          %v3173 = vld [vmem:[#allocation2 + $0x188] sm:$0xff]
          %v3174 = vld [vmem:[#allocation2 + $0x190] sm:$0xff]
          %v3175 = vld [vmem:[#allocation2 + $0x198] sm:$0xff]
          %v3176 = vld [vmem:[#allocation2 + $0x1a0] sm:$0xff]
          %v3177 = vld [vmem:[#allocation2 + $0x1a8] sm:$0xff]
          %v3178 = vld [vmem:[#allocation2 + $0x1b0] sm:$0xff]
          %v3179 = vld [vmem:[#allocation2 + $0x1b8] sm:$0xff]
          %v3180 = vld [vmem:[#allocation2 + $0x1c0] sm:$0xff]
          %v3181 = vld [vmem:[#allocation2 + $0x1c8] sm:$0xff]
          %v3182 = vld [vmem:[#allocation2 + $0x1d0] sm:$0xff]
          %v3183 = vld [vmem:[#allocation2 + $0x1d8] sm:$0xff]
          %v3184 = vld [vmem:[#allocation2 + $0x1e0] sm:$0xff]
          %v3185 = vld [vmem:[#allocation2 + $0x1e8] sm:$0xff]
          %v3186 = vld [vmem:[#allocation2 + $0x1f0] sm:$0xff]
          %v3187 = vld [vmem:[#allocation2 + $0x1f8] sm:$0xff]
          %v3188 = vld [vmem:[%s4] sm:$0x3]
          %v3190 = vperm.slane %v3188, 0
          %v3191 = vperm.slane %v3188, 1
          %v3194 = vadd.f32 %v3124, %v3190
          %v3195 = vadd.f32 %v3125, %v3191
          %v3196 = vadd.f32 %v3126, %v3190
          %v3197 = vadd.f32 %v3127, %v3191
          %v3198 = vadd.f32 %v3128, %v3190
          %v3199 = vadd.f32 %v3129, %v3191
          %v3200 = vadd.f32 %v3130, %v3190
          %v3201 = vadd.f32 %v3131, %v3191
          %v3202 = vadd.f32 %v3132, %v3190
          %v3203 = vadd.f32 %v3133, %v3191
          %v3204 = vadd.f32 %v3134, %v3190
          %v3205 = vadd.f32 %v3135, %v3191
          %v3206 = vadd.f32 %v3136, %v3190
          %v3207 = vadd.f32 %v3137, %v3191
          %v3208 = vadd.f32 %v3138, %v3190
          %v3209 = vadd.f32 %v3139, %v3191
          %v3210 = vadd.f32 %v3140, %v3190
          %v3211 = vadd.f32 %v3141, %v3191
          %v3212 = vadd.f32 %v3142, %v3190
          %v3213 = vadd.f32 %v3143, %v3191
          %v3214 = vadd.f32 %v3144, %v3190
          %v3215 = vadd.f32 %v3145, %v3191
          %v3216 = vadd.f32 %v3146, %v3190
          %v3217 = vadd.f32 %v3147, %v3191
          %v3218 = vadd.f32 %v3148, %v3190
          %v3219 = vadd.f32 %v3149, %v3191
          %v3220 = vadd.f32 %v3150, %v3190
          %v3221 = vadd.f32 %v3151, %v3191
          %v3222 = vadd.f32 %v3152, %v3190
          %v3223 = vadd.f32 %v3153, %v3191
          %v3224 = vadd.f32 %v3154, %v3190
          %v3225 = vadd.f32 %v3155, %v3191
          %v3226 = vadd.f32 %v3156, %v3190
          %v3227 = vadd.f32 %v3157, %v3191
          %v3228 = vadd.f32 %v3158, %v3190
          %v3229 = vadd.f32 %v3159, %v3191
          %v3230 = vadd.f32 %v3160, %v3190
          %v3231 = vadd.f32 %v3161, %v3191
          %v3232 = vadd.f32 %v3162, %v3190
          %v3233 = vadd.f32 %v3163, %v3191
          %v3234 = vadd.f32 %v3164, %v3190
          %v3235 = vadd.f32 %v3165, %v3191
          %v3236 = vadd.f32 %v3166, %v3190
          %v3237 = vadd.f32 %v3167, %v3191
          %v3238 = vadd.f32 %v3168, %v3190
          %v3239 = vadd.f32 %v3169, %v3191
          %v3240 = vadd.f32 %v3170, %v3190
          %v3241 = vadd.f32 %v3171, %v3191
          %v3242 = vadd.f32 %v3172, %v3190
          %v3243 = vadd.f32 %v3173, %v3191
          %v3244 = vadd.f32 %v3174, %v3190
          %v3245 = vadd.f32 %v3175, %v3191
          %v3246 = vadd.f32 %v3176, %v3190
          %v3247 = vadd.f32 %v3177, %v3191
          %v3248 = vadd.f32 %v3178, %v3190
          %v3249 = vadd.f32 %v3179, %v3191
          %v3250 = vadd.f32 %v3180, %v3190
          %v3251 = vadd.f32 %v3181, %v3191
          %v3252 = vadd.f32 %v3182, %v3190
          %v3253 = vadd.f32 %v3183, %v3191
          %v3254 = vadd.f32 %v3184, %v3190
          %v3255 = vadd.f32 %v3185, %v3191
          %v3256 = vadd.f32 %v3186, %v3190
          %v3257 = vadd.f32 %v3187, %v3191
          %v3258 = vpack.c.bf16 %v3195, %v3194
          %v3259 = vpack.c.bf16 %v3197, %v3196
          %v3260 = vpack.c.bf16 %v3199, %v3198
          %v3261 = vpack.c.bf16 %v3201, %v3200
          %v3262 = vpack.c.bf16 %v3203, %v3202
          %v3263 = vpack.c.bf16 %v3205, %v3204
          %v3264 = vpack.c.bf16 %v3207, %v3206
          %v3265 = vpack.c.bf16 %v3209, %v3208
          %v3266 = vpack.c.bf16 %v3211, %v3210
          %v3267 = vpack.c.bf16 %v3213, %v3212
          %v3268 = vpack.c.bf16 %v3215, %v3214
          %v3269 = vpack.c.bf16 %v3217, %v3216
          %v3270 = vpack.c.bf16 %v3219, %v3218
          %v3271 = vpack.c.bf16 %v3221, %v3220
          %v3272 = vpack.c.bf16 %v3223, %v3222
          %v3273 = vpack.c.bf16 %v3225, %v3224
          %v3274 = vpack.c.bf16 %v3227, %v3226
          %v3275 = vpack.c.bf16 %v3229, %v3228
          %v3276 = vpack.c.bf16 %v3231, %v3230
          %v3277 = vpack.c.bf16 %v3233, %v3232
          %v3278 = vpack.c.bf16 %v3235, %v3234
          %v3279 = vpack.c.bf16 %v3237, %v3236
          %v3280 = vpack.c.bf16 %v3239, %v3238
          %v3281 = vpack.c.bf16 %v3241, %v3240
          %v3282 = vpack.c.bf16 %v3243, %v3242
          %v3283 = vpack.c.bf16 %v3245, %v3244
          %v3284 = vpack.c.bf16 %v3247, %v3246
          %v3285 = vpack.c.bf16 %v3249, %v3248
          %v3286 = vpack.c.bf16 %v3251, %v3250
          %v3287 = vpack.c.bf16 %v3253, %v3252
          %v3288 = vpack.c.bf16 %v3255, %v3254
          %v3289 = vpack.c.bf16 %v3257, %v3256
          %3290 = vst [vmem:[#allocation8] sm:$0xff] %v3258
          %3291 = vst [vmem:[#allocation8 + $0x8] sm:$0xff] %v3259
          %3292 = vst [vmem:[#allocation8 + $0x10] sm:$0xff] %v3260
          %3293 = vst [vmem:[#allocation8 + $0x18] sm:$0xff] %v3261
          %3294 = vst [vmem:[#allocation8 + $0x20] sm:$0xff] %v3262
          %3295 = vst [vmem:[#allocation8 + $0x28] sm:$0xff] %v3263
          %3296 = vst [vmem:[#allocation8 + $0x30] sm:$0xff] %v3264
          %3297 = vst [vmem:[#allocation8 + $0x38] sm:$0xff] %v3265
          %3298 = vst [vmem:[#allocation8 + $0x40] sm:$0xff] %v3266
          %3299 = vst [vmem:[#allocation8 + $0x48] sm:$0xff] %v3267
          %3300 = vst [vmem:[#allocation8 + $0x50] sm:$0xff] %v3268
          %3301 = vst [vmem:[#allocation8 + $0x58] sm:$0xff] %v3269
          %3302 = vst [vmem:[#allocation8 + $0x60] sm:$0xff] %v3270
          %3303 = vst [vmem:[#allocation8 + $0x68] sm:$0xff] %v3271
          %3304 = vst [vmem:[#allocation8 + $0x70] sm:$0xff] %v3272
          %3305 = vst [vmem:[#allocation8 + $0x78] sm:$0xff] %v3273
          %3306 = vst [vmem:[#allocation8 + $0x80] sm:$0xff] %v3274
          %3307 = vst [vmem:[#allocation8 + $0x88] sm:$0xff] %v3275
          %3308 = vst [vmem:[#allocation8 + $0x90] sm:$0xff] %v3276
          %3309 = vst [vmem:[#allocation8 + $0x98] sm:$0xff] %v3277
          %3310 = vst [vmem:[#allocation8 + $0xa0] sm:$0xff] %v3278
          %3311 = vst [vmem:[#allocation8 + $0xa8] sm:$0xff] %v3279
          %3312 = vst [vmem:[#allocation8 + $0xb0] sm:$0xff] %v3280
          %3313 = vst [vmem:[#allocation8 + $0xb8] sm:$0xff] %v3281
          %3314 = vst [vmem:[#allocation8 + $0xc0] sm:$0xff] %v3282
          %3315 = vst [vmem:[#allocation8 + $0xc8] sm:$0xff] %v3283
          %3316 = vst [vmem:[#allocation8 + $0xd0] sm:$0xff] %v3284
          %3317 = vst [vmem:[#allocation8 + $0xd8] sm:$0xff] %v3285
          %3318 = vst [vmem:[#allocation8 + $0xe0] sm:$0xff] %v3286
          %3319 = vst [vmem:[#allocation8 + $0xe8] sm:$0xff] %v3287
          %3320 = vst [vmem:[#allocation8 + $0xf0] sm:$0xff] %v3288
          %3321 = vst [vmem:[#allocation8 + $0xf8] sm:$0xff] %v3289
        $region56: #{gated_mlp.1} parent=39 // pred_fallthru
          _
        // Predicated region
        $region57: #{gated_mlp.1} parent=39 // pred_check
          %p3322 = pneg %p178
        $region58: #{gated_mlp.1} parent=39 // pred_check_branch
          %3324 = sbr.rel (%p3322) target = $region60
        $region59: #{gated_mlp.1} parent=39 // pred_region
          %s3325 = smul.u32 32, %s27
          %3327 = vsyncadd [#allocation5], 0
          %s3328 = smul.addr %s3325, 2
          %s3329 = smul.addr %s3328, 4
          %s3330 = scalar_lea.hbm %s5, %s3329
          %s3331 = sshll.u32 [#allocation8], 4
          %s3332 = int_to_ptr.vmem [resolvable:$true] %s3331
          %s3333 = sshll.u32 %s3330, 4
          %s3334 = int_to_ptr.hbm [resolvable:$true] %s3333
          %3339 = dma.vmem_to_hbm [thread:$0]  %s3332, 4096, %s3334, [#allocation5], 128, 128, 8
        $region60: #{gated_mlp.1} parent=39 // pred_fallthru
          _
        // Predicated region
        $region61: #{gated_mlp.1} parent=39 // pred_check
          %p3340 = pneg %p178
        $region62: #{gated_mlp.1} parent=39 // pred_check_branch
          %3342 = sbr.rel (%p3340) target = $region64
        $region63: #{gated_mlp.1} parent=39 // pred_region
          %3344 = dma.done [#allocation5], 4096
        $region64: #{gated_mlp.1} parent=39 // pred_fallthru
          _
      $region40: #{gated_mlp.1} parent=5 // pred_fallthru
        _
      %p3345 = scmp.le.s32.totalorder 2, %s18
      // Predicated region
      $region65: #{gated_mlp.1} parent=5 // pred_check
        %p3346 = pneg %p3345
      $region66: #{gated_mlp.1} parent=5 // pred_check_branch
        %3348 = sbr.rel (%p3346) target = $region68
      $region67: #{gated_mlp.1} parent=5 // pred_region
        %s3349 = ssub.s32 %s18, 2
      $region68: #{gated_mlp.1} parent=5 // pred_fallthru
        _
    $region6: #{gated_mlp.1} parent=1 // loop_footer
      %s22 = sadd.s32 1, %s18
    $region7: #{gated_mlp.1} parent=1 // loop_footer_branch
      %17 = sbr.rel target = $region3
    $region8: #{gated_mlp.1} parent=1 // loop_exit
      _
    %3350 = vsyncpa [#allocation4], 1
    %s3351 = scalar_lea.sflag [#allocation4], 1
    %3352 = vsyncpa %s3351, 1
    %3353 = vsyncpa [#allocation7], 1
    %s3354 = scalar_lea.sflag [#allocation7], 1
    %3355 = vsyncpa %s3354, 1
    %3356 = vsyncpa [#allocation5], 1
    %s3357 = scalar_lea.sflag [#allocation5], 1
    %3358 = vsyncpa %s3357, 1

</llo_original>
